<compile_context>
chip_gen: v6e
topology: v6e:2x2x1
jax: 0.10.0
libtpu: 0.0.40
codegen_flags: <defaults>
</compile_context>

<pallas_src>
import math

import jax
import jax.numpy as jnp
from jax.experimental import pallas as pl
from jax.experimental.pallas import tpu as pltpu

# ---- hyperparameters (small, consistent with the module's __init__) ----
LATENT_DIM = 32      # d_model
NHEAD = 4
NUM_LAYERS = 2
DIM_FF = 64
NUM_CLASSES = 5
HEAD_DIM = LATENT_DIM // NHEAD
LN_EPS = 1e-5

BATCH = 2
SEQ = 8              # latent sequence length (before the CLS token)
SEQ_PAD = 16         # SEQ + 1 (CLS) padded up to a sublane multiple
PADDED_CLASSES = 128 # lane-dense output slab width
NEG_INF = -1e9


def _layer_norm(x, w, b):
    mu = jnp.mean(x, axis=-1, keepdims=True)
    xc = x - mu
    var = jnp.mean(xc * xc, axis=-1, keepdims=True)
    return xc * jax.lax.rsqrt(var + LN_EPS) * w + b


# --------------------------------------------------------------------------
# Pallas kernel: CLS+PE assembly + N transformer encoder layers + classifier
# --------------------------------------------------------------------------
def transformer_classifier_kernel(
    lat_ref, cls_ref, pe_ref, kmask_ref,
    wq_ref, bq_ref, wk_ref, bk_ref, wv_ref, bv_ref,   # per-layer q/k/v proj (bf16 W)
    ow_ref, ob_ref,                                   # out_proj
    n1w_ref, n1b_ref, n2w_ref, n2b_ref,               # LayerNorms
    l1w_ref, l1b_ref, l2w_ref, l2b_ref,               # FFN
    cw_ref, cb_ref,                                   # classifier (padded to 128)
    logits_ref,                                       # (B, 128) output
    xbuf_ref,                                         # (B, SEQ_PAD, D) VMEM scratch
):
    B, S, D = lat_ref.shape
    S_pad = xbuf_ref.shape[1]
    N = B * S_pad
    scale = 1.0 / math.sqrt(HEAD_DIM)
    f32 = jnp.float32
    bf16 = jnp.bfloat16

    # ---- assemble [CLS ; latent] + positional encoding into padded scratch ----
    xbuf_ref[:, 0:1, :] = jnp.broadcast_to(
        cls_ref[...] + pe_ref[0:1, :][None, :, :], (B, 1, D))
    xbuf_ref[:, 1:S + 1, :] = lat_ref[...] + pe_ref[1:S + 1, :][None, :, :]
    xbuf_ref[:, S + 1:, :] = jnp.zeros((B, S_pad - S - 1, D), f32)

    kmask = kmask_ref[...][None, :, :]      # (1, 1, S_pad): 0 valid, -1e9 padded

    x2 = xbuf_ref[...].reshape(N, D)        # (32, 32) -- sublane aligned flatten

    for l in range(NUM_LAYERS):             # static, unrolled
        # hoisted per-layer loads (each used once; no repeated re-slicing)
        wq, wk, wv = wq_ref[l], wk_ref[l], wv_ref[l]
        bq = bq_ref[l:l + 1, :]
        bk = bk_ref[l:l + 1, :]
        bv = bv_ref[l:l + 1, :]
        ow, ob = ow_ref[l], ob_ref[l:l + 1, :]
        n1w, n1b = n1w_ref[l:l + 1, :], n1b_ref[l:l + 1, :]
        n2w, n2b = n2w_ref[l:l + 1, :], n2b_ref[l:l + 1, :]
        l1w, l1b = l1w_ref[l], l1b_ref[l:l + 1, :]
        l2w, l2b = l2w_ref[l], l2b_ref[l:l + 1, :]

        # ---------------- multi-head self-attention ----------------
        xb = x2.astype(bf16)
        q = (jnp.dot(xb, wq, preferred_element_type=f32) + bq).reshape(B, S_pad, D)
        k = (jnp.dot(xb, wk, preferred_element_type=f32) + bk).reshape(B, S_pad, D)
        v = (jnp.dot(xb, wv, preferred_element_type=f32) + bv).reshape(B, S_pad, D)

        ctx_heads = []
        for h in range(NHEAD):              # static, 4 iterations
            lo = h * HEAD_DIM
            qh = q[:, :, lo:lo + HEAD_DIM].astype(bf16)
            kh = k[:, :, lo:lo + HEAD_DIM].astype(bf16)
            vh = v[:, :, lo:lo + HEAD_DIM].astype(bf16)
            sc = jnp.einsum('bqd,bkd->bqk', qh, kh,
                            preferred_element_type=f32) * scale + kmask
            sc = sc - jnp.max(sc, axis=-1, keepdims=True)
            p = jnp.exp(sc)
            p = p * pl.reciprocal(jnp.sum(p, axis=-1, keepdims=True), approx=True)
            ctx_heads.append(jnp.einsum('bqk,bkd->bqd', p.astype(bf16), vh,
                                        preferred_element_type=f32))
        ctx = jnp.concatenate(ctx_heads, axis=-1).reshape(N, D)

        attn = jnp.dot(ctx.astype(bf16), ow, preferred_element_type=f32) + ob
        x2 = _layer_norm(x2 + attn, n1w, n1b)

        # ---------------- feed-forward (ReLU, PyTorch default) ----------------
        h1 = jnp.dot(x2.astype(bf16), l1w, preferred_element_type=f32) + l1b
        h1 = jnp.maximum(h1, 0.0)
        h2 = jnp.dot(h1.astype(bf16), l2w, preferred_element_type=f32) + l2b
        x2 = _layer_norm(x2 + h2, n2w, n2b)

    # CLS token (sequence position 0) -> classifier head (lane-dense 128 slab)
    cls_out = x2.reshape(B, S_pad, D)[:, 0, :]                 # (B, D)
    logits_ref[...] = jnp.dot(cls_out.astype(bf16), cw_ref[...],
                              preferred_element_type=f32) + cb_ref[...]


# --------------------------------------------------------------------------
# Glue: positional encoding, parameter init + one-time kernel-layout prep,
#       pallas_call wrapper, pure-JAX reference
# --------------------------------------------------------------------------
def make_positional_encoding(seq_len, d_model):
    position = jnp.arange(seq_len, dtype=jnp.float32)[:, None]
    div_term = jnp.exp(jnp.arange(0, d_model, 2, dtype=jnp.float32)
                       * (-math.log(10000.0) / d_model))
    pe = jnp.zeros((seq_len, d_model), dtype=jnp.float32)
    pe = pe.at[:, 0::2].set(jnp.sin(position * div_term))
    pe = pe.at[:, 1::2].set(jnp.cos(position * div_term))
    return pe


def init_params(key):
    """PyTorch-layout parameters (row-major nn.Linear weights)."""
    D, F, L, C = LATENT_DIM, DIM_FF, NUM_LAYERS, NUM_CLASSES
    ks = jax.random.split(key, 10)
    return {
        'cls_emb': jax.random.normal(ks[0], (1, 1, D), jnp.float32),
        'inw': jax.random.normal(ks[1], (L, 3 * D, D), jnp.float32) / math.sqrt(D),
        'inb': jax.random.normal(ks[2], (L, 3 * D), jnp.float32) * 0.02,
        'ow':  jax.random.normal(ks[3], (L, D, D), jnp.float32) / math.sqrt(D),
        'ob':  jax.random.normal(ks[4], (L, D), jnp.float32) * 0.02,
        'n1w': jnp.ones((L, D), jnp.float32), 'n1b': jnp.zeros((L, D), jnp.float32),
        'n2w': jnp.ones((L, D), jnp.float32), 'n2b': jnp.zeros((L, D), jnp.float32),
        'l1w': jax.random.normal(ks[5], (L, F, D), jnp.float32) / math.sqrt(D),
        'l1b': jax.random.normal(ks[6], (L, F), jnp.float32) * 0.02,
        'l2w': jax.random.normal(ks[7], (L, D, F), jnp.float32) / math.sqrt(F),
        'l2b': jax.random.normal(ks[8], (L, D), jnp.float32) * 0.02,
        # _init_weights(): classifier weight ~ U(-0.1, 0.1), bias = 0
        'cw':  jax.random.uniform(ks[9], (C, D), jnp.float32, -0.1, 0.1),
        'cb':  jnp.zeros((1, C), jnp.float32),
    }


def prepare_kernel_params(p):
    """One-time (outside jit) conversion to kernel layout:
    split fused in_proj into q/k/v, transpose weights to x@W form, cast matmul
    weights to bf16, pad classifier to a 128-lane output slab."""
    D, C = LATENT_DIM, NUM_CLASSES
    bf16 = jnp.bfloat16
    inw, inb = p['inw'], p['inb']
    kp = {
        'cls_emb': p['cls_emb'],
        'wq': jnp.swapaxes(inw[:, 0 * D:1 * D, :], 1, 2).astype(bf16),
        'wk': jnp.swapaxes(inw[:, 1 * D:2 * D, :], 1, 2).astype(bf16),
        'wv': jnp.swapaxes(inw[:, 2 * D:3 * D, :], 1, 2).astype(bf16),
        'bq': inb[:, 0 * D:1 * D],
        'bk': inb[:, 1 * D:2 * D],
        'bv': inb[:, 2 * D:3 * D],
        'ow': jnp.swapaxes(p['ow'], 1, 2).astype(bf16), 'ob': p['ob'],
        'n1w': p['n1w'], 'n1b': p['n1b'], 'n2w': p['n2w'], 'n2b': p['n2b'],
        'l1w': jnp.swapaxes(p['l1w'], 1, 2).astype(bf16), 'l1b': p['l1b'],
        'l2w': jnp.swapaxes(p['l2w'], 1, 2).astype(bf16), 'l2b': p['l2b'],
        'cw': jnp.zeros((D, PADDED_CLASSES), jnp.float32)
                 .at[:, :C].set(p['cw'].T).astype(bf16),
        'cb': jnp.zeros((1, PADDED_CLASSES), jnp.float32).at[:, :C].set(p['cb']),
    }
    return kp


@jax.jit
def eeg_transformer_classifier(latent_sequences, kp, pe, kmask):
    B = latent_sequences.shape[0]
    vmem = pl.BlockSpec(memory_space=pltpu.MemorySpace.VMEM)
    operands = (
        latent_sequences, kp['cls_emb'], pe, kmask,
        kp['wq'], kp['bq'], kp['wk'], kp['bk'], kp['wv'], kp['bv'],
        kp['ow'], kp['ob'],
        kp['n1w'], kp['n1b'], kp['n2w'], kp['n2b'],
        kp['l1w'], kp['l1b'], kp['l2w'], kp['l2b'],
        kp['cw'], kp['cb'],
    )
    padded_logits = pl.pallas_call(
        transformer_classifier_kernel,
        out_shape=jax.ShapeDtypeStruct((B, PADDED_CLASSES), jnp.float32),
        in_specs=[vmem] * len(operands),
        out_specs=vmem,
        scratch_shapes=[pltpu.VMEM((B, SEQ_PAD, LATENT_DIM), jnp.float32)],
    )(*operands)
    return padded_logits[:, :NUM_CLASSES]


def reference_forward(latent_sequences, params, pe):
    """Pure-JAX f32 reference mirroring the PyTorch forward (eval mode)."""
    B = latent_sequences.shape[0]
    D = LATENT_DIM
    cls_tokens = jnp.broadcast_to(params['cls_emb'], (B, 1, D))
    x = jnp.concatenate([cls_tokens, latent_sequences], axis=1) + pe[None]

    def ln(y, w, b):
        mu = jnp.mean(y, -1, keepdims=True)
        var = jnp.mean((y - mu) ** 2, -1, keepdims=True)
        return (y - mu) / jnp.sqrt(var + LN_EPS) * w + b

    for l in range(NUM_LAYERS):
        qkv = x @ params['inw'][l].T + params['inb'][l]
        q, k, v = jnp.split(qkv, 3, axis=-1)
        sh = lambda t: t.reshape(B, -1, NHEAD, HEAD_DIM).transpose(0, 2, 1, 3)
        qh, kh, vh = sh(q), sh(k), sh(v)
        sc = jnp.einsum('bhqd,bhkd->bhqk', qh, kh) / math.sqrt(HEAD_DIM)
        p = jax.nn.softmax(sc, axis=-1)
        ctx = jnp.einsum('bhqk,bhkd->bhqd', p, vh)
        ctx = ctx.transpose(0, 2, 1, 3).reshape(B, -1, D)
        attn = ctx @ params['ow'][l].T + params['ob'][l]
        x = ln(x + attn, params['n1w'][l], params['n1b'][l])
        h = jax.nn.relu(x @ params['l1w'][l].T + params['l1b'][l])
        h = h @ params['l2w'][l].T + params['l2b'][l]
        x = ln(x + h, params['n2w'][l], params['n2b'][l])
    return x[:, 0, :] @ params['cw'].T + params['cb']


if __name__ == "__main__":
    key = jax.random.PRNGKey(0)
    k_data, k_params = jax.random.split(key)

    latent_sequences = jax.random.normal(
        k_data, (BATCH, SEQ, LATENT_DIM), jnp.float32)
    params = init_params(k_params)
    pe = make_positional_encoding(SEQ + 1, LATENT_DIM)   # CLS token adds one pos

    # One-time prep (outside the per-call path): kernel-layout params + key mask
    kparams = prepare_kernel_params(params)
    kmask = jnp.where(jnp.arange(SEQ_PAD) < SEQ + 1, 0.0, NEG_INF
                      ).astype(jnp.float32).reshape(1, SEQ_PAD)

    logits = eeg_transformer_classifier(latent_sequences, kparams, pe, kmask)
    logits = jax.block_until_ready(logits)

    assert logits.shape == (BATCH, NUM_CLASSES)
    assert bool(jnp.all(jnp.isfinite(logits)))

    ref = reference_forward(latent_sequences, params, pe)
    # bf16 MXU operands + approx-reciprocal softmax => slightly looser tolerance
    assert bool(jnp.allclose(logits, ref, atol=5e-2, rtol=5e-2)), (
        float(jnp.max(jnp.abs(logits - ref))))

    print("KERNEL_OK")
</pallas_src>

<mosaic_0001>
module attributes {stable_mosaic.version = 11 : i64} {
  func.func @transformer_classifier_kernel(%arg0: memref<2x8x32xf32, #tpu.memory_space<vmem>>, %arg1: memref<1x1x32xf32, #tpu.memory_space<vmem>>, %arg2: memref<9x32xf32, #tpu.memory_space<vmem>>, %arg3: memref<1x16xf32, #tpu.memory_space<vmem>>, %arg4: memref<2x32x32xbf16, #tpu.memory_space<vmem>>, %arg5: memref<2x32xf32, #tpu.memory_space<vmem>>, %arg6: memref<2x32x32xbf16, #tpu.memory_space<vmem>>, %arg7: memref<2x32xf32, #tpu.memory_space<vmem>>, %arg8: memref<2x32x32xbf16, #tpu.memory_space<vmem>>, %arg9: memref<2x32xf32, #tpu.memory_space<vmem>>, %arg10: memref<2x32x32xbf16, #tpu.memory_space<vmem>>, %arg11: memref<2x32xf32, #tpu.memory_space<vmem>>, %arg12: memref<2x32xf32, #tpu.memory_space<vmem>>, %arg13: memref<2x32xf32, #tpu.memory_space<vmem>>, %arg14: memref<2x32xf32, #tpu.memory_space<vmem>>, %arg15: memref<2x32xf32, #tpu.memory_space<vmem>>, %arg16: memref<2x32x64xbf16, #tpu.memory_space<vmem>>, %arg17: memref<2x64xf32, #tpu.memory_space<vmem>>, %arg18: memref<2x64x32xbf16, #tpu.memory_space<vmem>>, %arg19: memref<2x32xf32, #tpu.memory_space<vmem>>, %arg20: memref<32x128xbf16, #tpu.memory_space<vmem>>, %arg21: memref<1x128xf32, #tpu.memory_space<vmem>>, %arg22: memref<2x128xf32, #tpu.memory_space<vmem>>, %arg23: memref<2x16x32xf32, #tpu.memory_space<vmem>>) attributes {dimension_semantics = [], scalar_prefetch = 0 : i64, scratch_operands = 1 : i64, tpu.core_type = #tpu.core_type<tc>} {
    %c0 = arith.constant 0 : index
    %c0_0 = arith.constant 0 : index
    %c0_1 = arith.constant 0 : index
    %0 = vector.load %arg1[%c0, %c0_0, %c0_1] : memref<1x1x32xf32, #tpu.memory_space<vmem>>, vector<1x1x32xf32>
    %c0_2 = arith.constant 0 : index
    %c0_3 = arith.constant 0 : index
    %1 = vector.load %arg2[%c0_2, %c0_3] : memref<9x32xf32, #tpu.memory_space<vmem>>, vector<1x32xf32>
    %2 = vector.shape_cast %1 : vector<1x32xf32> to vector<1x1x32xf32>
    %3 = arith.addf %0, %2 : vector<1x1x32xf32>
    %4 = vector.shape_cast %3 : vector<1x1x32xf32> to vector<1x1x32xf32>
    %5 = vector.broadcast %4 : vector<1x1x32xf32> to vector<2x1x32xf32>
    %c0_4 = arith.constant 0 : index
    %c0_5 = arith.constant 0 : index
    %c0_6 = arith.constant 0 : index
    %6 = vector.load %arg23[%c0_4, %c0_5, %c0_6] : memref<2x16x32xf32, #tpu.memory_space<vmem>>, vector<2x1x32xf32>
    tpu.vector_store %arg23[%c0_4, %c0_5, %c0_6], %5 {strides = array<i32>} : memref<2x16x32xf32, #tpu.memory_space<vmem>>, vector<2x1x32xf32>,
    %c0_7 = arith.constant 0 : index
    %c0_8 = arith.constant 0 : index
    %c0_9 = arith.constant 0 : index
    %7 = vector.load %arg0[%c0_7, %c0_8, %c0_9] : memref<2x8x32xf32, #tpu.memory_space<vmem>>, vector<2x8x32xf32>
    %c1 = arith.constant 1 : index
    %c0_10 = arith.constant 0 : index
    %8 = vector.load %arg2[%c1, %c0_10] : memref<9x32xf32, #tpu.memory_space<vmem>>, vector<8x32xf32>
    %9 = vector.shape_cast %8 : vector<8x32xf32> to vector<1x8x32xf32>
    %10 = vector.broadcast %9 : vector<1x8x32xf32> to vector<2x8x32xf32>
    %11 = arith.addf %7, %10 : vector<2x8x32xf32>
    %c0_11 = arith.constant 0 : index
    %c1_12 = arith.constant 1 : index
    %c0_13 = arith.constant 0 : index
    %12 = vector.load %arg23[%c0_11, %c1_12, %c0_13] : memref<2x16x32xf32, #tpu.memory_space<vmem>>, vector<2x8x32xf32>
    tpu.vector_store %arg23[%c0_11, %c1_12, %c0_13], %11 {strides = array<i32>} : memref<2x16x32xf32, #tpu.memory_space<vmem>>, vector<2x8x32xf32>,
    %cst = arith.constant 0.000000e+00 : f32
    %13 = vector.broadcast %cst : f32 to vector<2x7x32xf32>
    %c0_14 = arith.constant 0 : index
    %c9 = arith.constant 9 : index
    %c0_15 = arith.constant 0 : index
    %14 = vector.load %arg23[%c0_14, %c9, %c0_15] : memref<2x16x32xf32, #tpu.memory_space<vmem>>, vector<2x7x32xf32>
    tpu.vector_store %arg23[%c0_14, %c9, %c0_15], %13 {strides = array<i32>} : memref<2x16x32xf32, #tpu.memory_space<vmem>>, vector<2x7x32xf32>,
    %c0_16 = arith.constant 0 : index
    %c0_17 = arith.constant 0 : index
    %15 = vector.load %arg3[%c0_16, %c0_17] : memref<1x16xf32, #tpu.memory_space<vmem>>, vector<1x16xf32>
    %16 = vector.shape_cast %15 : vector<1x16xf32> to vector<1x1x16xf32>
    %c0_18 = arith.constant 0 : index
    %c0_19 = arith.constant 0 : index
    %c0_20 = arith.constant 0 : index
    %17 = vector.load %arg23[%c0_18, %c0_19, %c0_20] : memref<2x16x32xf32, #tpu.memory_space<vmem>>, vector<2x16x32xf32>
    %18 = vector.shape_cast %17 : vector<2x16x32xf32> to vector<32x32xf32>
    %c0_21 = arith.constant 0 : index
    %c0_22 = arith.constant 0 : index
    %c0_23 = arith.constant 0 : index
    %19 = vector.load %arg4[%c0_21, %c0_22, %c0_23] : memref<2x32x32xbf16, #tpu.memory_space<vmem>>, vector<1x32x32xbf16>
    %20 = vector.shape_cast %19 : vector<1x32x32xbf16> to vector<32x32xbf16>
    %c0_24 = arith.constant 0 : index
    %c0_25 = arith.constant 0 : index
    %c0_26 = arith.constant 0 : index
    %21 = vector.load %arg6[%c0_24, %c0_25, %c0_26] : memref<2x32x32xbf16, #tpu.memory_space<vmem>>, vector<1x32x32xbf16>
    %22 = vector.shape_cast %21 : vector<1x32x32xbf16> to vector<32x32xbf16>
    %c0_27 = arith.constant 0 : index
    %c0_28 = arith.constant 0 : index
    %c0_29 = arith.constant 0 : index
    %23 = vector.load %arg8[%c0_27, %c0_28, %c0_29] : memref<2x32x32xbf16, #tpu.memory_space<vmem>>, vector<1x32x32xbf16>
    %24 = vector.shape_cast %23 : vector<1x32x32xbf16> to vector<32x32xbf16>
    %c0_30 = arith.constant 0 : index
    %c0_31 = arith.constant 0 : index
    %25 = vector.load %arg5[%c0_30, %c0_31] : memref<2x32xf32, #tpu.memory_space<vmem>>, vector<1x32xf32>
    %c0_32 = arith.constant 0 : index
    %c0_33 = arith.constant 0 : index
    %26 = vector.load %arg7[%c0_32, %c0_33] : memref<2x32xf32, #tpu.memory_space<vmem>>, vector<1x32xf32>
    %c0_34 = arith.constant 0 : index
    %c0_35 = arith.constant 0 : index
    %27 = vector.load %arg9[%c0_34, %c0_35] : memref<2x32xf32, #tpu.memory_space<vmem>>, vector<1x32xf32>
    %c0_36 = arith.constant 0 : index
    %c0_37 = arith.constant 0 : index
    %c0_38 = arith.constant 0 : index
    %28 = vector.load %arg10[%c0_36, %c0_37, %c0_38] : memref<2x32x32xbf16, #tpu.memory_space<vmem>>, vector<1x32x32xbf16>
    %29 = vector.shape_cast %28 : vector<1x32x32xbf16> to vector<32x32xbf16>
    %c0_39 = arith.constant 0 : index
    %c0_40 = arith.constant 0 : index
    %30 = vector.load %arg11[%c0_39, %c0_40] : memref<2x32xf32, #tpu.memory_space<vmem>>, vector<1x32xf32>
    %c0_41 = arith.constant 0 : index
    %c0_42 = arith.constant 0 : index
    %31 = vector.load %arg12[%c0_41, %c0_42] : memref<2x32xf32, #tpu.memory_space<vmem>>, vector<1x32xf32>
    %c0_43 = arith.constant 0 : index
    %c0_44 = arith.constant 0 : index
    %32 = vector.load %arg13[%c0_43, %c0_44] : memref<2x32xf32, #tpu.memory_space<vmem>>, vector<1x32xf32>
    %c0_45 = arith.constant 0 : index
    %c0_46 = arith.constant 0 : index
    %33 = vector.load %arg14[%c0_45, %c0_46] : memref<2x32xf32, #tpu.memory_space<vmem>>, vector<1x32xf32>
    %c0_47 = arith.constant 0 : index
    %c0_48 = arith.constant 0 : index
    %34 = vector.load %arg15[%c0_47, %c0_48] : memref<2x32xf32, #tpu.memory_space<vmem>>, vector<1x32xf32>
    %c0_49 = arith.constant 0 : index
    %c0_50 = arith.constant 0 : index
    %c0_51 = arith.constant 0 : index
    %35 = vector.load %arg16[%c0_49, %c0_50, %c0_51] : memref<2x32x64xbf16, #tpu.memory_space<vmem>>, vector<1x32x64xbf16>
    %36 = vector.shape_cast %35 : vector<1x32x64xbf16> to vector<32x64xbf16>
    %c0_52 = arith.constant 0 : index
    %c0_53 = arith.constant 0 : index
    %37 = vector.load %arg17[%c0_52, %c0_53] : memref<2x64xf32, #tpu.memory_space<vmem>>, vector<1x64xf32>
    %c0_54 = arith.constant 0 : index
    %c0_55 = arith.constant 0 : index
    %c0_56 = arith.constant 0 : index
    %38 = vector.load %arg18[%c0_54, %c0_55, %c0_56] : memref<2x64x32xbf16, #tpu.memory_space<vmem>>, vector<1x64x32xbf16>
    %39 = vector.shape_cast %38 : vector<1x64x32xbf16> to vector<64x32xbf16>
    %c0_57 = arith.constant 0 : index
    %c0_58 = arith.constant 0 : index
    %40 = vector.load %arg19[%c0_57, %c0_58] : memref<2x32xf32, #tpu.memory_space<vmem>>, vector<1x32xf32>
    %41 = arith.truncf %18 : vector<32x32xf32> to vector<32x32xbf16>
    %cst_59 = arith.constant dense<0.000000e+00> : vector<32x32xf32>
    %42 = tpu.matmul %41, %20, %cst_59 {dimension_numbers = #tpu.dot_dimension_numbers<[1], [0], [0], [1], [0, 0, 1, 1], [], []>} : vector<32x32xbf16>, vector<32x32xbf16>, vector<32x32xf32> -> vector<32x32xf32>
    %43 = vector.broadcast %25 : vector<1x32xf32> to vector<32x32xf32>
    %44 = arith.addf %42, %43 : vector<32x32xf32>
    %45 = vector.shape_cast %44 : vector<32x32xf32> to vector<2x16x32xf32>
    %cst_60 = arith.constant dense<0.000000e+00> : vector<32x32xf32>
    %46 = tpu.matmul %41, %22, %cst_60 {dimension_numbers = #tpu.dot_dimension_numbers<[1], [0], [0], [1], [0, 0, 1, 1], [], []>} : vector<32x32xbf16>, vector<32x32xbf16>, vector<32x32xf32> -> vector<32x32xf32>
    %47 = vector.broadcast %26 : vector<1x32xf32> to vector<32x32xf32>
    %48 = arith.addf %46, %47 : vector<32x32xf32>
    %49 = vector.shape_cast %48 : vector<32x32xf32> to vector<2x16x32xf32>
    %cst_61 = arith.constant dense<0.000000e+00> : vector<32x32xf32>
    %50 = tpu.matmul %41, %24, %cst_61 {dimension_numbers = #tpu.dot_dimension_numbers<[1], [0], [0], [1], [0, 0, 1, 1], [], []>} : vector<32x32xbf16>, vector<32x32xbf16>, vector<32x32xf32> -> vector<32x32xf32>
    %51 = vector.broadcast %27 : vector<1x32xf32> to vector<32x32xf32>
    %52 = arith.addf %50, %51 : vector<32x32xf32>
    %53 = vector.shape_cast %52 : vector<32x32xf32> to vector<2x16x32xf32>
    %54 = vector.extract_strided_slice %45 {offsets = [0, 0, 0], sizes = [2, 16, 8], strides = [1, 1, 1]} : vector<2x16x32xf32> to vector<2x16x8xf32>
    %55 = arith.truncf %54 : vector<2x16x8xf32> to vector<2x16x8xbf16>
    %56 = vector.extract_strided_slice %49 {offsets = [0, 0, 0], sizes = [2, 16, 8], strides = [1, 1, 1]} : vector<2x16x32xf32> to vector<2x16x8xf32>
    %57 = arith.truncf %56 : vector<2x16x8xf32> to vector<2x16x8xbf16>
    %58 = vector.extract_strided_slice %53 {offsets = [0, 0, 0], sizes = [2, 16, 8], strides = [1, 1, 1]} : vector<2x16x32xf32> to vector<2x16x8xf32>
    %59 = arith.truncf %58 : vector<2x16x8xf32> to vector<2x16x8xbf16>
    "tpu.trace_start"() <{level = 10 : i32, message = "bqd,bkd->bqk"}> : () -> ()
    %cst_62 = arith.constant dense<0.000000e+00> : vector<2x16x16xf32>
    %60 = tpu.matmul %55, %57, %cst_62 {dimension_numbers = #tpu.dot_dimension_numbers<[2], [2], [1], [1], [0, 0, 0, 1, 1, 1], [0], [0]>} : vector<2x16x8xbf16>, vector<2x16x8xbf16>, vector<2x16x16xf32> -> vector<2x16x16xf32>
    "tpu.trace_stop"() : () -> ()
    %cst_63 = arith.constant 0.353553385 : f32
    %61 = vector.broadcast %cst_63 : f32 to vector<2x16x16xf32>
    %62 = arith.mulf %60, %61 : vector<2x16x16xf32>
    %63 = vector.broadcast %16 : vector<1x1x16xf32> to vector<2x16x16xf32>
    %64 = arith.addf %62, %63 : vector<2x16x16xf32>
    %cst_64 = arith.constant dense<0xFF800000> : vector<2x16xf32>
    %65 = vector.multi_reduction <maximumf>, %64, %cst_64 [2] : vector<2x16x16xf32> to vector<2x16xf32>
    %66 = vector.shape_cast %65 : vector<2x16xf32> to vector<2x16x1xf32>
    %67 = vector.broadcast %66 : vector<2x16x1xf32> to vector<2x16x16xf32>
    %68 = arith.subf %64, %67 : vector<2x16x16xf32>
    %69 = math.exp %68 : vector<2x16x16xf32>
    %cst_65 = arith.constant dense<0.000000e+00> : vector<2x16xf32>
    %70 = vector.multi_reduction <add>, %69, %cst_65 [2] : vector<2x16x16xf32> to vector<2x16xf32>
    %71 = vector.shape_cast %70 : vector<2x16xf32> to vector<2x16x1xf32>
    %72 = tpu.reciprocal %71 {approx = true} : vector<2x16x1xf32> -> vector<2x16x1xf32>
    %73 = vector.broadcast %72 : vector<2x16x1xf32> to vector<2x16x16xf32>
    %74 = arith.mulf %69, %73 : vector<2x16x16xf32>
    %75 = arith.truncf %74 : vector<2x16x16xf32> to vector<2x16x16xbf16>
    "tpu.trace_start"() <{level = 10 : i32, message = "bqk,bkd->bqd"}> : () -> ()
    %cst_66 = arith.constant dense<0.000000e+00> : vector<2x16x8xf32>
    %76 = tpu.matmul %75, %59, %cst_66 {dimension_numbers = #tpu.dot_dimension_numbers<[2], [1], [1], [2], [0, 0, 0, 1, 1, 2], [0], [0]>} : vector<2x16x16xbf16>, vector<2x16x8xbf16>, vector<2x16x8xf32> -> vector<2x16x8xf32>
    "tpu.trace_stop"() : () -> ()
    %77 = vector.extract_strided_slice %45 {offsets = [0, 0, 8], sizes = [2, 16, 8], strides = [1, 1, 1]} : vector<2x16x32xf32> to vector<2x16x8xf32>
    %78 = arith.truncf %77 : vector<2x16x8xf32> to vector<2x16x8xbf16>
    %79 = vector.extract_strided_slice %49 {offsets = [0, 0, 8], sizes = [2, 16, 8], strides = [1, 1, 1]} : vector<2x16x32xf32> to vector<2x16x8xf32>
    %80 = arith.truncf %79 : vector<2x16x8xf32> to vector<2x16x8xbf16>
    %81 = vector.extract_strided_slice %53 {offsets = [0, 0, 8], sizes = [2, 16, 8], strides = [1, 1, 1]} : vector<2x16x32xf32> to vector<2x16x8xf32>
    %82 = arith.truncf %81 : vector<2x16x8xf32> to vector<2x16x8xbf16>
    "tpu.trace_start"() <{level = 10 : i32, message = "bqd,bkd->bqk"}> : () -> ()
    %cst_67 = arith.constant dense<0.000000e+00> : vector<2x16x16xf32>
    %83 = tpu.matmul %78, %80, %cst_67 {dimension_numbers = #tpu.dot_dimension_numbers<[2], [2], [1], [1], [0, 0, 0, 1, 1, 1], [0], [0]>} : vector<2x16x8xbf16>, vector<2x16x8xbf16>, vector<2x16x16xf32> -> vector<2x16x16xf32>
    "tpu.trace_stop"() : () -> ()
    %cst_68 = arith.constant 0.353553385 : f32
    %84 = vector.broadcast %cst_68 : f32 to vector<2x16x16xf32>
    %85 = arith.mulf %83, %84 : vector<2x16x16xf32>
    %86 = vector.broadcast %16 : vector<1x1x16xf32> to vector<2x16x16xf32>
    %87 = arith.addf %85, %86 : vector<2x16x16xf32>
    %cst_69 = arith.constant dense<0xFF800000> : vector<2x16xf32>
    %88 = vector.multi_reduction <maximumf>, %87, %cst_69 [2] : vector<2x16x16xf32> to vector<2x16xf32>
    %89 = vector.shape_cast %88 : vector<2x16xf32> to vector<2x16x1xf32>
    %90 = vector.broadcast %89 : vector<2x16x1xf32> to vector<2x16x16xf32>
    %91 = arith.subf %87, %90 : vector<2x16x16xf32>
    %92 = math.exp %91 : vector<2x16x16xf32>
    %cst_70 = arith.constant dense<0.000000e+00> : vector<2x16xf32>
    %93 = vector.multi_reduction <add>, %92, %cst_70 [2] : vector<2x16x16xf32> to vector<2x16xf32>
    %94 = vector.shape_cast %93 : vector<2x16xf32> to vector<2x16x1xf32>
    %95 = tpu.reciprocal %94 {approx = true} : vector<2x16x1xf32> -> vector<2x16x1xf32>
    %96 = vector.broadcast %95 : vector<2x16x1xf32> to vector<2x16x16xf32>
    %97 = arith.mulf %92, %96 : vector<2x16x16xf32>
    %98 = arith.truncf %97 : vector<2x16x16xf32> to vector<2x16x16xbf16>
    "tpu.trace_start"() <{level = 10 : i32, message = "bqk,bkd->bqd"}> : () -> ()
    %cst_71 = arith.constant dense<0.000000e+00> : vector<2x16x8xf32>
    %99 = tpu.matmul %98, %82, %cst_71 {dimension_numbers = #tpu.dot_dimension_numbers<[2], [1], [1], [2], [0, 0, 0, 1, 1, 2], [0], [0]>} : vector<2x16x16xbf16>, vector<2x16x8xbf16>, vector<2x16x8xf32> -> vector<2x16x8xf32>
    "tpu.trace_stop"() : () -> ()
    %100 = vector.extract_strided_slice %45 {offsets = [0, 0, 16], sizes = [2, 16, 8], strides = [1, 1, 1]} : vector<2x16x32xf32> to vector<2x16x8xf32>
    %101 = arith.truncf %100 : vector<2x16x8xf32> to vector<2x16x8xbf16>
    %102 = vector.extract_strided_slice %49 {offsets = [0, 0, 16], sizes = [2, 16, 8], strides = [1, 1, 1]} : vector<2x16x32xf32> to vector<2x16x8xf32>
    %103 = arith.truncf %102 : vector<2x16x8xf32> to vector<2x16x8xbf16>
    %104 = vector.extract_strided_slice %53 {offsets = [0, 0, 16], sizes = [2, 16, 8], strides = [1, 1, 1]} : vector<2x16x32xf32> to vector<2x16x8xf32>
    %105 = arith.truncf %104 : vector<2x16x8xf32> to vector<2x16x8xbf16>
    "tpu.trace_start"() <{level = 10 : i32, message = "bqd,bkd->bqk"}> : () -> ()
    %cst_72 = arith.constant dense<0.000000e+00> : vector<2x16x16xf32>
    %106 = tpu.matmul %101, %103, %cst_72 {dimension_numbers = #tpu.dot_dimension_numbers<[2], [2], [1], [1], [0, 0, 0, 1, 1, 1], [0], [0]>} : vector<2x16x8xbf16>, vector<2x16x8xbf16>, vector<2x16x16xf32> -> vector<2x16x16xf32>
    "tpu.trace_stop"() : () -> ()
    %cst_73 = arith.constant 0.353553385 : f32
    %107 = vector.broadcast %cst_73 : f32 to vector<2x16x16xf32>
    %108 = arith.mulf %106, %107 : vector<2x16x16xf32>
    %109 = vector.broadcast %16 : vector<1x1x16xf32> to vector<2x16x16xf32>
    %110 = arith.addf %108, %109 : vector<2x16x16xf32>
    %cst_74 = arith.constant dense<0xFF800000> : vector<2x16xf32>
    %111 = vector.multi_reduction <maximumf>, %110, %cst_74 [2] : vector<2x16x16xf32> to vector<2x16xf32>
    %112 = vector.shape_cast %111 : vector<2x16xf32> to vector<2x16x1xf32>
    %113 = vector.broadcast %112 : vector<2x16x1xf32> to vector<2x16x16xf32>
    %114 = arith.subf %110, %113 : vector<2x16x16xf32>
    %115 = math.exp %114 : vector<2x16x16xf32>
    %cst_75 = arith.constant dense<0.000000e+00> : vector<2x16xf32>
    %116 = vector.multi_reduction <add>, %115, %cst_75 [2] : vector<2x16x16xf32> to vector<2x16xf32>
    %117 = vector.shape_cast %116 : vector<2x16xf32> to vector<2x16x1xf32>
    %118 = tpu.reciprocal %117 {approx = true} : vector<2x16x1xf32> -> vector<2x16x1xf32>
    %119 = vector.broadcast %118 : vector<2x16x1xf32> to vector<2x16x16xf32>
    %120 = arith.mulf %115, %119 : vector<2x16x16xf32>
    %121 = arith.truncf %120 : vector<2x16x16xf32> to vector<2x16x16xbf16>
    "tpu.trace_start"() <{level = 10 : i32, message = "bqk,bkd->bqd"}> : () -> ()
    %cst_76 = arith.constant dense<0.000000e+00> : vector<2x16x8xf32>
    %122 = tpu.matmul %121, %105, %cst_76 {dimension_numbers = #tpu.dot_dimension_numbers<[2], [1], [1], [2], [0, 0, 0, 1, 1, 2], [0], [0]>} : vector<2x16x16xbf16>, vector<2x16x8xbf16>, vector<2x16x8xf32> -> vector<2x16x8xf32>
    "tpu.trace_stop"() : () -> ()
    %123 = vector.extract_strided_slice %45 {offsets = [0, 0, 24], sizes = [2, 16, 8], strides = [1, 1, 1]} : vector<2x16x32xf32> to vector<2x16x8xf32>
    %124 = arith.truncf %123 : vector<2x16x8xf32> to vector<2x16x8xbf16>
    %125 = vector.extract_strided_slice %49 {offsets = [0, 0, 24], sizes = [2, 16, 8], strides = [1, 1, 1]} : vector<2x16x32xf32> to vector<2x16x8xf32>
    %126 = arith.truncf %125 : vector<2x16x8xf32> to vector<2x16x8xbf16>
    %127 = vector.extract_strided_slice %53 {offsets = [0, 0, 24], sizes = [2, 16, 8], strides = [1, 1, 1]} : vector<2x16x32xf32> to vector<2x16x8xf32>
    %128 = arith.truncf %127 : vector<2x16x8xf32> to vector<2x16x8xbf16>
    "tpu.trace_start"() <{level = 10 : i32, message = "bqd,bkd->bqk"}> : () -> ()
    %cst_77 = arith.constant dense<0.000000e+00> : vector<2x16x16xf32>
    %129 = tpu.matmul %124, %126, %cst_77 {dimension_numbers = #tpu.dot_dimension_numbers<[2], [2], [1], [1], [0, 0, 0, 1, 1, 1], [0], [0]>} : vector<2x16x8xbf16>, vector<2x16x8xbf16>, vector<2x16x16xf32> -> vector<2x16x16xf32>
    "tpu.trace_stop"() : () -> ()
    %cst_78 = arith.constant 0.353553385 : f32
    %130 = vector.broadcast %cst_78 : f32 to vector<2x16x16xf32>
    %131 = arith.mulf %129, %130 : vector<2x16x16xf32>
    %132 = vector.broadcast %16 : vector<1x1x16xf32> to vector<2x16x16xf32>
    %133 = arith.addf %131, %132 : vector<2x16x16xf32>
    %cst_79 = arith.constant dense<0xFF800000> : vector<2x16xf32>
    %134 = vector.multi_reduction <maximumf>, %133, %cst_79 [2] : vector<2x16x16xf32> to vector<2x16xf32>
    %135 = vector.shape_cast %134 : vector<2x16xf32> to vector<2x16x1xf32>
    %136 = vector.broadcast %135 : vector<2x16x1xf32> to vector<2x16x16xf32>
    %137 = arith.subf %133, %136 : vector<2x16x16xf32>
    %138 = math.exp %137 : vector<2x16x16xf32>
    %cst_80 = arith.constant dense<0.000000e+00> : vector<2x16xf32>
    %139 = vector.multi_reduction <add>, %138, %cst_80 [2] : vector<2x16x16xf32> to vector<2x16xf32>
    %140 = vector.shape_cast %139 : vector<2x16xf32> to vector<2x16x1xf32>
    %141 = tpu.reciprocal %140 {approx = true} : vector<2x16x1xf32> -> vector<2x16x1xf32>
    %142 = vector.broadcast %141 : vector<2x16x1xf32> to vector<2x16x16xf32>
    %143 = arith.mulf %138, %142 : vector<2x16x16xf32>
    %144 = arith.truncf %143 : vector<2x16x16xf32> to vector<2x16x16xbf16>
    "tpu.trace_start"() <{level = 10 : i32, message = "bqk,bkd->bqd"}> : () -> ()
    %cst_81 = arith.constant dense<0.000000e+00> : vector<2x16x8xf32>
    %145 = tpu.matmul %144, %128, %cst_81 {dimension_numbers = #tpu.dot_dimension_numbers<[2], [1], [1], [2], [0, 0, 0, 1, 1, 2], [0], [0]>} : vector<2x16x16xbf16>, vector<2x16x8xbf16>, vector<2x16x8xf32> -> vector<2x16x8xf32>
    "tpu.trace_stop"() : () -> ()
    %146 = tpu.concatenate %76, %99, %122, %145 in 2 : vector<2x16x8xf32>, vector<2x16x8xf32>, vector<2x16x8xf32>, vector<2x16x8xf32> -> vector<2x16x32xf32>
    %147 = vector.shape_cast %146 : vector<2x16x32xf32> to vector<32x32xf32>
    %148 = arith.truncf %147 : vector<32x32xf32> to vector<32x32xbf16>
    %cst_82 = arith.constant dense<0.000000e+00> : vector<32x32xf32>
    %149 = tpu.matmul %148, %29, %cst_82 {dimension_numbers = #tpu.dot_dimension_numbers<[1], [0], [0], [1], [0, 0, 1, 1], [], []>} : vector<32x32xbf16>, vector<32x32xbf16>, vector<32x32xf32> -> vector<32x32xf32>
    %150 = vector.broadcast %30 : vector<1x32xf32> to vector<32x32xf32>
    %151 = arith.addf %149, %150 : vector<32x32xf32>
    %152 = arith.addf %18, %151 : vector<32x32xf32>
    %cst_83 = arith.constant dense<0.000000e+00> : vector<32xf32>
    %153 = vector.multi_reduction <add>, %152, %cst_83 [1] : vector<32x32xf32> to vector<32xf32>
    %154 = vector.shape_cast %153 : vector<32xf32> to vector<32x1xf32>
    %cst_84 = arith.constant 3.200000e+01 : f32
    %155 = vector.broadcast %cst_84 : f32 to vector<32x1xf32>
    %156 = arith.divf %154, %155 : vector<32x1xf32>
    %157 = vector.broadcast %156 : vector<32x1xf32> to vector<32x32xf32>
    %158 = arith.subf %152, %157 : vector<32x32xf32>
    %159 = arith.mulf %158, %158 : vector<32x32xf32>
    %cst_85 = arith.constant dense<0.000000e+00> : vector<32xf32>
    %160 = vector.multi_reduction <add>, %159, %cst_85 [1] : vector<32x32xf32> to vector<32xf32>
    %161 = vector.shape_cast %160 : vector<32xf32> to vector<32x1xf32>
    %cst_86 = arith.constant 3.200000e+01 : f32
    %162 = vector.broadcast %cst_86 : f32 to vector<32x1xf32>
    %163 = arith.divf %161, %162 : vector<32x1xf32>
    %cst_87 = arith.constant 9.99999974E-6 : f32
    %164 = vector.broadcast %cst_87 : f32 to vector<32x1xf32>
    %165 = arith.addf %163, %164 : vector<32x1xf32>
    %166 = math.rsqrt %165 : vector<32x1xf32>
    %167 = vector.broadcast %166 : vector<32x1xf32> to vector<32x32xf32>
    %168 = arith.mulf %158, %167 : vector<32x32xf32>
    %169 = vector.broadcast %31 : vector<1x32xf32> to vector<32x32xf32>
    %170 = arith.mulf %168, %169 : vector<32x32xf32>
    %171 = vector.broadcast %32 : vector<1x32xf32> to vector<32x32xf32>
    %172 = arith.addf %170, %171 : vector<32x32xf32>
    %173 = arith.truncf %172 : vector<32x32xf32> to vector<32x32xbf16>
    %cst_88 = arith.constant dense<0.000000e+00> : vector<32x64xf32>
    %174 = tpu.matmul %173, %36, %cst_88 {dimension_numbers = #tpu.dot_dimension_numbers<[1], [0], [0], [1], [0, 0, 1, 1], [], []>} : vector<32x32xbf16>, vector<32x64xbf16>, vector<32x64xf32> -> vector<32x64xf32>
    %175 = vector.broadcast %37 : vector<1x64xf32> to vector<32x64xf32>
    %176 = arith.addf %174, %175 : vector<32x64xf32>
    %cst_89 = arith.constant 0.000000e+00 : f32
    %177 = vector.broadcast %cst_89 : f32 to vector<32x64xf32>
    %178 = arith.maximumf %176, %177 : vector<32x64xf32>
    %179 = arith.truncf %178 : vector<32x64xf32> to vector<32x64xbf16>
    %cst_90 = arith.constant dense<0.000000e+00> : vector<32x32xf32>
    %180 = tpu.matmul %179, %39, %cst_90 {dimension_numbers = #tpu.dot_dimension_numbers<[1], [0], [0], [1], [0, 0, 1, 1], [], []>} : vector<32x64xbf16>, vector<64x32xbf16>, vector<32x32xf32> -> vector<32x32xf32>
    %181 = vector.broadcast %40 : vector<1x32xf32> to vector<32x32xf32>
    %182 = arith.addf %180, %181 : vector<32x32xf32>
    %183 = arith.addf %172, %182 : vector<32x32xf32>
    %cst_91 = arith.constant dense<0.000000e+00> : vector<32xf32>
    %184 = vector.multi_reduction <add>, %183, %cst_91 [1] : vector<32x32xf32> to vector<32xf32>
    %185 = vector.shape_cast %184 : vector<32xf32> to vector<32x1xf32>
    %cst_92 = arith.constant 3.200000e+01 : f32
    %186 = vector.broadcast %cst_92 : f32 to vector<32x1xf32>
    %187 = arith.divf %185, %186 : vector<32x1xf32>
    %188 = vector.broadcast %187 : vector<32x1xf32> to vector<32x32xf32>
    %189 = arith.subf %183, %188 : vector<32x32xf32>
    %190 = arith.mulf %189, %189 : vector<32x32xf32>
    %cst_93 = arith.constant dense<0.000000e+00> : vector<32xf32>
    %191 = vector.multi_reduction <add>, %190, %cst_93 [1] : vector<32x32xf32> to vector<32xf32>
    %192 = vector.shape_cast %191 : vector<32xf32> to vector<32x1xf32>
    %cst_94 = arith.constant 3.200000e+01 : f32
    %193 = vector.broadcast %cst_94 : f32 to vector<32x1xf32>
    %194 = arith.divf %192, %193 : vector<32x1xf32>
    %cst_95 = arith.constant 9.99999974E-6 : f32
    %195 = vector.broadcast %cst_95 : f32 to vector<32x1xf32>
    %196 = arith.addf %194, %195 : vector<32x1xf32>
    %197 = math.rsqrt %196 : vector<32x1xf32>
    %198 = vector.broadcast %197 : vector<32x1xf32> to vector<32x32xf32>
    %199 = arith.mulf %189, %198 : vector<32x32xf32>
    %200 = vector.broadcast %33 : vector<1x32xf32> to vector<32x32xf32>
    %201 = arith.mulf %199, %200 : vector<32x32xf32>
    %202 = vector.broadcast %34 : vector<1x32xf32> to vector<32x32xf32>
    %203 = arith.addf %201, %202 : vector<32x32xf32>
    %c1_96 = arith.constant 1 : index
    %c0_97 = arith.constant 0 : index
    %c0_98 = arith.constant 0 : index
    %204 = vector.load %arg4[%c1_96, %c0_97, %c0_98] : memref<2x32x32xbf16, #tpu.memory_space<vmem>>, vector<1x32x32xbf16>
    %205 = vector.shape_cast %204 : vector<1x32x32xbf16> to vector<32x32xbf16>
    %c1_99 = arith.constant 1 : index
    %c0_100 = arith.constant 0 : index
    %c0_101 = arith.constant 0 : index
    %206 = vector.load %arg6[%c1_99, %c0_100, %c0_101] : memref<2x32x32xbf16, #tpu.memory_space<vmem>>, vector<1x32x32xbf16>
    %207 = vector.shape_cast %206 : vector<1x32x32xbf16> to vector<32x32xbf16>
    %c1_102 = arith.constant 1 : index
    %c0_103 = arith.constant 0 : index
    %c0_104 = arith.constant 0 : index
    %208 = vector.load %arg8[%c1_102, %c0_103, %c0_104] : memref<2x32x32xbf16, #tpu.memory_space<vmem>>, vector<1x32x32xbf16>
    %209 = vector.shape_cast %208 : vector<1x32x32xbf16> to vector<32x32xbf16>
    %c1_105 = arith.constant 1 : index
    %c0_106 = arith.constant 0 : index
    %210 = vector.load %arg5[%c1_105, %c0_106] : memref<2x32xf32, #tpu.memory_space<vmem>>, vector<1x32xf32>
    %c1_107 = arith.constant 1 : index
    %c0_108 = arith.constant 0 : index
    %211 = vector.load %arg7[%c1_107, %c0_108] : memref<2x32xf32, #tpu.memory_space<vmem>>, vector<1x32xf32>
    %c1_109 = arith.constant 1 : index
    %c0_110 = arith.constant 0 : index
    %212 = vector.load %arg9[%c1_109, %c0_110] : memref<2x32xf32, #tpu.memory_space<vmem>>, vector<1x32xf32>
    %c1_111 = arith.constant 1 : index
    %c0_112 = arith.constant 0 : index
    %c0_113 = arith.constant 0 : index
    %213 = vector.load %arg10[%c1_111, %c0_112, %c0_113] : memref<2x32x32xbf16, #tpu.memory_space<vmem>>, vector<1x32x32xbf16>
    %214 = vector.shape_cast %213 : vector<1x32x32xbf16> to vector<32x32xbf16>
    %c1_114 = arith.constant 1 : index
    %c0_115 = arith.constant 0 : index
    %215 = vector.load %arg11[%c1_114, %c0_115] : memref<2x32xf32, #tpu.memory_space<vmem>>, vector<1x32xf32>
    %c1_116 = arith.constant 1 : index
    %c0_117 = arith.constant 0 : index
    %216 = vector.load %arg12[%c1_116, %c0_117] : memref<2x32xf32, #tpu.memory_space<vmem>>, vector<1x32xf32>
    %c1_118 = arith.constant 1 : index
    %c0_119 = arith.constant 0 : index
    %217 = vector.load %arg13[%c1_118, %c0_119] : memref<2x32xf32, #tpu.memory_space<vmem>>, vector<1x32xf32>
    %c1_120 = arith.constant 1 : index
    %c0_121 = arith.constant 0 : index
    %218 = vector.load %arg14[%c1_120, %c0_121] : memref<2x32xf32, #tpu.memory_space<vmem>>, vector<1x32xf32>
    %c1_122 = arith.constant 1 : index
    %c0_123 = arith.constant 0 : index
    %219 = vector.load %arg15[%c1_122, %c0_123] : memref<2x32xf32, #tpu.memory_space<vmem>>, vector<1x32xf32>
    %c1_124 = arith.constant 1 : index
    %c0_125 = arith.constant 0 : index
    %c0_126 = arith.constant 0 : index
    %220 = vector.load %arg16[%c1_124, %c0_125, %c0_126] : memref<2x32x64xbf16, #tpu.memory_space<vmem>>, vector<1x32x64xbf16>
    %221 = vector.shape_cast %220 : vector<1x32x64xbf16> to vector<32x64xbf16>
    %c1_127 = arith.constant 1 : index
    %c0_128 = arith.constant 0 : index
    %222 = vector.load %arg17[%c1_127, %c0_128] : memref<2x64xf32, #tpu.memory_space<vmem>>, vector<1x64xf32>
    %c1_129 = arith.constant 1 : index
    %c0_130 = arith.constant 0 : index
    %c0_131 = arith.constant 0 : index
    %223 = vector.load %arg18[%c1_129, %c0_130, %c0_131] : memref<2x64x32xbf16, #tpu.memory_space<vmem>>, vector<1x64x32xbf16>
    %224 = vector.shape_cast %223 : vector<1x64x32xbf16> to vector<64x32xbf16>
    %c1_132 = arith.constant 1 : index
    %c0_133 = arith.constant 0 : index
    %225 = vector.load %arg19[%c1_132, %c0_133] : memref<2x32xf32, #tpu.memory_space<vmem>>, vector<1x32xf32>
    %226 = arith.truncf %203 : vector<32x32xf32> to vector<32x32xbf16>
    %cst_134 = arith.constant dense<0.000000e+00> : vector<32x32xf32>
    %227 = tpu.matmul %226, %205, %cst_134 {dimension_numbers = #tpu.dot_dimension_numbers<[1], [0], [0], [1], [0, 0, 1, 1], [], []>} : vector<32x32xbf16>, vector<32x32xbf16>, vector<32x32xf32> -> vector<32x32xf32>
    %228 = vector.broadcast %210 : vector<1x32xf32> to vector<32x32xf32>
    %229 = arith.addf %227, %228 : vector<32x32xf32>
    %230 = vector.shape_cast %229 : vector<32x32xf32> to vector<2x16x32xf32>
    %cst_135 = arith.constant dense<0.000000e+00> : vector<32x32xf32>
    %231 = tpu.matmul %226, %207, %cst_135 {dimension_numbers = #tpu.dot_dimension_numbers<[1], [0], [0], [1], [0, 0, 1, 1], [], []>} : vector<32x32xbf16>, vector<32x32xbf16>, vector<32x32xf32> -> vector<32x32xf32>
    %232 = vector.broadcast %211 : vector<1x32xf32> to vector<32x32xf32>
    %233 = arith.addf %231, %232 : vector<32x32xf32>
    %234 = vector.shape_cast %233 : vector<32x32xf32> to vector<2x16x32xf32>
    %cst_136 = arith.constant dense<0.000000e+00> : vector<32x32xf32>
    %235 = tpu.matmul %226, %209, %cst_136 {dimension_numbers = #tpu.dot_dimension_numbers<[1], [0], [0], [1], [0, 0, 1, 1], [], []>} : vector<32x32xbf16>, vector<32x32xbf16>, vector<32x32xf32> -> vector<32x32xf32>
    %236 = vector.broadcast %212 : vector<1x32xf32> to vector<32x32xf32>
    %237 = arith.addf %235, %236 : vector<32x32xf32>
    %238 = vector.shape_cast %237 : vector<32x32xf32> to vector<2x16x32xf32>
    %239 = vector.extract_strided_slice %230 {offsets = [0, 0, 0], sizes = [2, 16, 8], strides = [1, 1, 1]} : vector<2x16x32xf32> to vector<2x16x8xf32>
    %240 = arith.truncf %239 : vector<2x16x8xf32> to vector<2x16x8xbf16>
    %241 = vector.extract_strided_slice %234 {offsets = [0, 0, 0], sizes = [2, 16, 8], strides = [1, 1, 1]} : vector<2x16x32xf32> to vector<2x16x8xf32>
    %242 = arith.truncf %241 : vector<2x16x8xf32> to vector<2x16x8xbf16>
    %243 = vector.extract_strided_slice %238 {offsets = [0, 0, 0], sizes = [2, 16, 8], strides = [1, 1, 1]} : vector<2x16x32xf32> to vector<2x16x8xf32>
    %244 = arith.truncf %243 : vector<2x16x8xf32> to vector<2x16x8xbf16>
    "tpu.trace_start"() <{level = 10 : i32, message = "bqd,bkd->bqk"}> : () -> ()
    %cst_137 = arith.constant dense<0.000000e+00> : vector<2x16x16xf32>
    %245 = tpu.matmul %240, %242, %cst_137 {dimension_numbers = #tpu.dot_dimension_numbers<[2], [2], [1], [1], [0, 0, 0, 1, 1, 1], [0], [0]>} : vector<2x16x8xbf16>, vector<2x16x8xbf16>, vector<2x16x16xf32> -> vector<2x16x16xf32>
    "tpu.trace_stop"() : () -> ()
    %cst_138 = arith.constant 0.353553385 : f32
    %246 = vector.broadcast %cst_138 : f32 to vector<2x16x16xf32>
    %247 = arith.mulf %245, %246 : vector<2x16x16xf32>
    %248 = vector.broadcast %16 : vector<1x1x16xf32> to vector<2x16x16xf32>
    %249 = arith.addf %247, %248 : vector<2x16x16xf32>
    %cst_139 = arith.constant dense<0xFF800000> : vector<2x16xf32>
    %250 = vector.multi_reduction <maximumf>, %249, %cst_139 [2] : vector<2x16x16xf32> to vector<2x16xf32>
    %251 = vector.shape_cast %250 : vector<2x16xf32> to vector<2x16x1xf32>
    %252 = vector.broadcast %251 : vector<2x16x1xf32> to vector<2x16x16xf32>
    %253 = arith.subf %249, %252 : vector<2x16x16xf32>
    %254 = math.exp %253 : vector<2x16x16xf32>
    %cst_140 = arith.constant dense<0.000000e+00> : vector<2x16xf32>
    %255 = vector.multi_reduction <add>, %254, %cst_140 [2] : vector<2x16x16xf32> to vector<2x16xf32>
    %256 = vector.shape_cast %255 : vector<2x16xf32> to vector<2x16x1xf32>
    %257 = tpu.reciprocal %256 {approx = true} : vector<2x16x1xf32> -> vector<2x16x1xf32>
    %258 = vector.broadcast %257 : vector<2x16x1xf32> to vector<2x16x16xf32>
    %259 = arith.mulf %254, %258 : vector<2x16x16xf32>
    %260 = arith.truncf %259 : vector<2x16x16xf32> to vector<2x16x16xbf16>
    "tpu.trace_start"() <{level = 10 : i32, message = "bqk,bkd->bqd"}> : () -> ()
    %cst_141 = arith.constant dense<0.000000e+00> : vector<2x16x8xf32>
    %261 = tpu.matmul %260, %244, %cst_141 {dimension_numbers = #tpu.dot_dimension_numbers<[2], [1], [1], [2], [0, 0, 0, 1, 1, 2], [0], [0]>} : vector<2x16x16xbf16>, vector<2x16x8xbf16>, vector<2x16x8xf32> -> vector<2x16x8xf32>
    "tpu.trace_stop"() : () -> ()
    %262 = vector.extract_strided_slice %230 {offsets = [0, 0, 8], sizes = [2, 16, 8], strides = [1, 1, 1]} : vector<2x16x32xf32> to vector<2x16x8xf32>
    %263 = arith.truncf %262 : vector<2x16x8xf32> to vector<2x16x8xbf16>
    %264 = vector.extract_strided_slice %234 {offsets = [0, 0, 8], sizes = [2, 16, 8], strides = [1, 1, 1]} : vector<2x16x32xf32> to vector<2x16x8xf32>
    %265 = arith.truncf %264 : vector<2x16x8xf32> to vector<2x16x8xbf16>
    %266 = vector.extract_strided_slice %238 {offsets = [0, 0, 8], sizes = [2, 16, 8], strides = [1, 1, 1]} : vector<2x16x32xf32> to vector<2x16x8xf32>
    %267 = arith.truncf %266 : vector<2x16x8xf32> to vector<2x16x8xbf16>
    "tpu.trace_start"() <{level = 10 : i32, message = "bqd,bkd->bqk"}> : () -> ()
    %cst_142 = arith.constant dense<0.000000e+00> : vector<2x16x16xf32>
    %268 = tpu.matmul %263, %265, %cst_142 {dimension_numbers = #tpu.dot_dimension_numbers<[2], [2], [1], [1], [0, 0, 0, 1, 1, 1], [0], [0]>} : vector<2x16x8xbf16>, vector<2x16x8xbf16>, vector<2x16x16xf32> -> vector<2x16x16xf32>
    "tpu.trace_stop"() : () -> ()
    %cst_143 = arith.constant 0.353553385 : f32
    %269 = vector.broadcast %cst_143 : f32 to vector<2x16x16xf32>
    %270 = arith.mulf %268, %269 : vector<2x16x16xf32>
    %271 = vector.broadcast %16 : vector<1x1x16xf32> to vector<2x16x16xf32>
    %272 = arith.addf %270, %271 : vector<2x16x16xf32>
    %cst_144 = arith.constant dense<0xFF800000> : vector<2x16xf32>
    %273 = vector.multi_reduction <maximumf>, %272, %cst_144 [2] : vector<2x16x16xf32> to vector<2x16xf32>
    %274 = vector.shape_cast %273 : vector<2x16xf32> to vector<2x16x1xf32>
    %275 = vector.broadcast %274 : vector<2x16x1xf32> to vector<2x16x16xf32>
    %276 = arith.subf %272, %275 : vector<2x16x16xf32>
    %277 = math.exp %276 : vector<2x16x16xf32>
    %cst_145 = arith.constant dense<0.000000e+00> : vector<2x16xf32>
    %278 = vector.multi_reduction <add>, %277, %cst_145 [2] : vector<2x16x16xf32> to vector<2x16xf32>
    %279 = vector.shape_cast %278 : vector<2x16xf32> to vector<2x16x1xf32>
    %280 = tpu.reciprocal %279 {approx = true} : vector<2x16x1xf32> -> vector<2x16x1xf32>
    %281 = vector.broadcast %280 : vector<2x16x1xf32> to vector<2x16x16xf32>
    %282 = arith.mulf %277, %281 : vector<2x16x16xf32>
    %283 = arith.truncf %282 : vector<2x16x16xf32> to vector<2x16x16xbf16>
    "tpu.trace_start"() <{level = 10 : i32, message = "bqk,bkd->bqd"}> : () -> ()
    %cst_146 = arith.constant dense<0.000000e+00> : vector<2x16x8xf32>
    %284 = tpu.matmul %283, %267, %cst_146 {dimension_numbers = #tpu.dot_dimension_numbers<[2], [1], [1], [2], [0, 0, 0, 1, 1, 2], [0], [0]>} : vector<2x16x16xbf16>, vector<2x16x8xbf16>, vector<2x16x8xf32> -> vector<2x16x8xf32>
    "tpu.trace_stop"() : () -> ()
    %285 = vector.extract_strided_slice %230 {offsets = [0, 0, 16], sizes = [2, 16, 8], strides = [1, 1, 1]} : vector<2x16x32xf32> to vector<2x16x8xf32>
    %286 = arith.truncf %285 : vector<2x16x8xf32> to vector<2x16x8xbf16>
    %287 = vector.extract_strided_slice %234 {offsets = [0, 0, 16], sizes = [2, 16, 8], strides = [1, 1, 1]} : vector<2x16x32xf32> to vector<2x16x8xf32>
    %288 = arith.truncf %287 : vector<2x16x8xf32> to vector<2x16x8xbf16>
    %289 = vector.extract_strided_slice %238 {offsets = [0, 0, 16], sizes = [2, 16, 8], strides = [1, 1, 1]} : vector<2x16x32xf32> to vector<2x16x8xf32>
    %290 = arith.truncf %289 : vector<2x16x8xf32> to vector<2x16x8xbf16>
    "tpu.trace_start"() <{level = 10 : i32, message = "bqd,bkd->bqk"}> : () -> ()
    %cst_147 = arith.constant dense<0.000000e+00> : vector<2x16x16xf32>
    %291 = tpu.matmul %286, %288, %cst_147 {dimension_numbers = #tpu.dot_dimension_numbers<[2], [2], [1], [1], [0, 0, 0, 1, 1, 1], [0], [0]>} : vector<2x16x8xbf16>, vector<2x16x8xbf16>, vector<2x16x16xf32> -> vector<2x16x16xf32>
    "tpu.trace_stop"() : () -> ()
    %cst_148 = arith.constant 0.353553385 : f32
    %292 = vector.broadcast %cst_148 : f32 to vector<2x16x16xf32>
    %293 = arith.mulf %291, %292 : vector<2x16x16xf32>
    %294 = vector.broadcast %16 : vector<1x1x16xf32> to vector<2x16x16xf32>
    %295 = arith.addf %293, %294 : vector<2x16x16xf32>
    %cst_149 = arith.constant dense<0xFF800000> : vector<2x16xf32>
    %296 = vector.multi_reduction <maximumf>, %295, %cst_149 [2] : vector<2x16x16xf32> to vector<2x16xf32>
    %297 = vector.shape_cast %296 : vector<2x16xf32> to vector<2x16x1xf32>
    %298 = vector.broadcast %297 : vector<2x16x1xf32> to vector<2x16x16xf32>
    %299 = arith.subf %295, %298 : vector<2x16x16xf32>
    %300 = math.exp %299 : vector<2x16x16xf32>
    %cst_150 = arith.constant dense<0.000000e+00> : vector<2x16xf32>
    %301 = vector.multi_reduction <add>, %300, %cst_150 [2] : vector<2x16x16xf32> to vector<2x16xf32>
    %302 = vector.shape_cast %301 : vector<2x16xf32> to vector<2x16x1xf32>
    %303 = tpu.reciprocal %302 {approx = true} : vector<2x16x1xf32> -> vector<2x16x1xf32>
    %304 = vector.broadcast %303 : vector<2x16x1xf32> to vector<2x16x16xf32>
    %305 = arith.mulf %300, %304 : vector<2x16x16xf32>
    %306 = arith.truncf %305 : vector<2x16x16xf32> to vector<2x16x16xbf16>
    "tpu.trace_start"() <{level = 10 : i32, message = "bqk,bkd->bqd"}> : () -> ()
    %cst_151 = arith.constant dense<0.000000e+00> : vector<2x16x8xf32>
    %307 = tpu.matmul %306, %290, %cst_151 {dimension_numbers = #tpu.dot_dimension_numbers<[2], [1], [1], [2], [0, 0, 0, 1, 1, 2], [0], [0]>} : vector<2x16x16xbf16>, vector<2x16x8xbf16>, vector<2x16x8xf32> -> vector<2x16x8xf32>
    "tpu.trace_stop"() : () -> ()
    %308 = vector.extract_strided_slice %230 {offsets = [0, 0, 24], sizes = [2, 16, 8], strides = [1, 1, 1]} : vector<2x16x32xf32> to vector<2x16x8xf32>
    %309 = arith.truncf %308 : vector<2x16x8xf32> to vector<2x16x8xbf16>
    %310 = vector.extract_strided_slice %234 {offsets = [0, 0, 24], sizes = [2, 16, 8], strides = [1, 1, 1]} : vector<2x16x32xf32> to vector<2x16x8xf32>
    %311 = arith.truncf %310 : vector<2x16x8xf32> to vector<2x16x8xbf16>
    %312 = vector.extract_strided_slice %238 {offsets = [0, 0, 24], sizes = [2, 16, 8], strides = [1, 1, 1]} : vector<2x16x32xf32> to vector<2x16x8xf32>
    %313 = arith.truncf %312 : vector<2x16x8xf32> to vector<2x16x8xbf16>
    "tpu.trace_start"() <{level = 10 : i32, message = "bqd,bkd->bqk"}> : () -> ()
    %cst_152 = arith.constant dense<0.000000e+00> : vector<2x16x16xf32>
    %314 = tpu.matmul %309, %311, %cst_152 {dimension_numbers = #tpu.dot_dimension_numbers<[2], [2], [1], [1], [0, 0, 0, 1, 1, 1], [0], [0]>} : vector<2x16x8xbf16>, vector<2x16x8xbf16>, vector<2x16x16xf32> -> vector<2x16x16xf32>
    "tpu.trace_stop"() : () -> ()
    %cst_153 = arith.constant 0.353553385 : f32
    %315 = vector.broadcast %cst_153 : f32 to vector<2x16x16xf32>
    %316 = arith.mulf %314, %315 : vector<2x16x16xf32>
    %317 = vector.broadcast %16 : vector<1x1x16xf32> to vector<2x16x16xf32>
    %318 = arith.addf %316, %317 : vector<2x16x16xf32>
    %cst_154 = arith.constant dense<0xFF800000> : vector<2x16xf32>
    %319 = vector.multi_reduction <maximumf>, %318, %cst_154 [2] : vector<2x16x16xf32> to vector<2x16xf32>
    %320 = vector.shape_cast %319 : vector<2x16xf32> to vector<2x16x1xf32>
    %321 = vector.broadcast %320 : vector<2x16x1xf32> to vector<2x16x16xf32>
    %322 = arith.subf %318, %321 : vector<2x16x16xf32>
    %323 = math.exp %322 : vector<2x16x16xf32>
    %cst_155 = arith.constant dense<0.000000e+00> : vector<2x16xf32>
    %324 = vector.multi_reduction <add>, %323, %cst_155 [2] : vector<2x16x16xf32> to vector<2x16xf32>
    %325 = vector.shape_cast %324 : vector<2x16xf32> to vector<2x16x1xf32>
    %326 = tpu.reciprocal %325 {approx = true} : vector<2x16x1xf32> -> vector<2x16x1xf32>
    %327 = vector.broadcast %326 : vector<2x16x1xf32> to vector<2x16x16xf32>
    %328 = arith.mulf %323, %327 : vector<2x16x16xf32>
    %329 = arith.truncf %328 : vector<2x16x16xf32> to vector<2x16x16xbf16>
    "tpu.trace_start"() <{level = 10 : i32, message = "bqk,bkd->bqd"}> : () -> ()
    %cst_156 = arith.constant dense<0.000000e+00> : vector<2x16x8xf32>
    %330 = tpu.matmul %329, %313, %cst_156 {dimension_numbers = #tpu.dot_dimension_numbers<[2], [1], [1], [2], [0, 0, 0, 1, 1, 2], [0], [0]>} : vector<2x16x16xbf16>, vector<2x16x8xbf16>, vector<2x16x8xf32> -> vector<2x16x8xf32>
    "tpu.trace_stop"() : () -> ()
    %331 = tpu.concatenate %261, %284, %307, %330 in 2 : vector<2x16x8xf32>, vector<2x16x8xf32>, vector<2x16x8xf32>, vector<2x16x8xf32> -> vector<2x16x32xf32>
    %332 = vector.shape_cast %331 : vector<2x16x32xf32> to vector<32x32xf32>
    %333 = arith.truncf %332 : vector<32x32xf32> to vector<32x32xbf16>
    %cst_157 = arith.constant dense<0.000000e+00> : vector<32x32xf32>
    %334 = tpu.matmul %333, %214, %cst_157 {dimension_numbers = #tpu.dot_dimension_numbers<[1], [0], [0], [1], [0, 0, 1, 1], [], []>} : vector<32x32xbf16>, vector<32x32xbf16>, vector<32x32xf32> -> vector<32x32xf32>
    %335 = vector.broadcast %215 : vector<1x32xf32> to vector<32x32xf32>
    %336 = arith.addf %334, %335 : vector<32x32xf32>
    %337 = arith.addf %203, %336 : vector<32x32xf32>
    %cst_158 = arith.constant dense<0.000000e+00> : vector<32xf32>
    %338 = vector.multi_reduction <add>, %337, %cst_158 [1] : vector<32x32xf32> to vector<32xf32>
    %339 = vector.shape_cast %338 : vector<32xf32> to vector<32x1xf32>
    %cst_159 = arith.constant 3.200000e+01 : f32
    %340 = vector.broadcast %cst_159 : f32 to vector<32x1xf32>
    %341 = arith.divf %339, %340 : vector<32x1xf32>
    %342 = vector.broadcast %341 : vector<32x1xf32> to vector<32x32xf32>
    %343 = arith.subf %337, %342 : vector<32x32xf32>
    %344 = arith.mulf %343, %343 : vector<32x32xf32>
    %cst_160 = arith.constant dense<0.000000e+00> : vector<32xf32>
    %345 = vector.multi_reduction <add>, %344, %cst_160 [1] : vector<32x32xf32> to vector<32xf32>
    %346 = vector.shape_cast %345 : vector<32xf32> to vector<32x1xf32>
    %cst_161 = arith.constant 3.200000e+01 : f32
    %347 = vector.broadcast %cst_161 : f32 to vector<32x1xf32>
    %348 = arith.divf %346, %347 : vector<32x1xf32>
    %cst_162 = arith.constant 9.99999974E-6 : f32
    %349 = vector.broadcast %cst_162 : f32 to vector<32x1xf32>
    %350 = arith.addf %348, %349 : vector<32x1xf32>
    %351 = math.rsqrt %350 : vector<32x1xf32>
    %352 = vector.broadcast %351 : vector<32x1xf32> to vector<32x32xf32>
    %353 = arith.mulf %343, %352 : vector<32x32xf32>
    %354 = vector.broadcast %216 : vector<1x32xf32> to vector<32x32xf32>
    %355 = arith.mulf %353, %354 : vector<32x32xf32>
    %356 = vector.broadcast %217 : vector<1x32xf32> to vector<32x32xf32>
    %357 = arith.addf %355, %356 : vector<32x32xf32>
    %358 = arith.truncf %357 : vector<32x32xf32> to vector<32x32xbf16>
    %cst_163 = arith.constant dense<0.000000e+00> : vector<32x64xf32>
    %359 = tpu.matmul %358, %221, %cst_163 {dimension_numbers = #tpu.dot_dimension_numbers<[1], [0], [0], [1], [0, 0, 1, 1], [], []>} : vector<32x32xbf16>, vector<32x64xbf16>, vector<32x64xf32> -> vector<32x64xf32>
    %360 = vector.broadcast %222 : vector<1x64xf32> to vector<32x64xf32>
    %361 = arith.addf %359, %360 : vector<32x64xf32>
    %cst_164 = arith.constant 0.000000e+00 : f32
    %362 = vector.broadcast %cst_164 : f32 to vector<32x64xf32>
    %363 = arith.maximumf %361, %362 : vector<32x64xf32>
    %364 = arith.truncf %363 : vector<32x64xf32> to vector<32x64xbf16>
    %cst_165 = arith.constant dense<0.000000e+00> : vector<32x32xf32>
    %365 = tpu.matmul %364, %224, %cst_165 {dimension_numbers = #tpu.dot_dimension_numbers<[1], [0], [0], [1], [0, 0, 1, 1], [], []>} : vector<32x64xbf16>, vector<64x32xbf16>, vector<32x32xf32> -> vector<32x32xf32>
    %366 = vector.broadcast %225 : vector<1x32xf32> to vector<32x32xf32>
    %367 = arith.addf %365, %366 : vector<32x32xf32>
    %368 = arith.addf %357, %367 : vector<32x32xf32>
    %cst_166 = arith.constant dense<0.000000e+00> : vector<32xf32>
    %369 = vector.multi_reduction <add>, %368, %cst_166 [1] : vector<32x32xf32> to vector<32xf32>
    %370 = vector.shape_cast %369 : vector<32xf32> to vector<32x1xf32>
    %cst_167 = arith.constant 3.200000e+01 : f32
    %371 = vector.broadcast %cst_167 : f32 to vector<32x1xf32>
    %372 = arith.divf %370, %371 : vector<32x1xf32>
    %373 = vector.broadcast %372 : vector<32x1xf32> to vector<32x32xf32>
    %374 = arith.subf %368, %373 : vector<32x32xf32>
    %375 = arith.mulf %374, %374 : vector<32x32xf32>
    %cst_168 = arith.constant dense<0.000000e+00> : vector<32xf32>
    %376 = vector.multi_reduction <add>, %375, %cst_168 [1] : vector<32x32xf32> to vector<32xf32>
    %377 = vector.shape_cast %376 : vector<32xf32> to vector<32x1xf32>
    %cst_169 = arith.constant 3.200000e+01 : f32
    %378 = vector.broadcast %cst_169 : f32 to vector<32x1xf32>
    %379 = arith.divf %377, %378 : vector<32x1xf32>
    %cst_170 = arith.constant 9.99999974E-6 : f32
    %380 = vector.broadcast %cst_170 : f32 to vector<32x1xf32>
    %381 = arith.addf %379, %380 : vector<32x1xf32>
    %382 = math.rsqrt %381 : vector<32x1xf32>
    %383 = vector.broadcast %382 : vector<32x1xf32> to vector<32x32xf32>
    %384 = arith.mulf %374, %383 : vector<32x32xf32>
    %385 = vector.broadcast %218 : vector<1x32xf32> to vector<32x32xf32>
    %386 = arith.mulf %384, %385 : vector<32x32xf32>
    %387 = vector.broadcast %219 : vector<1x32xf32> to vector<32x32xf32>
    %388 = arith.addf %386, %387 : vector<32x32xf32>
    %389 = vector.shape_cast %388 : vector<32x32xf32> to vector<2x16x32xf32>
    %390 = vector.extract_strided_slice %389 {offsets = [0, 0, 0], sizes = [2, 1, 32], strides = [1, 1, 1]} : vector<2x16x32xf32> to vector<2x1x32xf32>
    %391 = vector.shape_cast %390 : vector<2x1x32xf32> to vector<2x32xf32>
    %392 = arith.truncf %391 : vector<2x32xf32> to vector<2x32xbf16>
    %c0_171 = arith.constant 0 : index
    %c0_172 = arith.constant 0 : index
    %393 = vector.load %arg20[%c0_171, %c0_172] : memref<32x128xbf16, #tpu.memory_space<vmem>>, vector<32x128xbf16>
    %cst_173 = arith.constant dense<0.000000e+00> : vector<2x128xf32>
    %394 = tpu.matmul %392, %393, %cst_173 {dimension_numbers = #tpu.dot_dimension_numbers<[1], [0], [0], [1], [0, 0, 1, 1], [], []>} : vector<2x32xbf16>, vector<32x128xbf16>, vector<2x128xf32> -> vector<2x128xf32>
    %c0_174 = arith.constant 0 : index
    %c0_175 = arith.constant 0 : index
    %395 = vector.load %arg21[%c0_174, %c0_175] : memref<1x128xf32, #tpu.memory_space<vmem>>, vector<1x128xf32>
    %396 = vector.broadcast %395 : vector<1x128xf32> to vector<2x128xf32>
    %397 = arith.addf %394, %396 : vector<2x128xf32>
    %c0_176 = arith.constant 0 : index
    %c0_177 = arith.constant 0 : index
    %398 = vector.load %arg22[%c0_176, %c0_177] : memref<2x128xf32, #tpu.memory_space<vmem>>, vector<2x128xf32>
    tpu.vector_store %arg22[%c0_176, %c0_177], %397 {strides = array<i32>} : memref<2x128xf32, #tpu.memory_space<vmem>>, vector<2x128xf32>,
    return
  }
}

</mosaic_0001>

<llo_original>
// kernel: eeg_transformer_classifier.1
$region0: #{eeg_transformer_classifier.1}
  #allocation0 [shape = 'u32[]', space=smem, size = 0x4, offset = 0x4, fixed_abs, tag = 'smem constant byte address 0x4 - core index']
  #allocation1 [shape = 'u32[144,128]{1,0:T(1,128)}', space=vmem, size = 0x12000, scoped, tag = 'internal scratch']
  #allocation2 [shape = 'f32[2,16,32]{2,1,0:T(8,128)}', space=vmem, size = 0x4000, scoped, tag = 'scratch operand']
  %s0 = inlined_call_operand.hbm [shape: f32[2,8,32], index: 0, kind: input, shape index: {}]
  %s1 = inlined_call_operand.hbm [shape: f32[1,1,32], index: 1, kind: input, shape index: {}]
  %s2 = inlined_call_operand.vmem [shape: f32[9,32], index: 2, kind: input, shape index: {}]
  %s3 = inlined_call_operand.vmem [shape: f32[1,16], index: 3, kind: input, shape index: {}]
  %s4 = inlined_call_operand.vmem [shape: bf16[2,32,32], index: 4, kind: input, shape index: {}]
  %s5 = inlined_call_operand.hbm [shape: f32[2,32], index: 5, kind: input, shape index: {}]
  %s6 = inlined_call_operand.vmem [shape: bf16[2,32,32], index: 6, kind: input, shape index: {}]
  %s7 = inlined_call_operand.hbm [shape: f32[2,32], index: 7, kind: input, shape index: {}]
  %s8 = inlined_call_operand.vmem [shape: bf16[2,32,32], index: 8, kind: input, shape index: {}]
  %s9 = inlined_call_operand.hbm [shape: f32[2,32], index: 9, kind: input, shape index: {}]
  %s10 = inlined_call_operand.hbm [shape: bf16[2,32,32], index: 10, kind: input, shape index: {}]
  %s11 = inlined_call_operand.vmem [shape: f32[2,32], index: 11, kind: input, shape index: {}]
  %s12 = inlined_call_operand.vmem [shape: f32[2,32], index: 12, kind: input, shape index: {}]
  %s13 = inlined_call_operand.hbm [shape: f32[2,32], index: 13, kind: input, shape index: {}]
  %s14 = inlined_call_operand.vmem [shape: f32[2,32], index: 14, kind: input, shape index: {}]
  %s15 = inlined_call_operand.hbm [shape: f32[2,32], index: 15, kind: input, shape index: {}]
  %s16 = inlined_call_operand.hbm [shape: bf16[2,32,64], index: 16, kind: input, shape index: {}]
  %s17 = inlined_call_operand.hbm [shape: f32[2,64], index: 17, kind: input, shape index: {}]
  %s18 = inlined_call_operand.vmem [shape: bf16[2,64,32], index: 18, kind: input, shape index: {}]
  %s19 = inlined_call_operand.hbm [shape: f32[2,32], index: 19, kind: input, shape index: {}]
  %s20 = inlined_call_operand.hbm [shape: bf16[32,128], index: 20, kind: input, shape index: {}]
  %s21 = inlined_call_operand.hbm [shape: f32[1,128], index: 21, kind: input, shape index: {}]
  %s22 = inlined_call_operand.hbm [shape: f32[2,128], index: 22, kind: output, shape index: {}]
  %s23 = sld [smem:[#allocation0]]
  $region150: #{eeg_transformer_classifier.1} parent=0
    _
  %s25 = ssub.s32 1, %s23
  %s26 = scalar_select 0, %s25, %s23
  $region1: #{eeg_transformer_classifier.1} parent=0
    #allocation3 [shape = 'u8[8192]{0}', space=vmem, size = 0x2000, scoped, tag = 'input window, operand 0, single buffered']
    #allocation4 [shape = 's32[1]{0}', space=sflag, size = 0x4, scoped, tag = 'scoped memory for eeg_transformer_classifier.1']
    #allocation5 [shape = 's32[1]{0}', space=sflag, size = 0x4, scoped, tag = 'scoped memory for eeg_transformer_classifier.1']
    #allocation6 [shape = 'u8[512]{0}', space=vmem, size = 0x400, scoped, tag = 'input window, operand 1, single buffered']
    #allocation7 [shape = 's32[1]{0}', space=sflag, size = 0x4, scoped, tag = 'scoped memory for eeg_transformer_classifier.1']
    #allocation8 [shape = 'u8[1024]{0}', space=vmem, size = 0x400, scoped, tag = 'input window, operand 5, single buffered']
    #allocation9 [shape = 'u8[1024]{0}', space=vmem, size = 0x400, scoped, tag = 'input window, operand 7, single buffered']
    #allocation10 [shape = 's32[1]{0}', space=sflag, size = 0x4, scoped, tag = 'scoped memory for eeg_transformer_classifier.1']
    #allocation11 [shape = 'u8[1024]{0}', space=vmem, size = 0x400, scoped, tag = 'input window, operand 9, single buffered']
    #allocation12 [shape = 'u8[16384]{0}', space=vmem, size = 0x4000, scoped, tag = 'input window, operand 10, single buffered']
    #allocation13 [shape = 's32[1]{0}', space=sflag, size = 0x4, scoped, tag = 'scoped memory for eeg_transformer_classifier.1']
    #allocation14 [shape = 'u8[1024]{0}', space=vmem, size = 0x400, scoped, tag = 'input window, operand 13, single buffered']
    #allocation15 [shape = 'u8[1024]{0}', space=vmem, size = 0x400, scoped, tag = 'input window, operand 15, single buffered']
    #allocation16 [shape = 's32[1]{0}', space=sflag, size = 0x4, scoped, tag = 'scoped memory for eeg_transformer_classifier.1']
    #allocation17 [shape = 'u8[16384]{0}', space=vmem, size = 0x4000, scoped, tag = 'input window, operand 16, single buffered']
    #allocation18 [shape = 'u8[1024]{0}', space=vmem, size = 0x400, scoped, tag = 'input window, operand 17, single buffered']
    #allocation19 [shape = 's32[1]{0}', space=sflag, size = 0x4, scoped, tag = 'scoped memory for eeg_transformer_classifier.1']
    #allocation20 [shape = 'u8[1024]{0}', space=vmem, size = 0x400, scoped, tag = 'input window, operand 19, single buffered']
    #allocation21 [shape = 'u8[8192]{0}', space=vmem, size = 0x2000, scoped, tag = 'input window, operand 20, single buffered']
    #allocation22 [shape = 's32[1]{0}', space=sflag, size = 0x4, scoped, tag = 'scoped memory for eeg_transformer_classifier.1']
    #allocation23 [shape = 'u8[512]{0}', space=vmem, size = 0x400, scoped, tag = 'input window, operand 21, single buffered']
    #allocation24 [shape = 'u8[1024]{0}', space=vmem, size = 0x400, scoped, tag = 'output window, operand 0, single buffered']
    %27 = vsyncpa [#allocation4], 0
    %28 = vsyncpa [#allocation7], 0
    %29 = vsyncpa [#allocation10], 0
    %30 = vsyncpa [#allocation13], 0
    %31 = vsyncpa [#allocation16], 0
    %32 = vsyncpa [#allocation19], 0
    %33 = vsyncpa [#allocation22], 0
    %34 = vsyncpa [#allocation5], 0
    // Predicated region
    $region2: #{eeg_transformer_classifier.1} parent=1 // pred_check
      _
    $region3: #{eeg_transformer_classifier.1} parent=1 // pred_check_branch
      %36 = sbr.rel (0) target = $region5
    $region4: #{eeg_transformer_classifier.1} parent=1 // pred_region
      %s38 = ssub.s32 256, 256
      %39 = vsyncadd [#allocation4], %s38
      %s40 = sshll.u32 [#allocation3], 4
      %s41 = int_to_ptr.vmem [resolvable:$true] %s40
      %46 = dma.hbm_to_vmem [thread:$0]  %s0, 256, %s41, [#allocation4], 128, 128, 8
    $region5: #{eeg_transformer_classifier.1} parent=1 // pred_fallthru
      _
    // Predicated region
    $region6: #{eeg_transformer_classifier.1} parent=1 // pred_check
      _
    $region7: #{eeg_transformer_classifier.1} parent=1 // pred_check_branch
      %48 = sbr.rel (0) target = $region9
    $region8: #{eeg_transformer_classifier.1} parent=1 // pred_region
      %s50 = ssub.s32 16, 16
      %51 = vsyncadd [#allocation7], %s50
      %s53 = sshll.u32 [#allocation6], 4
      %s54 = int_to_ptr.vmem [resolvable:$true] %s53
      %56 = dma.hbm_to_vmem [thread:$0]  %s1, 16, %s54, [#allocation7]
    $region9: #{eeg_transformer_classifier.1} parent=1 // pred_fallthru
      _
    // Predicated region
    $region10: #{eeg_transformer_classifier.1} parent=1 // pred_check
      _
    $region11: #{eeg_transformer_classifier.1} parent=1 // pred_check_branch
      %58 = sbr.rel (0) target = $region13
    $region12: #{eeg_transformer_classifier.1} parent=1 // pred_region
      _
    $region13: #{eeg_transformer_classifier.1} parent=1 // pred_fallthru
      _
    // Predicated region
    $region14: #{eeg_transformer_classifier.1} parent=1 // pred_check
      _
    $region15: #{eeg_transformer_classifier.1} parent=1 // pred_check_branch
      %60 = sbr.rel (0) target = $region17
    $region16: #{eeg_transformer_classifier.1} parent=1 // pred_region
      _
    $region17: #{eeg_transformer_classifier.1} parent=1 // pred_fallthru
      _
    // Predicated region
    $region18: #{eeg_transformer_classifier.1} parent=1 // pred_check
      _
    $region19: #{eeg_transformer_classifier.1} parent=1 // pred_check_branch
      %62 = sbr.rel (0) target = $region21
    $region20: #{eeg_transformer_classifier.1} parent=1 // pred_region
      _
    $region21: #{eeg_transformer_classifier.1} parent=1 // pred_fallthru
      _
    // Predicated region
    $region22: #{eeg_transformer_classifier.1} parent=1 // pred_check
      _
    $region23: #{eeg_transformer_classifier.1} parent=1 // pred_check_branch
      %64 = sbr.rel (0) target = $region25
    $region24: #{eeg_transformer_classifier.1} parent=1 // pred_region
      %s66 = ssub.s32 32, 32
      %67 = vsyncadd [#allocation7], %s66
      %s69 = sshll.u32 [#allocation8], 4
      %s70 = int_to_ptr.vmem [resolvable:$true] %s69
      %72 = dma.hbm_to_vmem [thread:$0]  %s5, 32, %s70, [#allocation7]
    $region25: #{eeg_transformer_classifier.1} parent=1 // pred_fallthru
      _
    // Predicated region
    $region26: #{eeg_transformer_classifier.1} parent=1 // pred_check
      _
    $region27: #{eeg_transformer_classifier.1} parent=1 // pred_check_branch
      %74 = sbr.rel (0) target = $region29
    $region28: #{eeg_transformer_classifier.1} parent=1 // pred_region
      _
    $region29: #{eeg_transformer_classifier.1} parent=1 // pred_fallthru
      _
    // Predicated region
    $region30: #{eeg_transformer_classifier.1} parent=1 // pred_check
      _
    $region31: #{eeg_transformer_classifier.1} parent=1 // pred_check_branch
      %76 = sbr.rel (0) target = $region33
    $region32: #{eeg_transformer_classifier.1} parent=1 // pred_region
      %s78 = ssub.s32 32, 32
      %79 = vsyncadd [#allocation10], %s78
      %s81 = sshll.u32 [#allocation9], 4
      %s82 = int_to_ptr.vmem [resolvable:$true] %s81
      %84 = dma.hbm_to_vmem [thread:$0]  %s7, 32, %s82, [#allocation10]
    $region33: #{eeg_transformer_classifier.1} parent=1 // pred_fallthru
      _
    // Predicated region
    $region34: #{eeg_transformer_classifier.1} parent=1 // pred_check
      _
    $region35: #{eeg_transformer_classifier.1} parent=1 // pred_check_branch
      %86 = sbr.rel (0) target = $region37
    $region36: #{eeg_transformer_classifier.1} parent=1 // pred_region
      _
    $region37: #{eeg_transformer_classifier.1} parent=1 // pred_fallthru
      _
    // Predicated region
    $region38: #{eeg_transformer_classifier.1} parent=1 // pred_check
      _
    $region39: #{eeg_transformer_classifier.1} parent=1 // pred_check_branch
      %88 = sbr.rel (0) target = $region41
    $region40: #{eeg_transformer_classifier.1} parent=1 // pred_region
      %s90 = ssub.s32 32, 32
      %91 = vsyncadd [#allocation10], %s90
      %s93 = sshll.u32 [#allocation11], 4
      %s94 = int_to_ptr.vmem [resolvable:$true] %s93
      %96 = dma.hbm_to_vmem [thread:$0]  %s9, 32, %s94, [#allocation10]
    $region41: #{eeg_transformer_classifier.1} parent=1 // pred_fallthru
      _
    // Predicated region
    $region42: #{eeg_transformer_classifier.1} parent=1 // pred_check
      _
    $region43: #{eeg_transformer_classifier.1} parent=1 // pred_check_branch
      %98 = sbr.rel (0) target = $region45
    $region44: #{eeg_transformer_classifier.1} parent=1 // pred_region
      %s100 = ssub.s32 512, 512
      %101 = vsyncadd [#allocation13], %s100
      %s102 = sshll.u32 [#allocation12], 4
      %s103 = int_to_ptr.vmem [resolvable:$true] %s102
      %108 = dma.hbm_to_vmem [thread:$0]  %s10, 512, %s103, [#allocation13], 64, 64, 4
    $region45: #{eeg_transformer_classifier.1} parent=1 // pred_fallthru
      _
    // Predicated region
    $region46: #{eeg_transformer_classifier.1} parent=1 // pred_check
      _
    $region47: #{eeg_transformer_classifier.1} parent=1 // pred_check_branch
      %110 = sbr.rel (0) target = $region49
    $region48: #{eeg_transformer_classifier.1} parent=1 // pred_region
      _
    $region49: #{eeg_transformer_classifier.1} parent=1 // pred_fallthru
      _
    // Predicated region
    $region50: #{eeg_transformer_classifier.1} parent=1 // pred_check
      _
    $region51: #{eeg_transformer_classifier.1} parent=1 // pred_check_branch
      %112 = sbr.rel (0) target = $region53
    $region52: #{eeg_transformer_classifier.1} parent=1 // pred_region
      _
    $region53: #{eeg_transformer_classifier.1} parent=1 // pred_fallthru
      _
    // Predicated region
    $region54: #{eeg_transformer_classifier.1} parent=1 // pred_check
      _
    $region55: #{eeg_transformer_classifier.1} parent=1 // pred_check_branch
      %114 = sbr.rel (0) target = $region57
    $region56: #{eeg_transformer_classifier.1} parent=1 // pred_region
      %s116 = ssub.s32 32, 32
      %117 = vsyncadd [#allocation13], %s116
      %s119 = sshll.u32 [#allocation14], 4
      %s120 = int_to_ptr.vmem [resolvable:$true] %s119
      %122 = dma.hbm_to_vmem [thread:$0]  %s13, 32, %s120, [#allocation13]
    $region57: #{eeg_transformer_classifier.1} parent=1 // pred_fallthru
      _
    // Predicated region
    $region58: #{eeg_transformer_classifier.1} parent=1 // pred_check
      _
    $region59: #{eeg_transformer_classifier.1} parent=1 // pred_check_branch
      %124 = sbr.rel (0) target = $region61
    $region60: #{eeg_transformer_classifier.1} parent=1 // pred_region
      _
    $region61: #{eeg_transformer_classifier.1} parent=1 // pred_fallthru
      _
    // Predicated region
    $region62: #{eeg_transformer_classifier.1} parent=1 // pred_check
      _
    $region63: #{eeg_transformer_classifier.1} parent=1 // pred_check_branch
      %126 = sbr.rel (0) target = $region65
    $region64: #{eeg_transformer_classifier.1} parent=1 // pred_region
      %s128 = ssub.s32 32, 32
      %129 = vsyncadd [#allocation16], %s128
      %s131 = sshll.u32 [#allocation15], 4
      %s132 = int_to_ptr.vmem [resolvable:$true] %s131
      %134 = dma.hbm_to_vmem [thread:$0]  %s15, 32, %s132, [#allocation16]
    $region65: #{eeg_transformer_classifier.1} parent=1 // pred_fallthru
      _
    // Predicated region
    $region66: #{eeg_transformer_classifier.1} parent=1 // pred_check
      _
    $region67: #{eeg_transformer_classifier.1} parent=1 // pred_check_branch
      %136 = sbr.rel (0) target = $region69
    $region68: #{eeg_transformer_classifier.1} parent=1 // pred_region
      %s138 = ssub.s32 512, 512
      %139 = vsyncadd [#allocation16], %s138
      %s140 = sshll.u32 [#allocation17], 4
      %s141 = int_to_ptr.vmem [resolvable:$true] %s140
      %146 = dma.hbm_to_vmem [thread:$0]  %s16, 512, %s141, [#allocation16], 64, 64, 4
    $region69: #{eeg_transformer_classifier.1} parent=1 // pred_fallthru
      _
    // Predicated region
    $region70: #{eeg_transformer_classifier.1} parent=1 // pred_check
      _
    $region71: #{eeg_transformer_classifier.1} parent=1 // pred_check_branch
      %148 = sbr.rel (0) target = $region73
    $region72: #{eeg_transformer_classifier.1} parent=1 // pred_region
      %s150 = ssub.s32 32, 32
      %151 = vsyncadd [#allocation19], %s150
      %s153 = sshll.u32 [#allocation18], 4
      %s154 = int_to_ptr.vmem [resolvable:$true] %s153
      %156 = dma.hbm_to_vmem [thread:$0]  %s17, 32, %s154, [#allocation19]
    $region73: #{eeg_transformer_classifier.1} parent=1 // pred_fallthru
      _
    // Predicated region
    $region74: #{eeg_transformer_classifier.1} parent=1 // pred_check
      _
    $region75: #{eeg_transformer_classifier.1} parent=1 // pred_check_branch
      %158 = sbr.rel (0) target = $region77
    $region76: #{eeg_transformer_classifier.1} parent=1 // pred_region
      _
    $region77: #{eeg_transformer_classifier.1} parent=1 // pred_fallthru
      _
    // Predicated region
    $region78: #{eeg_transformer_classifier.1} parent=1 // pred_check
      _
    $region79: #{eeg_transformer_classifier.1} parent=1 // pred_check_branch
      %160 = sbr.rel (0) target = $region81
    $region80: #{eeg_transformer_classifier.1} parent=1 // pred_region
      %s162 = ssub.s32 32, 32
      %163 = vsyncadd [#allocation19], %s162
      %s165 = sshll.u32 [#allocation20], 4
      %s166 = int_to_ptr.vmem [resolvable:$true] %s165
      %168 = dma.hbm_to_vmem [thread:$0]  %s19, 32, %s166, [#allocation19]
    $region81: #{eeg_transformer_classifier.1} parent=1 // pred_fallthru
      _
    // Predicated region
    $region82: #{eeg_transformer_classifier.1} parent=1 // pred_check
      _
    $region83: #{eeg_transformer_classifier.1} parent=1 // pred_check_branch
      %170 = sbr.rel (0) target = $region85
    $region84: #{eeg_transformer_classifier.1} parent=1 // pred_region
      %s172 = ssub.s32 256, 256
      %173 = vsyncadd [#allocation22], %s172
      %s174 = sshll.u32 [#allocation21], 4
      %s175 = int_to_ptr.vmem [resolvable:$true] %s174
      %180 = dma.hbm_to_vmem [thread:$0]  %s20, 256, %s175, [#allocation22], 64, 64, 4
    $region85: #{eeg_transformer_classifier.1} parent=1 // pred_fallthru
      _
    // Predicated region
    $region86: #{eeg_transformer_classifier.1} parent=1 // pred_check
      _
    $region87: #{eeg_transformer_classifier.1} parent=1 // pred_check_branch
      %182 = sbr.rel (0) target = $region89
    $region88: #{eeg_transformer_classifier.1} parent=1 // pred_region
      %s184 = ssub.s32 16, 16
      %185 = vsyncadd [#allocation22], %s184
      %s187 = sshll.u32 [#allocation23], 4
      %s188 = int_to_ptr.vmem [resolvable:$true] %s187
      %190 = dma.hbm_to_vmem [thread:$0]  %s21, 16, %s188, [#allocation22]
    $region89: #{eeg_transformer_classifier.1} parent=1 // pred_fallthru
      _
    // Predicated region
    $region90: #{eeg_transformer_classifier.1} parent=1 // pred_check
      _
    $region91: #{eeg_transformer_classifier.1} parent=1 // pred_check_branch
      %192 = sbr.rel (0) target = $region93
    $region92: #{eeg_transformer_classifier.1} parent=1 // pred_region
      %193 = dma.done [#allocation4], 256
    $region93: #{eeg_transformer_classifier.1} parent=1 // pred_fallthru
      _
    // Predicated region
    $region94: #{eeg_transformer_classifier.1} parent=1 // pred_check
      _
    $region95: #{eeg_transformer_classifier.1} parent=1 // pred_check_branch
      %195 = sbr.rel (0) target = $region97
    $region96: #{eeg_transformer_classifier.1} parent=1 // pred_region
      %196 = dma.done [#allocation7], 16
    $region97: #{eeg_transformer_classifier.1} parent=1 // pred_fallthru
      _
    // Predicated region
    $region98: #{eeg_transformer_classifier.1} parent=1 // pred_check
      _
    $region99: #{eeg_transformer_classifier.1} parent=1 // pred_check_branch
      %198 = sbr.rel (0) target = $region101
    $region100: #{eeg_transformer_classifier.1} parent=1 // pred_region
      %199 = dma.done [#allocation7], 32
    $region101: #{eeg_transformer_classifier.1} parent=1 // pred_fallthru
      _
    // Predicated region
    $region102: #{eeg_transformer_classifier.1} parent=1 // pred_check
      _
    $region103: #{eeg_transformer_classifier.1} parent=1 // pred_check_branch
      %201 = sbr.rel (0) target = $region105
    $region104: #{eeg_transformer_classifier.1} parent=1 // pred_region
      %202 = dma.done [#allocation10], 32
    $region105: #{eeg_transformer_classifier.1} parent=1 // pred_fallthru
      _
    // Predicated region
    $region106: #{eeg_transformer_classifier.1} parent=1 // pred_check
      _
    $region107: #{eeg_transformer_classifier.1} parent=1 // pred_check_branch
      %204 = sbr.rel (0) target = $region109
    $region108: #{eeg_transformer_classifier.1} parent=1 // pred_region
      %205 = dma.done [#allocation10], 32
    $region109: #{eeg_transformer_classifier.1} parent=1 // pred_fallthru
      _
    // Predicated region
    $region110: #{eeg_transformer_classifier.1} parent=1 // pred_check
      _
    $region111: #{eeg_transformer_classifier.1} parent=1 // pred_check_branch
      %207 = sbr.rel (0) target = $region113
    $region112: #{eeg_transformer_classifier.1} parent=1 // pred_region
      %208 = dma.done [#allocation13], 512
    $region113: #{eeg_transformer_classifier.1} parent=1 // pred_fallthru
      _
    // Predicated region
    $region114: #{eeg_transformer_classifier.1} parent=1 // pred_check
      _
    $region115: #{eeg_transformer_classifier.1} parent=1 // pred_check_branch
      %210 = sbr.rel (0) target = $region117
    $region116: #{eeg_transformer_classifier.1} parent=1 // pred_region
      %211 = dma.done [#allocation13], 32
    $region117: #{eeg_transformer_classifier.1} parent=1 // pred_fallthru
      _
    // Predicated region
    $region118: #{eeg_transformer_classifier.1} parent=1 // pred_check
      _
    $region119: #{eeg_transformer_classifier.1} parent=1 // pred_check_branch
      %213 = sbr.rel (0) target = $region121
    $region120: #{eeg_transformer_classifier.1} parent=1 // pred_region
      %214 = dma.done [#allocation16], 32
    $region121: #{eeg_transformer_classifier.1} parent=1 // pred_fallthru
      _
    // Predicated region
    $region122: #{eeg_transformer_classifier.1} parent=1 // pred_check
      _
    $region123: #{eeg_transformer_classifier.1} parent=1 // pred_check_branch
      %216 = sbr.rel (0) target = $region125
    $region124: #{eeg_transformer_classifier.1} parent=1 // pred_region
      %217 = dma.done [#allocation16], 512
    $region125: #{eeg_transformer_classifier.1} parent=1 // pred_fallthru
      _
    // Predicated region
    $region126: #{eeg_transformer_classifier.1} parent=1 // pred_check
      _
    $region127: #{eeg_transformer_classifier.1} parent=1 // pred_check_branch
      %219 = sbr.rel (0) target = $region129
    $region128: #{eeg_transformer_classifier.1} parent=1 // pred_region
      %220 = dma.done [#allocation19], 32
    $region129: #{eeg_transformer_classifier.1} parent=1 // pred_fallthru
      _
    // Predicated region
    $region130: #{eeg_transformer_classifier.1} parent=1 // pred_check
      _
    $region131: #{eeg_transformer_classifier.1} parent=1 // pred_check_branch
      %222 = sbr.rel (0) target = $region133
    $region132: #{eeg_transformer_classifier.1} parent=1 // pred_region
      %223 = dma.done [#allocation19], 32
    $region133: #{eeg_transformer_classifier.1} parent=1 // pred_fallthru
      _
    // Predicated region
    $region134: #{eeg_transformer_classifier.1} parent=1 // pred_check
      _
    $region135: #{eeg_transformer_classifier.1} parent=1 // pred_check_branch
      %225 = sbr.rel (0) target = $region137
    $region136: #{eeg_transformer_classifier.1} parent=1 // pred_region
      %226 = dma.done [#allocation22], 256
    $region137: #{eeg_transformer_classifier.1} parent=1 // pred_fallthru
      _
    // Predicated region
    $region138: #{eeg_transformer_classifier.1} parent=1 // pred_check
      _
    $region139: #{eeg_transformer_classifier.1} parent=1 // pred_check_branch
      %228 = sbr.rel (0) target = $region141
    $region140: #{eeg_transformer_classifier.1} parent=1 // pred_region
      %229 = dma.done [#allocation22], 16
    $region141: #{eeg_transformer_classifier.1} parent=1 // pred_fallthru
      _
    %v231 = vld [vmem:[#allocation6] sm:$0x1]
    %v232 = vld [vmem:[%s2] sm:$0x1]
    %v233 = vadd.f32 %v231, %v232
    %vm234 = vcmask 253952
    %235 = vst.msk [vmem:[#allocation2] sm:$0x1] %vm234, %v233
    %236 = vst.msk [vmem:[#allocation2 + $0x10] sm:$0x1] %vm234, %v233
    %v237 = vld [vmem:[#allocation3] sm:$0xff]
    %v238 = vld [vmem:[#allocation3 + $0x8] sm:$0xff]
    %v239 = vld [vmem:[%s2 + $0x1] sm:$0xff]
    %v240 = vadd.f32 %v237, %v239
    %v241 = vadd.f32 %v238, %v239
    %vm242 = vcmask 261120
    %243 = vst.msk [vmem:[#allocation2 + $0x1] sm:$0xff] %vm242, %v240
    %244 = vst.msk [vmem:[#allocation2 + $0x11] sm:$0xff] %vm242, %v241
    %vm245 = vcmask 260096
    %246 = vst.msk [vmem:[#allocation2 + $0x9] sm:$0x7f] %vm245, 0.0
    %247 = vst.msk [vmem:[#allocation2 + $0x19] sm:$0x7f] %vm245, 0.0
    %v248 = vld [vmem:[%s3] sm:$0x1]
    %v249 = vld [vmem:[#allocation2] sm:$0xff]
    %v250 = vld [vmem:[#allocation2 + $0x8] sm:$0xff]
    %v251 = vld [vmem:[#allocation2 + $0x10] sm:$0xff]
    %v252 = vld [vmem:[#allocation2 + $0x18] sm:$0xff]
    %v253 = vld [vmem:[%s4] sm:$0xf]
    %v254 = vld [vmem:[%s4 + $0x4] sm:$0xf]
    %v255 = vld [vmem:[%s4 + $0x8] sm:$0xf]
    %v256 = vld [vmem:[%s4 + $0xc] sm:$0xf]
    %v257 = vld [vmem:[%s6] sm:$0xf]
    %v258 = vld [vmem:[%s6 + $0x4] sm:$0xf]
    %v259 = vld [vmem:[%s6 + $0x8] sm:$0xf]
    %v260 = vld [vmem:[%s6 + $0xc] sm:$0xf]
    %v261 = vld [vmem:[%s8] sm:$0xf]
    %v262 = vld [vmem:[%s8 + $0x4] sm:$0xf]
    %v263 = vld [vmem:[%s8 + $0x8] sm:$0xf]
    %v264 = vld [vmem:[%s8 + $0xc] sm:$0xf]
    %v265 = vld [vmem:[#allocation8] sm:$0x1]
    %v266 = vld [vmem:[#allocation9] sm:$0x1]
    %v267 = vld [vmem:[#allocation11] sm:$0x1]
    %v268 = vld [vmem:[#allocation12] sm:$0xf]
    %v269 = vld [vmem:[#allocation12 + $0x4] sm:$0xf]
    %v270 = vld [vmem:[#allocation12 + $0x8] sm:$0xf]
    %v271 = vld [vmem:[#allocation12 + $0xc] sm:$0xf]
    %v272 = vld [vmem:[%s11] sm:$0x1]
    %v273 = vld [vmem:[%s12] sm:$0x1]
    %v274 = vld [vmem:[#allocation14] sm:$0x1]
    %v275 = vld [vmem:[%s14] sm:$0x1]
    %v276 = vld [vmem:[#allocation15] sm:$0x1]
    %v277 = vld [vmem:[#allocation17] sm:$0xf]
    %v278 = vld [vmem:[#allocation17 + $0x4] sm:$0xf]
    %v279 = vld [vmem:[#allocation17 + $0x8] sm:$0xf]
    %v280 = vld [vmem:[#allocation17 + $0xc] sm:$0xf]
    %v281 = vld [vmem:[#allocation18] sm:$0x1]
    %v282 = vld [vmem:[%s18] sm:$0xf]
    %v283 = vld [vmem:[%s18 + $0x4] sm:$0xf]
    %v284 = vld [vmem:[%s18 + $0x8] sm:$0xf]
    %v285 = vld [vmem:[%s18 + $0xc] sm:$0xf]
    %v286 = vld [vmem:[%s18 + $0x10] sm:$0xf]
    %v287 = vld [vmem:[%s18 + $0x14] sm:$0xf]
    %v288 = vld [vmem:[%s18 + $0x18] sm:$0xf]
    %v289 = vld [vmem:[%s18 + $0x1c] sm:$0xf]
    %v290 = vld [vmem:[#allocation20] sm:$0x1]
    %v291 = vpack.c.bf16 %v250, %v249
    %v292 = vpack.c.bf16 %v252, %v251
    %v293 = vlaneseq
    %v294 = vshrl.u32 %v293, 7
    %v295 = vsub.s32 0, %v294
    %v296 = vrot.slane %v265, %v295
    %v301 = vunpack.c.l.b16 %v253
    %v302 = vunpack.c.l.b16 %v254
    %v303 = vunpack.c.l.b16 %v255
    %v304 = vunpack.c.l.b16 %v256
    %v305 = vpack.c.b16 %v302, %v301
    %v306 = vpack.c.b16 %v304, %v303
    %v310 = vsel %vm242, %v291, 0
    %v313 = vsel %vm242, %v292, 0
    %315 = vmatprep.subr.bf16.mxu0 0
    %316 = vmatpush1.bf16.msra.mxu0 0
    %317 = vmatprep.subr.bf16.mxu0 0
    %318 = vmatpush1.bf16.msra.mxu0 0
    %319 = vmatprep.subr.bf16.mxu0 0
    %320 = vmatpush1.bf16.msra.mxu0 0
    %321 = vmatprep.subr.bf16.mxu0 0
    %322 = vmatpush1.bf16.msra.mxu0 0
    %323 = vmatprep.subr.bf16.mxu0 0
    %324 = vmatpush1.bf16.msra.mxu0 0
    %325 = vmatprep.subr.bf16.mxu0 0
    %326 = vmatpush1.bf16.msra.mxu0 0
    %327 = vmatprep.subr.bf16.mxu0 0
    %328 = vmatpush1.bf16.msra.mxu0 %v306
    %329 = vmatprep.subr.bf16.mxu0 0
    %330 = vmatpush1.bf16.msra.mxu0 %v305
    %331 = vmatprep.subr.bf16.mxu0 0
    %332 = vmatpush2.bf16.msra.mxu0 0
    %333 = vmatprep.subr.bf16.mxu0 0
    %334 = vmatpush2.bf16.msra.mxu0 0
    %335 = vmatprep.subr.bf16.mxu0 0
    %336 = vmatpush2.bf16.msra.mxu0 0
    %337 = vmatprep.subr.bf16.mxu0 0
    %338 = vmatpush2.bf16.msra.mxu0 0
    %339 = vmatprep.subr.bf16.mxu0 0
    %340 = vmatpush2.bf16.msra.mxu0 0
    %341 = vmatprep.subr.bf16.mxu0 0
    %342 = vmatpush2.bf16.msra.mxu0 0
    %343 = vmatprep.subr.bf16.mxu0 0
    %344 = vmatpush2.bf16.msra.mxu0 0
    %345 = vmatprep.subr.bf16.mxu0 0
    %346 = vmatpush2.bf16.msra.mxu0 0
    %347 = vmatprep.mubr.bf16.mxu0 0
    %348 = vmatmul.mubr.bf16.gmra.mxu0 %v310
    %v349 = vpop.f32.mrf.mxu0
    %v350 = vadd.f32 %v296, %v349
    %v351 = vpop.f32.mrf.mxu0
    %v352 = vpop.f32.mrf.mxu0
    %v353 = vadd.f32 %v296, %v352
    %v354 = vpop.f32.mrf.mxu0
    %355 = vmatprep.mubr.bf16.mxu0 0
    %356 = vmatmul.mubr.bf16.gmra.mxu0 %v313
    %v357 = vpop.f32.mrf.mxu0
    %v358 = vadd.f32 %v296, %v357
    %v359 = vpop.f32.mrf.mxu0
    %v360 = vpop.f32.mrf.mxu0
    %v361 = vadd.f32 %v296, %v360
    %v362 = vpop.f32.mrf.mxu0
    %363 = vdwg.mxu0
    %v364 = vlaneseq
    %v365 = vshrl.u32 %v364, 7
    %v366 = vsub.s32 0, %v365
    %v367 = vrot.slane %v266, %v366
    %v372 = vunpack.c.l.b16 %v257
    %v373 = vunpack.c.l.b16 %v258
    %v374 = vunpack.c.l.b16 %v259
    %v375 = vunpack.c.l.b16 %v260
    %v376 = vpack.c.b16 %v373, %v372
    %v377 = vpack.c.b16 %v375, %v374
    %380 = vmatprep.subr.bf16.mxu0 0
    %381 = vmatpush1.bf16.msra.mxu0 0
    %382 = vmatprep.subr.bf16.mxu0 0
    %383 = vmatpush1.bf16.msra.mxu0 0
    %384 = vmatprep.subr.bf16.mxu0 0
    %385 = vmatpush1.bf16.msra.mxu0 0
    %386 = vmatprep.subr.bf16.mxu0 0
    %387 = vmatpush1.bf16.msra.mxu0 0
    %388 = vmatprep.subr.bf16.mxu0 0
    %389 = vmatpush1.bf16.msra.mxu0 0
    %390 = vmatprep.subr.bf16.mxu0 0
    %391 = vmatpush1.bf16.msra.mxu0 0
    %392 = vmatprep.subr.bf16.mxu0 0
    %393 = vmatpush1.bf16.msra.mxu0 %v377
    %394 = vmatprep.subr.bf16.mxu0 0
    %395 = vmatpush1.bf16.msra.mxu0 %v376
    %396 = vmatprep.subr.bf16.mxu0 0
    %397 = vmatpush2.bf16.msra.mxu0 0
    %398 = vmatprep.subr.bf16.mxu0 0
    %399 = vmatpush2.bf16.msra.mxu0 0
    %400 = vmatprep.subr.bf16.mxu0 0
    %401 = vmatpush2.bf16.msra.mxu0 0
    %402 = vmatprep.subr.bf16.mxu0 0
    %403 = vmatpush2.bf16.msra.mxu0 0
    %404 = vmatprep.subr.bf16.mxu0 0
    %405 = vmatpush2.bf16.msra.mxu0 0
    %406 = vmatprep.subr.bf16.mxu0 0
    %407 = vmatpush2.bf16.msra.mxu0 0
    %408 = vmatprep.subr.bf16.mxu0 0
    %409 = vmatpush2.bf16.msra.mxu0 0
    %410 = vmatprep.subr.bf16.mxu0 0
    %411 = vmatpush2.bf16.msra.mxu0 0
    %412 = vmatprep.mubr.bf16.mxu0 0
    %413 = vmatmul.mubr.bf16.gmra.mxu0 %v310
    %v414 = vpop.f32.mrf.mxu0
    %v415 = vadd.f32 %v367, %v414
    %v416 = vpop.f32.mrf.mxu0
    %v417 = vpop.f32.mrf.mxu0
    %v418 = vadd.f32 %v367, %v417
    %v419 = vpop.f32.mrf.mxu0
    %420 = vmatprep.mubr.bf16.mxu0 0
    %421 = vmatmul.mubr.bf16.gmra.mxu0 %v313
    %v422 = vpop.f32.mrf.mxu0
    %v423 = vadd.f32 %v367, %v422
    %v424 = vpop.f32.mrf.mxu0
    %v425 = vpop.f32.mrf.mxu0
    %v426 = vadd.f32 %v367, %v425
    %v427 = vpop.f32.mrf.mxu0
    %428 = vdwg.mxu0
    %v429 = vlaneseq
    %v430 = vshrl.u32 %v429, 7
    %v431 = vsub.s32 0, %v430
    %v432 = vrot.slane %v267, %v431
    %v437 = vunpack.c.l.b16 %v261
    %v438 = vunpack.c.l.b16 %v262
    %v439 = vunpack.c.l.b16 %v263
    %v440 = vunpack.c.l.b16 %v264
    %v441 = vpack.c.b16 %v438, %v437
    %v442 = vpack.c.b16 %v440, %v439
    %445 = vmatprep.subr.bf16.mxu0 0
    %446 = vmatpush1.bf16.msra.mxu0 0
    %447 = vmatprep.subr.bf16.mxu0 0
    %448 = vmatpush1.bf16.msra.mxu0 0
    %449 = vmatprep.subr.bf16.mxu0 0
    %450 = vmatpush1.bf16.msra.mxu0 0
    %451 = vmatprep.subr.bf16.mxu0 0
    %452 = vmatpush1.bf16.msra.mxu0 0
    %453 = vmatprep.subr.bf16.mxu0 0
    %454 = vmatpush1.bf16.msra.mxu0 0
    %455 = vmatprep.subr.bf16.mxu0 0
    %456 = vmatpush1.bf16.msra.mxu0 0
    %457 = vmatprep.subr.bf16.mxu0 0
    %458 = vmatpush1.bf16.msra.mxu0 %v442
    %459 = vmatprep.subr.bf16.mxu0 0
    %460 = vmatpush1.bf16.msra.mxu0 %v441
    %461 = vmatprep.subr.bf16.mxu0 0
    %462 = vmatpush2.bf16.msra.mxu0 0
    %463 = vmatprep.subr.bf16.mxu0 0
    %464 = vmatpush2.bf16.msra.mxu0 0
    %465 = vmatprep.subr.bf16.mxu0 0
    %466 = vmatpush2.bf16.msra.mxu0 0
    %467 = vmatprep.subr.bf16.mxu0 0
    %468 = vmatpush2.bf16.msra.mxu0 0
    %469 = vmatprep.subr.bf16.mxu0 0
    %470 = vmatpush2.bf16.msra.mxu0 0
    %471 = vmatprep.subr.bf16.mxu0 0
    %472 = vmatpush2.bf16.msra.mxu0 0
    %473 = vmatprep.subr.bf16.mxu0 0
    %474 = vmatpush2.bf16.msra.mxu0 0
    %475 = vmatprep.subr.bf16.mxu0 0
    %476 = vmatpush2.bf16.msra.mxu0 0
    %477 = vmatprep.mubr.bf16.mxu0 0
    %478 = vmatmul.mubr.bf16.gmra.mxu0 %v310
    %v479 = vpop.f32.mrf.mxu0
    %v480 = vadd.f32 %v432, %v479
    %v481 = vpop.f32.mrf.mxu0
    %v482 = vpop.f32.mrf.mxu0
    %v483 = vadd.f32 %v432, %v482
    %v484 = vpop.f32.mrf.mxu0
    %485 = vmatprep.mubr.bf16.mxu0 0
    %486 = vmatmul.mubr.bf16.gmra.mxu0 %v313
    %v487 = vpop.f32.mrf.mxu0
    %v488 = vadd.f32 %v432, %v487
    %v489 = vpop.f32.mrf.mxu0
    %v490 = vpop.f32.mrf.mxu0
    %v491 = vadd.f32 %v432, %v490
    %v492 = vpop.f32.mrf.mxu0
    %493 = vdwg.mxu0
    %v494 = vpack.c.bf16 %v353, %v350
    %v495 = vpack.c.bf16 %v361, %v358
    %v496 = vpack.c.bf16 %v418, %v415
    %v497 = vpack.c.bf16 %v426, %v423
    %v498 = vpack.c.bf16 %v483, %v480
    %v499 = vpack.c.bf16 %v491, %v488
    %vm500 = vcmask 64512
    %v502 = vsel %vm500, %v494, 0
    %v505 = vsel %vm500, %v496, 0
    %507 = vmatprep.subr.bf16.mxu0 0
    %508 = vmatpush1.bf16.xpose.msra.mxu0 0
    %509 = vmatprep.subr.bf16.mxu0 0
    %510 = vmatpush1.bf16.xpose.msra.mxu0 0
    %511 = vmatprep.subr.bf16.mxu0 0
    %512 = vmatpush1.bf16.xpose.msra.mxu0 0
    %513 = vmatprep.subr.bf16.mxu0 0
    %514 = vmatpush1.bf16.xpose.msra.mxu0 0
    %515 = vmatprep.subr.bf16.mxu0 0
    %516 = vmatpush1.bf16.xpose.msra.mxu0 0
    %517 = vmatprep.subr.bf16.mxu0 0
    %518 = vmatpush1.bf16.xpose.msra.mxu0 0
    %519 = vmatprep.subr.bf16.mxu0 0
    %520 = vmatpush1.bf16.xpose.msra.mxu0 0
    %521 = vmatprep.subr.bf16.mxu0 0
    %522 = vmatpush1.bf16.xpose.msra.mxu0 %v505
    %523 = vmatprep.subr.bf16.mxu0 0
    %524 = vmatpush2.bf16.xpose.msra.mxu0 0
    %525 = vmatprep.subr.bf16.mxu0 0
    %526 = vmatpush2.bf16.xpose.msra.mxu0 0
    %527 = vmatprep.subr.bf16.mxu0 0
    %528 = vmatpush2.bf16.xpose.msra.mxu0 0
    %529 = vmatprep.subr.bf16.mxu0 0
    %530 = vmatpush2.bf16.xpose.msra.mxu0 0
    %531 = vmatprep.subr.bf16.mxu0 0
    %532 = vmatpush2.bf16.xpose.msra.mxu0 0
    %533 = vmatprep.subr.bf16.mxu0 0
    %534 = vmatpush2.bf16.xpose.msra.mxu0 0
    %535 = vmatprep.subr.bf16.mxu0 0
    %536 = vmatpush2.bf16.xpose.msra.mxu0 0
    %537 = vmatprep.subr.bf16.mxu0 0
    %538 = vmatpush2.bf16.xpose.msra.mxu0 0
    %539 = vmatprep.mubr.bf16.mxu0 0
    %540 = vmatmul.mubr.bf16.gmra.mxu0 %v502
    %v541 = vpop.f32.mrf.mxu0
    %v542 = vadd.f32 0.0, %v541
    %v543 = vpop.f32.mrf.mxu0
    %v544 = vpop.f32.mrf.mxu0
    %v545 = vadd.f32 0.0, %v544
    %v546 = vpop.f32.mrf.mxu0
    %547 = vdwg.mxu0
    %v549 = vsel %vm500, %v495, 0
    %v552 = vsel %vm500, %v497, 0
    %554 = vmatprep.subr.bf16.mxu0 0
    %555 = vmatpush1.bf16.xpose.msra.mxu0 0
    %556 = vmatprep.subr.bf16.mxu0 0
    %557 = vmatpush1.bf16.xpose.msra.mxu0 0
    %558 = vmatprep.subr.bf16.mxu0 0
    %559 = vmatpush1.bf16.xpose.msra.mxu0 0
    %560 = vmatprep.subr.bf16.mxu0 0
    %561 = vmatpush1.bf16.xpose.msra.mxu0 0
    %562 = vmatprep.subr.bf16.mxu0 0
    %563 = vmatpush1.bf16.xpose.msra.mxu0 0
    %564 = vmatprep.subr.bf16.mxu0 0
    %565 = vmatpush1.bf16.xpose.msra.mxu0 0
    %566 = vmatprep.subr.bf16.mxu0 0
    %567 = vmatpush1.bf16.xpose.msra.mxu0 0
    %568 = vmatprep.subr.bf16.mxu0 0
    %569 = vmatpush1.bf16.xpose.msra.mxu0 %v552
    %570 = vmatprep.subr.bf16.mxu0 0
    %571 = vmatpush2.bf16.xpose.msra.mxu0 0
    %572 = vmatprep.subr.bf16.mxu0 0
    %573 = vmatpush2.bf16.xpose.msra.mxu0 0
    %574 = vmatprep.subr.bf16.mxu0 0
    %575 = vmatpush2.bf16.xpose.msra.mxu0 0
    %576 = vmatprep.subr.bf16.mxu0 0
    %577 = vmatpush2.bf16.xpose.msra.mxu0 0
    %578 = vmatprep.subr.bf16.mxu0 0
    %579 = vmatpush2.bf16.xpose.msra.mxu0 0
    %580 = vmatprep.subr.bf16.mxu0 0
    %581 = vmatpush2.bf16.xpose.msra.mxu0 0
    %582 = vmatprep.subr.bf16.mxu0 0
    %583 = vmatpush2.bf16.xpose.msra.mxu0 0
    %584 = vmatprep.subr.bf16.mxu0 0
    %585 = vmatpush2.bf16.xpose.msra.mxu0 0
    %586 = vmatprep.mubr.bf16.mxu0 0
    %587 = vmatmul.mubr.bf16.gmra.mxu0 %v549
    %v588 = vpop.f32.mrf.mxu0
    %v589 = vadd.f32 0.0, %v588
    %v590 = vpop.f32.mrf.mxu0
    %v591 = vpop.f32.mrf.mxu0
    %v592 = vadd.f32 0.0, %v591
    %v593 = vpop.f32.mrf.mxu0
    %594 = vdwg.mxu0
    %v595 = vmul.f32 %v542, 0.35355338
    %v596 = vmul.f32 %v545, 0.35355338
    %v597 = vmul.f32 %v589, 0.35355338
    %v598 = vmul.f32 %v592, 0.35355338
    %v600 = vlaneseq
    %v601 = vshrl.u32 %v600, 7
    %v602 = vsub.s32 0, %v601
    %v603 = vrot.slane %v248, %v602
    %v605 = vadd.f32 %v595, %v603
    %v606 = vadd.f32 %v596, %v603
    %v607 = vadd.f32 %v597, %v603
    %v608 = vadd.f32 %v598, %v603
    %vm609 = vcmask 130048
    %v610 = vsel %vm609, %v605, -inf
    %611 = vmax.xlane.f32.xlu0 %v610
    %v612 = vpop.xlane.xlu0 %611
    %v613 = vsel %vm609, %v606, -inf
    %614 = vmax.xlane.f32.xlu0 %v613
    %v615 = vpop.xlane.xlu0 %614
    %v616 = vsel %vm609, %v607, -inf
    %617 = vmax.xlane.f32.xlu0 %v616
    %v618 = vpop.xlane.xlu0 %617
    %v619 = vsel %vm609, %v608, -inf
    %620 = vmax.xlane.f32.xlu0 %v619
    %v621 = vpop.xlane.xlu0 %620
    %v622 = vsub.f32 %v605, %v612
    %v623 = vsub.f32 %v606, %v615
    %v624 = vsub.f32 %v607, %v618
    %v625 = vsub.f32 %v608, %v621
    %v626 = vmul.f32 %v622, 1.442695
    %v627 = vpow.pop %v626
    %v628 = vmul.f32 %v623, 1.442695
    %v629 = vpow.pop %v628
    %v630 = vmul.f32 %v624, 1.442695
    %v631 = vpow.pop %v630
    %v632 = vmul.f32 %v625, 1.442695
    %v633 = vpow.pop %v632
    %v634 = vsel %vm609, %v627, 0.0
    %635 = vadd.xlane.f32.xlu0 %v634
    %v636 = vpop.xlane.xlu0 %635
    %v637 = vsel %vm609, %v629, 0.0
    %638 = vadd.xlane.f32.xlu0 %v637
    %v639 = vpop.xlane.xlu0 %638
    %v640 = vsel %vm609, %v631, 0.0
    %641 = vadd.xlane.f32.xlu0 %v640
    %v642 = vpop.xlane.xlu0 %641
    %v643 = vsel %vm609, %v633, 0.0
    %644 = vadd.xlane.f32.xlu0 %v643
    %v645 = vpop.xlane.xlu0 %644
    %v646 = vrcp.pop %v636
    %v647 = vrcp.pop %v639
    %v648 = vrcp.pop %v642
    %v649 = vrcp.pop %v645
    %v650 = vmul.f32 %v627, %v646
    %v651 = vmul.f32 %v629, %v647
    %v652 = vmul.f32 %v631, %v648
    %v653 = vmul.f32 %v633, %v649
    %v654 = vpack.c.bf16 %v651, %v650
    %v655 = vpack.c.bf16 %v653, %v652
    %v657 = vsel %vm609, %v654, 0
    %659 = vmatprep.subr.bf16.mxu0 0
    %660 = vmatpush1.bf16.msra.mxu0 0
    %661 = vmatprep.subr.bf16.mxu0 0
    %662 = vmatpush1.bf16.msra.mxu0 0
    %663 = vmatprep.subr.bf16.mxu0 0
    %664 = vmatpush1.bf16.msra.mxu0 0
    %665 = vmatprep.subr.bf16.mxu0 0
    %666 = vmatpush1.bf16.msra.mxu0 0
    %667 = vmatprep.subr.bf16.mxu0 0
    %668 = vmatpush1.bf16.msra.mxu0 0
    %669 = vmatprep.subr.bf16.mxu0 0
    %670 = vmatpush1.bf16.msra.mxu0 0
    %671 = vmatprep.subr.bf16.mxu0 0
    %672 = vmatpush1.bf16.msra.mxu0 0
    %673 = vmatprep.subr.bf16.mxu0 0
    %674 = vmatpush1.bf16.msra.mxu0 %v498
    %675 = vmatprep.subr.bf16.mxu0 0
    %676 = vmatpush2.bf16.msra.mxu0 0
    %677 = vmatprep.subr.bf16.mxu0 0
    %678 = vmatpush2.bf16.msra.mxu0 0
    %679 = vmatprep.subr.bf16.mxu0 0
    %680 = vmatpush2.bf16.msra.mxu0 0
    %681 = vmatprep.subr.bf16.mxu0 0
    %682 = vmatpush2.bf16.msra.mxu0 0
    %683 = vmatprep.subr.bf16.mxu0 0
    %684 = vmatpush2.bf16.msra.mxu0 0
    %685 = vmatprep.subr.bf16.mxu0 0
    %686 = vmatpush2.bf16.msra.mxu0 0
    %687 = vmatprep.subr.bf16.mxu0 0
    %688 = vmatpush2.bf16.msra.mxu0 0
    %689 = vmatprep.subr.bf16.mxu0 0
    %690 = vmatpush2.bf16.msra.mxu0 0
    %691 = vmatprep.mubr.bf16.mxu0 0
    %692 = vmatmul.mubr.bf16.gmra.mxu0 %v657
    %v693 = vpop.f32.mrf.mxu0
    %v694 = vadd.f32 0.0, %v693
    %v695 = vpop.f32.mrf.mxu0
    %v696 = vpop.f32.mrf.mxu0
    %v697 = vadd.f32 0.0, %v696
    %v698 = vpop.f32.mrf.mxu0
    %699 = vdwg.mxu0
    %v701 = vsel %vm609, %v655, 0
    %703 = vmatprep.subr.bf16.mxu0 0
    %704 = vmatpush1.bf16.msra.mxu0 0
    %705 = vmatprep.subr.bf16.mxu0 0
    %706 = vmatpush1.bf16.msra.mxu0 0
    %707 = vmatprep.subr.bf16.mxu0 0
    %708 = vmatpush1.bf16.msra.mxu0 0
    %709 = vmatprep.subr.bf16.mxu0 0
    %710 = vmatpush1.bf16.msra.mxu0 0
    %711 = vmatprep.subr.bf16.mxu0 0
    %712 = vmatpush1.bf16.msra.mxu0 0
    %713 = vmatprep.subr.bf16.mxu0 0
    %714 = vmatpush1.bf16.msra.mxu0 0
    %715 = vmatprep.subr.bf16.mxu0 0
    %716 = vmatpush1.bf16.msra.mxu0 0
    %717 = vmatprep.subr.bf16.mxu0 0
    %718 = vmatpush1.bf16.msra.mxu0 %v499
    %719 = vmatprep.subr.bf16.mxu0 0
    %720 = vmatpush2.bf16.msra.mxu0 0
    %721 = vmatprep.subr.bf16.mxu0 0
    %722 = vmatpush2.bf16.msra.mxu0 0
    %723 = vmatprep.subr.bf16.mxu0 0
    %724 = vmatpush2.bf16.msra.mxu0 0
    %725 = vmatprep.subr.bf16.mxu0 0
    %726 = vmatpush2.bf16.msra.mxu0 0
    %727 = vmatprep.subr.bf16.mxu0 0
    %728 = vmatpush2.bf16.msra.mxu0 0
    %729 = vmatprep.subr.bf16.mxu0 0
    %730 = vmatpush2.bf16.msra.mxu0 0
    %731 = vmatprep.subr.bf16.mxu0 0
    %732 = vmatpush2.bf16.msra.mxu0 0
    %733 = vmatprep.subr.bf16.mxu0 0
    %734 = vmatpush2.bf16.msra.mxu0 0
    %735 = vmatprep.mubr.bf16.mxu0 0
    %736 = vmatmul.mubr.bf16.gmra.mxu0 %v701
    %v737 = vpop.f32.mrf.mxu0
    %v738 = vadd.f32 0.0, %v737
    %v739 = vpop.f32.mrf.mxu0
    %v740 = vpop.f32.mrf.mxu0
    %v741 = vadd.f32 0.0, %v740
    %v742 = vpop.f32.mrf.mxu0
    %743 = vdwg.mxu0
    %745 = vrot.lane.b32.xlu0 %v494, 120
    %v746 = vpop.permute.xlu0 %745
    %748 = vrot.lane.b32.xlu0 %v496, 120
    %v749 = vpop.permute.xlu0 %748
    %v751 = vsel %vm500, %v746, 0
    %v754 = vsel %vm500, %v749, 0
    %756 = vmatprep.subr.bf16.mxu0 0
    %757 = vmatpush1.bf16.xpose.msra.mxu0 0
    %758 = vmatprep.subr.bf16.mxu0 0
    %759 = vmatpush1.bf16.xpose.msra.mxu0 0
    %760 = vmatprep.subr.bf16.mxu0 0
    %761 = vmatpush1.bf16.xpose.msra.mxu0 0
    %762 = vmatprep.subr.bf16.mxu0 0
    %763 = vmatpush1.bf16.xpose.msra.mxu0 0
    %764 = vmatprep.subr.bf16.mxu0 0
    %765 = vmatpush1.bf16.xpose.msra.mxu0 0
    %766 = vmatprep.subr.bf16.mxu0 0
    %767 = vmatpush1.bf16.xpose.msra.mxu0 0
    %768 = vmatprep.subr.bf16.mxu0 0
    %769 = vmatpush1.bf16.xpose.msra.mxu0 0
    %770 = vmatprep.subr.bf16.mxu0 0
    %771 = vmatpush1.bf16.xpose.msra.mxu0 %v754
    %772 = vmatprep.subr.bf16.mxu0 0
    %773 = vmatpush2.bf16.xpose.msra.mxu0 0
    %774 = vmatprep.subr.bf16.mxu0 0
    %775 = vmatpush2.bf16.xpose.msra.mxu0 0
    %776 = vmatprep.subr.bf16.mxu0 0
    %777 = vmatpush2.bf16.xpose.msra.mxu0 0
    %778 = vmatprep.subr.bf16.mxu0 0
    %779 = vmatpush2.bf16.xpose.msra.mxu0 0
    %780 = vmatprep.subr.bf16.mxu0 0
    %781 = vmatpush2.bf16.xpose.msra.mxu0 0
    %782 = vmatprep.subr.bf16.mxu0 0
    %783 = vmatpush2.bf16.xpose.msra.mxu0 0
    %784 = vmatprep.subr.bf16.mxu0 0
    %785 = vmatpush2.bf16.xpose.msra.mxu0 0
    %786 = vmatprep.subr.bf16.mxu0 0
    %787 = vmatpush2.bf16.xpose.msra.mxu0 0
    %788 = vmatprep.mubr.bf16.mxu0 0
    %789 = vmatmul.mubr.bf16.gmra.mxu0 %v751
    %v790 = vpop.f32.mrf.mxu0
    %v791 = vadd.f32 0.0, %v790
    %v792 = vpop.f32.mrf.mxu0
    %v793 = vpop.f32.mrf.mxu0
    %v794 = vadd.f32 0.0, %v793
    %v795 = vpop.f32.mrf.mxu0
    %796 = vdwg.mxu0
    %798 = vrot.lane.b32.xlu0 %v495, 120
    %v799 = vpop.permute.xlu0 %798
    %801 = vrot.lane.b32.xlu0 %v497, 120
    %v802 = vpop.permute.xlu0 %801
    %v804 = vsel %vm500, %v799, 0
    %v807 = vsel %vm500, %v802, 0
    %809 = vmatprep.subr.bf16.mxu0 0
    %810 = vmatpush1.bf16.xpose.msra.mxu0 0
    %811 = vmatprep.subr.bf16.mxu0 0
    %812 = vmatpush1.bf16.xpose.msra.mxu0 0
    %813 = vmatprep.subr.bf16.mxu0 0
    %814 = vmatpush1.bf16.xpose.msra.mxu0 0
    %815 = vmatprep.subr.bf16.mxu0 0
    %816 = vmatpush1.bf16.xpose.msra.mxu0 0
    %817 = vmatprep.subr.bf16.mxu0 0
    %818 = vmatpush1.bf16.xpose.msra.mxu0 0
    %819 = vmatprep.subr.bf16.mxu0 0
    %820 = vmatpush1.bf16.xpose.msra.mxu0 0
    %821 = vmatprep.subr.bf16.mxu0 0
    %822 = vmatpush1.bf16.xpose.msra.mxu0 0
    %823 = vmatprep.subr.bf16.mxu0 0
    %824 = vmatpush1.bf16.xpose.msra.mxu0 %v807
    %825 = vmatprep.subr.bf16.mxu0 0
    %826 = vmatpush2.bf16.xpose.msra.mxu0 0
    %827 = vmatprep.subr.bf16.mxu0 0
    %828 = vmatpush2.bf16.xpose.msra.mxu0 0
    %829 = vmatprep.subr.bf16.mxu0 0
    %830 = vmatpush2.bf16.xpose.msra.mxu0 0
    %831 = vmatprep.subr.bf16.mxu0 0
    %832 = vmatpush2.bf16.xpose.msra.mxu0 0
    %833 = vmatprep.subr.bf16.mxu0 0
    %834 = vmatpush2.bf16.xpose.msra.mxu0 0
    %835 = vmatprep.subr.bf16.mxu0 0
    %836 = vmatpush2.bf16.xpose.msra.mxu0 0
    %837 = vmatprep.subr.bf16.mxu0 0
    %838 = vmatpush2.bf16.xpose.msra.mxu0 0
    %839 = vmatprep.subr.bf16.mxu0 0
    %840 = vmatpush2.bf16.xpose.msra.mxu0 0
    %841 = vmatprep.mubr.bf16.mxu0 0
    %842 = vmatmul.mubr.bf16.gmra.mxu0 %v804
    %v843 = vpop.f32.mrf.mxu0
    %v844 = vadd.f32 0.0, %v843
    %v845 = vpop.f32.mrf.mxu0
    %v846 = vpop.f32.mrf.mxu0
    %v847 = vadd.f32 0.0, %v846
    %v848 = vpop.f32.mrf.mxu0
    %849 = vdwg.mxu0
    %v850 = vmul.f32 %v791, 0.35355338
    %v851 = vmul.f32 %v794, 0.35355338
    %v852 = vmul.f32 %v844, 0.35355338
    %v853 = vmul.f32 %v847, 0.35355338
    %v854 = vadd.f32 %v850, %v603
    %v855 = vadd.f32 %v851, %v603
    %v856 = vadd.f32 %v852, %v603
    %v857 = vadd.f32 %v853, %v603
    %v858 = vsel %vm609, %v854, -inf
    %859 = vmax.xlane.f32.xlu0 %v858
    %v860 = vpop.xlane.xlu0 %859
    %v861 = vsel %vm609, %v855, -inf
    %862 = vmax.xlane.f32.xlu0 %v861
    %v863 = vpop.xlane.xlu0 %862
    %v864 = vsel %vm609, %v856, -inf
    %865 = vmax.xlane.f32.xlu0 %v864
    %v866 = vpop.xlane.xlu0 %865
    %v867 = vsel %vm609, %v857, -inf
    %868 = vmax.xlane.f32.xlu0 %v867
    %v869 = vpop.xlane.xlu0 %868
    %v870 = vsub.f32 %v854, %v860
    %v871 = vsub.f32 %v855, %v863
    %v872 = vsub.f32 %v856, %v866
    %v873 = vsub.f32 %v857, %v869
    %v874 = vmul.f32 %v870, 1.442695
    %v875 = vpow.pop %v874
    %v876 = vmul.f32 %v871, 1.442695
    %v877 = vpow.pop %v876
    %v878 = vmul.f32 %v872, 1.442695
    %v879 = vpow.pop %v878
    %v880 = vmul.f32 %v873, 1.442695
    %v881 = vpow.pop %v880
    %v882 = vsel %vm609, %v875, 0.0
    %883 = vadd.xlane.f32.xlu0 %v882
    %v884 = vpop.xlane.xlu0 %883
    %v885 = vsel %vm609, %v877, 0.0
    %886 = vadd.xlane.f32.xlu0 %v885
    %v887 = vpop.xlane.xlu0 %886
    %v888 = vsel %vm609, %v879, 0.0
    %889 = vadd.xlane.f32.xlu0 %v888
    %v890 = vpop.xlane.xlu0 %889
    %v891 = vsel %vm609, %v881, 0.0
    %892 = vadd.xlane.f32.xlu0 %v891
    %v893 = vpop.xlane.xlu0 %892
    %v894 = vrcp.pop %v884
    %v895 = vrcp.pop %v887
    %v896 = vrcp.pop %v890
    %v897 = vrcp.pop %v893
    %v898 = vmul.f32 %v875, %v894
    %v899 = vmul.f32 %v877, %v895
    %v900 = vmul.f32 %v879, %v896
    %v901 = vmul.f32 %v881, %v897
    %v902 = vpack.c.bf16 %v899, %v898
    %v903 = vpack.c.bf16 %v901, %v900
    %905 = vrot.lane.b32.xlu0 %v498, 120
    %v906 = vpop.permute.xlu0 %905
    %v909 = vsel %vm609, %v902, 0
    %911 = vmatprep.subr.bf16.mxu0 0
    %912 = vmatpush1.bf16.msra.mxu0 0
    %913 = vmatprep.subr.bf16.mxu0 0
    %914 = vmatpush1.bf16.msra.mxu0 0
    %915 = vmatprep.subr.bf16.mxu0 0
    %916 = vmatpush1.bf16.msra.mxu0 0
    %917 = vmatprep.subr.bf16.mxu0 0
    %918 = vmatpush1.bf16.msra.mxu0 0
    %919 = vmatprep.subr.bf16.mxu0 0
    %920 = vmatpush1.bf16.msra.mxu0 0
    %921 = vmatprep.subr.bf16.mxu0 0
    %922 = vmatpush1.bf16.msra.mxu0 0
    %923 = vmatprep.subr.bf16.mxu0 0
    %924 = vmatpush1.bf16.msra.mxu0 0
    %925 = vmatprep.subr.bf16.mxu0 0
    %926 = vmatpush1.bf16.msra.mxu0 %v906
    %927 = vmatprep.subr.bf16.mxu0 0
    %928 = vmatpush2.bf16.msra.mxu0 0
    %929 = vmatprep.subr.bf16.mxu0 0
    %930 = vmatpush2.bf16.msra.mxu0 0
    %931 = vmatprep.subr.bf16.mxu0 0
    %932 = vmatpush2.bf16.msra.mxu0 0
    %933 = vmatprep.subr.bf16.mxu0 0
    %934 = vmatpush2.bf16.msra.mxu0 0
    %935 = vmatprep.subr.bf16.mxu0 0
    %936 = vmatpush2.bf16.msra.mxu0 0
    %937 = vmatprep.subr.bf16.mxu0 0
    %938 = vmatpush2.bf16.msra.mxu0 0
    %939 = vmatprep.subr.bf16.mxu0 0
    %940 = vmatpush2.bf16.msra.mxu0 0
    %941 = vmatprep.subr.bf16.mxu0 0
    %942 = vmatpush2.bf16.msra.mxu0 0
    %943 = vmatprep.mubr.bf16.mxu0 0
    %944 = vmatmul.mubr.bf16.gmra.mxu0 %v909
    %v945 = vpop.f32.mrf.mxu0
    %v946 = vadd.f32 0.0, %v945
    %v947 = vpop.f32.mrf.mxu0
    %v948 = vpop.f32.mrf.mxu0
    %v949 = vadd.f32 0.0, %v948
    %v950 = vpop.f32.mrf.mxu0
    %951 = vdwg.mxu0
    %953 = vrot.lane.b32.xlu0 %v499, 120
    %v954 = vpop.permute.xlu0 %953
    %v957 = vsel %vm609, %v903, 0
    %959 = vmatprep.subr.bf16.mxu0 0
    %960 = vmatpush1.bf16.msra.mxu0 0
    %961 = vmatprep.subr.bf16.mxu0 0
    %962 = vmatpush1.bf16.msra.mxu0 0
    %963 = vmatprep.subr.bf16.mxu0 0
    %964 = vmatpush1.bf16.msra.mxu0 0
    %965 = vmatprep.subr.bf16.mxu0 0
    %966 = vmatpush1.bf16.msra.mxu0 0
    %967 = vmatprep.subr.bf16.mxu0 0
    %968 = vmatpush1.bf16.msra.mxu0 0
    %969 = vmatprep.subr.bf16.mxu0 0
    %970 = vmatpush1.bf16.msra.mxu0 0
    %971 = vmatprep.subr.bf16.mxu0 0
    %972 = vmatpush1.bf16.msra.mxu0 0
    %973 = vmatprep.subr.bf16.mxu0 0
    %974 = vmatpush1.bf16.msra.mxu0 %v954
    %975 = vmatprep.subr.bf16.mxu0 0
    %976 = vmatpush2.bf16.msra.mxu0 0
    %977 = vmatprep.subr.bf16.mxu0 0
    %978 = vmatpush2.bf16.msra.mxu0 0
    %979 = vmatprep.subr.bf16.mxu0 0
    %980 = vmatpush2.bf16.msra.mxu0 0
    %981 = vmatprep.subr.bf16.mxu0 0
    %982 = vmatpush2.bf16.msra.mxu0 0
    %983 = vmatprep.subr.bf16.mxu0 0
    %984 = vmatpush2.bf16.msra.mxu0 0
    %985 = vmatprep.subr.bf16.mxu0 0
    %986 = vmatpush2.bf16.msra.mxu0 0
    %987 = vmatprep.subr.bf16.mxu0 0
    %988 = vmatpush2.bf16.msra.mxu0 0
    %989 = vmatprep.subr.bf16.mxu0 0
    %990 = vmatpush2.bf16.msra.mxu0 0
    %991 = vmatprep.mubr.bf16.mxu0 0
    %992 = vmatmul.mubr.bf16.gmra.mxu0 %v957
    %v993 = vpop.f32.mrf.mxu0
    %v994 = vadd.f32 0.0, %v993
    %v995 = vpop.f32.mrf.mxu0
    %v996 = vpop.f32.mrf.mxu0
    %v997 = vadd.f32 0.0, %v996
    %v998 = vpop.f32.mrf.mxu0
    %999 = vdwg.mxu0
    %1000 = vrot.lane.b32.xlu0 %v494, 112
    %v1001 = vpop.permute.xlu0 %1000
    %1002 = vrot.lane.b32.xlu0 %v496, 112
    %v1003 = vpop.permute.xlu0 %1002
    %v1005 = vsel %vm500, %v1001, 0
    %v1008 = vsel %vm500, %v1003, 0
    %1010 = vmatprep.subr.bf16.mxu0 0
    %1011 = vmatpush1.bf16.xpose.msra.mxu0 0
    %1012 = vmatprep.subr.bf16.mxu0 0
    %1013 = vmatpush1.bf16.xpose.msra.mxu0 0
    %1014 = vmatprep.subr.bf16.mxu0 0
    %1015 = vmatpush1.bf16.xpose.msra.mxu0 0
    %1016 = vmatprep.subr.bf16.mxu0 0
    %1017 = vmatpush1.bf16.xpose.msra.mxu0 0
    %1018 = vmatprep.subr.bf16.mxu0 0
    %1019 = vmatpush1.bf16.xpose.msra.mxu0 0
    %1020 = vmatprep.subr.bf16.mxu0 0
    %1021 = vmatpush1.bf16.xpose.msra.mxu0 0
    %1022 = vmatprep.subr.bf16.mxu0 0
    %1023 = vmatpush1.bf16.xpose.msra.mxu0 0
    %1024 = vmatprep.subr.bf16.mxu0 0
    %1025 = vmatpush1.bf16.xpose.msra.mxu0 %v1008
    %1026 = vmatprep.subr.bf16.mxu0 0
    %1027 = vmatpush2.bf16.xpose.msra.mxu0 0
    %1028 = vmatprep.subr.bf16.mxu0 0
    %1029 = vmatpush2.bf16.xpose.msra.mxu0 0
    %1030 = vmatprep.subr.bf16.mxu0 0
    %1031 = vmatpush2.bf16.xpose.msra.mxu0 0
    %1032 = vmatprep.subr.bf16.mxu0 0
    %1033 = vmatpush2.bf16.xpose.msra.mxu0 0
    %1034 = vmatprep.subr.bf16.mxu0 0
    %1035 = vmatpush2.bf16.xpose.msra.mxu0 0
    %1036 = vmatprep.subr.bf16.mxu0 0
    %1037 = vmatpush2.bf16.xpose.msra.mxu0 0
    %1038 = vmatprep.subr.bf16.mxu0 0
    %1039 = vmatpush2.bf16.xpose.msra.mxu0 0
    %1040 = vmatprep.subr.bf16.mxu0 0
    %1041 = vmatpush2.bf16.xpose.msra.mxu0 0
    %1042 = vmatprep.mubr.bf16.mxu0 0
    %1043 = vmatmul.mubr.bf16.gmra.mxu0 %v1005
    %v1044 = vpop.f32.mrf.mxu0
    %v1045 = vadd.f32 0.0, %v1044
    %v1046 = vpop.f32.mrf.mxu0
    %v1047 = vpop.f32.mrf.mxu0
    %v1048 = vadd.f32 0.0, %v1047
    %v1049 = vpop.f32.mrf.mxu0
    %1050 = vdwg.mxu0
    %1051 = vrot.lane.b32.xlu0 %v495, 112
    %v1052 = vpop.permute.xlu0 %1051
    %1053 = vrot.lane.b32.xlu0 %v497, 112
    %v1054 = vpop.permute.xlu0 %1053
    %v1056 = vsel %vm500, %v1052, 0
    %v1059 = vsel %vm500, %v1054, 0
    %1061 = vmatprep.subr.bf16.mxu0 0
    %1062 = vmatpush1.bf16.xpose.msra.mxu0 0
    %1063 = vmatprep.subr.bf16.mxu0 0
    %1064 = vmatpush1.bf16.xpose.msra.mxu0 0
    %1065 = vmatprep.subr.bf16.mxu0 0
    %1066 = vmatpush1.bf16.xpose.msra.mxu0 0
    %1067 = vmatprep.subr.bf16.mxu0 0
    %1068 = vmatpush1.bf16.xpose.msra.mxu0 0
    %1069 = vmatprep.subr.bf16.mxu0 0
    %1070 = vmatpush1.bf16.xpose.msra.mxu0 0
    %1071 = vmatprep.subr.bf16.mxu0 0
    %1072 = vmatpush1.bf16.xpose.msra.mxu0 0
    %1073 = vmatprep.subr.bf16.mxu0 0
    %1074 = vmatpush1.bf16.xpose.msra.mxu0 0
    %1075 = vmatprep.subr.bf16.mxu0 0
    %1076 = vmatpush1.bf16.xpose.msra.mxu0 %v1059
    %1077 = vmatprep.subr.bf16.mxu0 0
    %1078 = vmatpush2.bf16.xpose.msra.mxu0 0
    %1079 = vmatprep.subr.bf16.mxu0 0
    %1080 = vmatpush2.bf16.xpose.msra.mxu0 0
    %1081 = vmatprep.subr.bf16.mxu0 0
    %1082 = vmatpush2.bf16.xpose.msra.mxu0 0
    %1083 = vmatprep.subr.bf16.mxu0 0
    %1084 = vmatpush2.bf16.xpose.msra.mxu0 0
    %1085 = vmatprep.subr.bf16.mxu0 0
    %1086 = vmatpush2.bf16.xpose.msra.mxu0 0
    %1087 = vmatprep.subr.bf16.mxu0 0
    %1088 = vmatpush2.bf16.xpose.msra.mxu0 0
    %1089 = vmatprep.subr.bf16.mxu0 0
    %1090 = vmatpush2.bf16.xpose.msra.mxu0 0
    %1091 = vmatprep.subr.bf16.mxu0 0
    %1092 = vmatpush2.bf16.xpose.msra.mxu0 0
    %1093 = vmatprep.mubr.bf16.mxu0 0
    %1094 = vmatmul.mubr.bf16.gmra.mxu0 %v1056
    %v1095 = vpop.f32.mrf.mxu0
    %v1096 = vadd.f32 0.0, %v1095
    %v1097 = vpop.f32.mrf.mxu0
    %v1098 = vpop.f32.mrf.mxu0
    %v1099 = vadd.f32 0.0, %v1098
    %v1100 = vpop.f32.mrf.mxu0
    %1101 = vdwg.mxu0
    %v1102 = vmul.f32 %v1045, 0.35355338
    %v1103 = vmul.f32 %v1048, 0.35355338
    %v1104 = vmul.f32 %v1096, 0.35355338
    %v1105 = vmul.f32 %v1099, 0.35355338
    %v1106 = vadd.f32 %v1102, %v603
    %v1107 = vadd.f32 %v1103, %v603
    %v1108 = vadd.f32 %v1104, %v603
    %v1109 = vadd.f32 %v1105, %v603
    %v1110 = vsel %vm609, %v1106, -inf
    %1111 = vmax.xlane.f32.xlu0 %v1110
    %v1112 = vpop.xlane.xlu0 %1111
    %v1113 = vsel %vm609, %v1107, -inf
    %1114 = vmax.xlane.f32.xlu0 %v1113
    %v1115 = vpop.xlane.xlu0 %1114
    %v1116 = vsel %vm609, %v1108, -inf
    %1117 = vmax.xlane.f32.xlu0 %v1116
    %v1118 = vpop.xlane.xlu0 %1117
    %v1119 = vsel %vm609, %v1109, -inf
    %1120 = vmax.xlane.f32.xlu0 %v1119
    %v1121 = vpop.xlane.xlu0 %1120
    %v1122 = vsub.f32 %v1106, %v1112
    %v1123 = vsub.f32 %v1107, %v1115
    %v1124 = vsub.f32 %v1108, %v1118
    %v1125 = vsub.f32 %v1109, %v1121
    %v1126 = vmul.f32 %v1122, 1.442695
    %v1127 = vpow.pop %v1126
    %v1128 = vmul.f32 %v1123, 1.442695
    %v1129 = vpow.pop %v1128
    %v1130 = vmul.f32 %v1124, 1.442695
    %v1131 = vpow.pop %v1130
    %v1132 = vmul.f32 %v1125, 1.442695
    %v1133 = vpow.pop %v1132
    %v1134 = vsel %vm609, %v1127, 0.0
    %1135 = vadd.xlane.f32.xlu0 %v1134
    %v1136 = vpop.xlane.xlu0 %1135
    %v1137 = vsel %vm609, %v1129, 0.0
    %1138 = vadd.xlane.f32.xlu0 %v1137
    %v1139 = vpop.xlane.xlu0 %1138
    %v1140 = vsel %vm609, %v1131, 0.0
    %1141 = vadd.xlane.f32.xlu0 %v1140
    %v1142 = vpop.xlane.xlu0 %1141
    %v1143 = vsel %vm609, %v1133, 0.0
    %1144 = vadd.xlane.f32.xlu0 %v1143
    %v1145 = vpop.xlane.xlu0 %1144
    %v1146 = vrcp.pop %v1136
    %v1147 = vrcp.pop %v1139
    %v1148 = vrcp.pop %v1142
    %v1149 = vrcp.pop %v1145
    %v1150 = vmul.f32 %v1127, %v1146
    %v1151 = vmul.f32 %v1129, %v1147
    %v1152 = vmul.f32 %v1131, %v1148
    %v1153 = vmul.f32 %v1133, %v1149
    %v1154 = vpack.c.bf16 %v1151, %v1150
    %v1155 = vpack.c.bf16 %v1153, %v1152
    %1156 = vrot.lane.b32.xlu0 %v498, 112
    %v1157 = vpop.permute.xlu0 %1156
    %v1160 = vsel %vm609, %v1154, 0
    %1162 = vmatprep.subr.bf16.mxu0 0
    %1163 = vmatpush1.bf16.msra.mxu0 0
    %1164 = vmatprep.subr.bf16.mxu0 0
    %1165 = vmatpush1.bf16.msra.mxu0 0
    %1166 = vmatprep.subr.bf16.mxu0 0
    %1167 = vmatpush1.bf16.msra.mxu0 0
    %1168 = vmatprep.subr.bf16.mxu0 0
    %1169 = vmatpush1.bf16.msra.mxu0 0
    %1170 = vmatprep.subr.bf16.mxu0 0
    %1171 = vmatpush1.bf16.msra.mxu0 0
    %1172 = vmatprep.subr.bf16.mxu0 0
    %1173 = vmatpush1.bf16.msra.mxu0 0
    %1174 = vmatprep.subr.bf16.mxu0 0
    %1175 = vmatpush1.bf16.msra.mxu0 0
    %1176 = vmatprep.subr.bf16.mxu0 0
    %1177 = vmatpush1.bf16.msra.mxu0 %v1157
    %1178 = vmatprep.subr.bf16.mxu0 0
    %1179 = vmatpush2.bf16.msra.mxu0 0
    %1180 = vmatprep.subr.bf16.mxu0 0
    %1181 = vmatpush2.bf16.msra.mxu0 0
    %1182 = vmatprep.subr.bf16.mxu0 0
    %1183 = vmatpush2.bf16.msra.mxu0 0
    %1184 = vmatprep.subr.bf16.mxu0 0
    %1185 = vmatpush2.bf16.msra.mxu0 0
    %1186 = vmatprep.subr.bf16.mxu0 0
    %1187 = vmatpush2.bf16.msra.mxu0 0
    %1188 = vmatprep.subr.bf16.mxu0 0
    %1189 = vmatpush2.bf16.msra.mxu0 0
    %1190 = vmatprep.subr.bf16.mxu0 0
    %1191 = vmatpush2.bf16.msra.mxu0 0
    %1192 = vmatprep.subr.bf16.mxu0 0
    %1193 = vmatpush2.bf16.msra.mxu0 0
    %1194 = vmatprep.mubr.bf16.mxu0 0
    %1195 = vmatmul.mubr.bf16.gmra.mxu0 %v1160
    %v1196 = vpop.f32.mrf.mxu0
    %v1197 = vadd.f32 0.0, %v1196
    %v1198 = vpop.f32.mrf.mxu0
    %v1199 = vpop.f32.mrf.mxu0
    %v1200 = vadd.f32 0.0, %v1199
    %v1201 = vpop.f32.mrf.mxu0
    %1202 = vdwg.mxu0
    %1203 = vrot.lane.b32.xlu0 %v499, 112
    %v1204 = vpop.permute.xlu0 %1203
    %v1207 = vsel %vm609, %v1155, 0
    %1209 = vmatprep.subr.bf16.mxu0 0
    %1210 = vmatpush1.bf16.msra.mxu0 0
    %1211 = vmatprep.subr.bf16.mxu0 0
    %1212 = vmatpush1.bf16.msra.mxu0 0
    %1213 = vmatprep.subr.bf16.mxu0 0
    %1214 = vmatpush1.bf16.msra.mxu0 0
    %1215 = vmatprep.subr.bf16.mxu0 0
    %1216 = vmatpush1.bf16.msra.mxu0 0
    %1217 = vmatprep.subr.bf16.mxu0 0
    %1218 = vmatpush1.bf16.msra.mxu0 0
    %1219 = vmatprep.subr.bf16.mxu0 0
    %1220 = vmatpush1.bf16.msra.mxu0 0
    %1221 = vmatprep.subr.bf16.mxu0 0
    %1222 = vmatpush1.bf16.msra.mxu0 0
    %1223 = vmatprep.subr.bf16.mxu0 0
    %1224 = vmatpush1.bf16.msra.mxu0 %v1204
    %1225 = vmatprep.subr.bf16.mxu0 0
    %1226 = vmatpush2.bf16.msra.mxu0 0
    %1227 = vmatprep.subr.bf16.mxu0 0
    %1228 = vmatpush2.bf16.msra.mxu0 0
    %1229 = vmatprep.subr.bf16.mxu0 0
    %1230 = vmatpush2.bf16.msra.mxu0 0
    %1231 = vmatprep.subr.bf16.mxu0 0
    %1232 = vmatpush2.bf16.msra.mxu0 0
    %1233 = vmatprep.subr.bf16.mxu0 0
    %1234 = vmatpush2.bf16.msra.mxu0 0
    %1235 = vmatprep.subr.bf16.mxu0 0
    %1236 = vmatpush2.bf16.msra.mxu0 0
    %1237 = vmatprep.subr.bf16.mxu0 0
    %1238 = vmatpush2.bf16.msra.mxu0 0
    %1239 = vmatprep.subr.bf16.mxu0 0
    %1240 = vmatpush2.bf16.msra.mxu0 0
    %1241 = vmatprep.mubr.bf16.mxu0 0
    %1242 = vmatmul.mubr.bf16.gmra.mxu0 %v1207
    %v1243 = vpop.f32.mrf.mxu0
    %v1244 = vadd.f32 0.0, %v1243
    %v1245 = vpop.f32.mrf.mxu0
    %v1246 = vpop.f32.mrf.mxu0
    %v1247 = vadd.f32 0.0, %v1246
    %v1248 = vpop.f32.mrf.mxu0
    %1249 = vdwg.mxu0
    %1250 = vrot.lane.b32.xlu0 %v494, 104
    %v1251 = vpop.permute.xlu0 %1250
    %1252 = vrot.lane.b32.xlu0 %v496, 104
    %v1253 = vpop.permute.xlu0 %1252
    %v1255 = vsel %vm500, %v1251, 0
    %v1258 = vsel %vm500, %v1253, 0
    %1260 = vmatprep.subr.bf16.mxu0 0
    %1261 = vmatpush1.bf16.xpose.msra.mxu0 0
    %1262 = vmatprep.subr.bf16.mxu0 0
    %1263 = vmatpush1.bf16.xpose.msra.mxu0 0
    %1264 = vmatprep.subr.bf16.mxu0 0
    %1265 = vmatpush1.bf16.xpose.msra.mxu0 0
    %1266 = vmatprep.subr.bf16.mxu0 0
    %1267 = vmatpush1.bf16.xpose.msra.mxu0 0
    %1268 = vmatprep.subr.bf16.mxu0 0
    %1269 = vmatpush1.bf16.xpose.msra.mxu0 0
    %1270 = vmatprep.subr.bf16.mxu0 0
    %1271 = vmatpush1.bf16.xpose.msra.mxu0 0
    %1272 = vmatprep.subr.bf16.mxu0 0
    %1273 = vmatpush1.bf16.xpose.msra.mxu0 0
    %1274 = vmatprep.subr.bf16.mxu0 0
    %1275 = vmatpush1.bf16.xpose.msra.mxu0 %v1258
    %1276 = vmatprep.subr.bf16.mxu0 0
    %1277 = vmatpush2.bf16.xpose.msra.mxu0 0
    %1278 = vmatprep.subr.bf16.mxu0 0
    %1279 = vmatpush2.bf16.xpose.msra.mxu0 0
    %1280 = vmatprep.subr.bf16.mxu0 0
    %1281 = vmatpush2.bf16.xpose.msra.mxu0 0
    %1282 = vmatprep.subr.bf16.mxu0 0
    %1283 = vmatpush2.bf16.xpose.msra.mxu0 0
    %1284 = vmatprep.subr.bf16.mxu0 0
    %1285 = vmatpush2.bf16.xpose.msra.mxu0 0
    %1286 = vmatprep.subr.bf16.mxu0 0
    %1287 = vmatpush2.bf16.xpose.msra.mxu0 0
    %1288 = vmatprep.subr.bf16.mxu0 0
    %1289 = vmatpush2.bf16.xpose.msra.mxu0 0
    %1290 = vmatprep.subr.bf16.mxu0 0
    %1291 = vmatpush2.bf16.xpose.msra.mxu0 0
    %1292 = vmatprep.mubr.bf16.mxu0 0
    %1293 = vmatmul.mubr.bf16.gmra.mxu0 %v1255
    %v1294 = vpop.f32.mrf.mxu0
    %v1295 = vadd.f32 0.0, %v1294
    %v1296 = vpop.f32.mrf.mxu0
    %v1297 = vpop.f32.mrf.mxu0
    %v1298 = vadd.f32 0.0, %v1297
    %v1299 = vpop.f32.mrf.mxu0
    %1300 = vdwg.mxu0
    %1301 = vrot.lane.b32.xlu0 %v495, 104
    %v1302 = vpop.permute.xlu0 %1301
    %1303 = vrot.lane.b32.xlu0 %v497, 104
    %v1304 = vpop.permute.xlu0 %1303
    %v1306 = vsel %vm500, %v1302, 0
    %v1309 = vsel %vm500, %v1304, 0
    %1311 = vmatprep.subr.bf16.mxu0 0
    %1312 = vmatpush1.bf16.xpose.msra.mxu0 0
    %1313 = vmatprep.subr.bf16.mxu0 0
    %1314 = vmatpush1.bf16.xpose.msra.mxu0 0
    %1315 = vmatprep.subr.bf16.mxu0 0
    %1316 = vmatpush1.bf16.xpose.msra.mxu0 0
    %1317 = vmatprep.subr.bf16.mxu0 0
    %1318 = vmatpush1.bf16.xpose.msra.mxu0 0
    %1319 = vmatprep.subr.bf16.mxu0 0
    %1320 = vmatpush1.bf16.xpose.msra.mxu0 0
    %1321 = vmatprep.subr.bf16.mxu0 0
    %1322 = vmatpush1.bf16.xpose.msra.mxu0 0
    %1323 = vmatprep.subr.bf16.mxu0 0
    %1324 = vmatpush1.bf16.xpose.msra.mxu0 0
    %1325 = vmatprep.subr.bf16.mxu0 0
    %1326 = vmatpush1.bf16.xpose.msra.mxu0 %v1309
    %1327 = vmatprep.subr.bf16.mxu0 0
    %1328 = vmatpush2.bf16.xpose.msra.mxu0 0
    %1329 = vmatprep.subr.bf16.mxu0 0
    %1330 = vmatpush2.bf16.xpose.msra.mxu0 0
    %1331 = vmatprep.subr.bf16.mxu0 0
    %1332 = vmatpush2.bf16.xpose.msra.mxu0 0
    %1333 = vmatprep.subr.bf16.mxu0 0
    %1334 = vmatpush2.bf16.xpose.msra.mxu0 0
    %1335 = vmatprep.subr.bf16.mxu0 0
    %1336 = vmatpush2.bf16.xpose.msra.mxu0 0
    %1337 = vmatprep.subr.bf16.mxu0 0
    %1338 = vmatpush2.bf16.xpose.msra.mxu0 0
    %1339 = vmatprep.subr.bf16.mxu0 0
    %1340 = vmatpush2.bf16.xpose.msra.mxu0 0
    %1341 = vmatprep.subr.bf16.mxu0 0
    %1342 = vmatpush2.bf16.xpose.msra.mxu0 0
    %1343 = vmatprep.mubr.bf16.mxu0 0
    %1344 = vmatmul.mubr.bf16.gmra.mxu0 %v1306
    %v1345 = vpop.f32.mrf.mxu0
    %v1346 = vadd.f32 0.0, %v1345
    %v1347 = vpop.f32.mrf.mxu0
    %v1348 = vpop.f32.mrf.mxu0
    %v1349 = vadd.f32 0.0, %v1348
    %v1350 = vpop.f32.mrf.mxu0
    %1351 = vdwg.mxu0
    %v1352 = vmul.f32 %v1295, 0.35355338
    %v1353 = vmul.f32 %v1298, 0.35355338
    %v1354 = vmul.f32 %v1346, 0.35355338
    %v1355 = vmul.f32 %v1349, 0.35355338
    %v1356 = vadd.f32 %v1352, %v603
    %v1357 = vadd.f32 %v1353, %v603
    %v1358 = vadd.f32 %v1354, %v603
    %v1359 = vadd.f32 %v1355, %v603
    %v1360 = vsel %vm609, %v1356, -inf
    %1361 = vmax.xlane.f32.xlu0 %v1360
    %v1362 = vpop.xlane.xlu0 %1361
    %v1363 = vsel %vm609, %v1357, -inf
    %1364 = vmax.xlane.f32.xlu0 %v1363
    %v1365 = vpop.xlane.xlu0 %1364
    %v1366 = vsel %vm609, %v1358, -inf
    %1367 = vmax.xlane.f32.xlu0 %v1366
    %v1368 = vpop.xlane.xlu0 %1367
    %v1369 = vsel %vm609, %v1359, -inf
    %1370 = vmax.xlane.f32.xlu0 %v1369
    %v1371 = vpop.xlane.xlu0 %1370
    %v1372 = vsub.f32 %v1356, %v1362
    %v1373 = vsub.f32 %v1357, %v1365
    %v1374 = vsub.f32 %v1358, %v1368
    %v1375 = vsub.f32 %v1359, %v1371
    %v1376 = vmul.f32 %v1372, 1.442695
    %v1377 = vpow.pop %v1376
    %v1378 = vmul.f32 %v1373, 1.442695
    %v1379 = vpow.pop %v1378
    %v1380 = vmul.f32 %v1374, 1.442695
    %v1381 = vpow.pop %v1380
    %v1382 = vmul.f32 %v1375, 1.442695
    %v1383 = vpow.pop %v1382
    %v1384 = vsel %vm609, %v1377, 0.0
    %1385 = vadd.xlane.f32.xlu0 %v1384
    %v1386 = vpop.xlane.xlu0 %1385
    %v1387 = vsel %vm609, %v1379, 0.0
    %1388 = vadd.xlane.f32.xlu0 %v1387
    %v1389 = vpop.xlane.xlu0 %1388
    %v1390 = vsel %vm609, %v1381, 0.0
    %1391 = vadd.xlane.f32.xlu0 %v1390
    %v1392 = vpop.xlane.xlu0 %1391
    %v1393 = vsel %vm609, %v1383, 0.0
    %1394 = vadd.xlane.f32.xlu0 %v1393
    %v1395 = vpop.xlane.xlu0 %1394
    %v1396 = vrcp.pop %v1386
    %v1397 = vrcp.pop %v1389
    %v1398 = vrcp.pop %v1392
    %v1399 = vrcp.pop %v1395
    %v1400 = vmul.f32 %v1377, %v1396
    %v1401 = vmul.f32 %v1379, %v1397
    %v1402 = vmul.f32 %v1381, %v1398
    %v1403 = vmul.f32 %v1383, %v1399
    %v1404 = vpack.c.bf16 %v1401, %v1400
    %v1405 = vpack.c.bf16 %v1403, %v1402
    %1406 = vrot.lane.b32.xlu0 %v498, 104
    %v1407 = vpop.permute.xlu0 %1406
    %v1410 = vsel %vm609, %v1404, 0
    %1412 = vmatprep.subr.bf16.mxu0 0
    %1413 = vmatpush1.bf16.msra.mxu0 0
    %1414 = vmatprep.subr.bf16.mxu0 0
    %1415 = vmatpush1.bf16.msra.mxu0 0
    %1416 = vmatprep.subr.bf16.mxu0 0
    %1417 = vmatpush1.bf16.msra.mxu0 0
    %1418 = vmatprep.subr.bf16.mxu0 0
    %1419 = vmatpush1.bf16.msra.mxu0 0
    %1420 = vmatprep.subr.bf16.mxu0 0
    %1421 = vmatpush1.bf16.msra.mxu0 0
    %1422 = vmatprep.subr.bf16.mxu0 0
    %1423 = vmatpush1.bf16.msra.mxu0 0
    %1424 = vmatprep.subr.bf16.mxu0 0
    %1425 = vmatpush1.bf16.msra.mxu0 0
    %1426 = vmatprep.subr.bf16.mxu0 0
    %1427 = vmatpush1.bf16.msra.mxu0 %v1407
    %1428 = vmatprep.subr.bf16.mxu0 0
    %1429 = vmatpush2.bf16.msra.mxu0 0
    %1430 = vmatprep.subr.bf16.mxu0 0
    %1431 = vmatpush2.bf16.msra.mxu0 0
    %1432 = vmatprep.subr.bf16.mxu0 0
    %1433 = vmatpush2.bf16.msra.mxu0 0
    %1434 = vmatprep.subr.bf16.mxu0 0
    %1435 = vmatpush2.bf16.msra.mxu0 0
    %1436 = vmatprep.subr.bf16.mxu0 0
    %1437 = vmatpush2.bf16.msra.mxu0 0
    %1438 = vmatprep.subr.bf16.mxu0 0
    %1439 = vmatpush2.bf16.msra.mxu0 0
    %1440 = vmatprep.subr.bf16.mxu0 0
    %1441 = vmatpush2.bf16.msra.mxu0 0
    %1442 = vmatprep.subr.bf16.mxu0 0
    %1443 = vmatpush2.bf16.msra.mxu0 0
    %1444 = vmatprep.mubr.bf16.mxu0 0
    %1445 = vmatmul.mubr.bf16.gmra.mxu0 %v1410
    %v1446 = vpop.f32.mrf.mxu0
    %v1447 = vadd.f32 0.0, %v1446
    %v1448 = vpop.f32.mrf.mxu0
    %v1449 = vpop.f32.mrf.mxu0
    %v1450 = vadd.f32 0.0, %v1449
    %v1451 = vpop.f32.mrf.mxu0
    %1452 = vdwg.mxu0
    %1453 = vrot.lane.b32.xlu0 %v499, 104
    %v1454 = vpop.permute.xlu0 %1453
    %v1457 = vsel %vm609, %v1405, 0
    %1459 = vmatprep.subr.bf16.mxu0 0
    %1460 = vmatpush1.bf16.msra.mxu0 0
    %1461 = vmatprep.subr.bf16.mxu0 0
    %1462 = vmatpush1.bf16.msra.mxu0 0
    %1463 = vmatprep.subr.bf16.mxu0 0
    %1464 = vmatpush1.bf16.msra.mxu0 0
    %1465 = vmatprep.subr.bf16.mxu0 0
    %1466 = vmatpush1.bf16.msra.mxu0 0
    %1467 = vmatprep.subr.bf16.mxu0 0
    %1468 = vmatpush1.bf16.msra.mxu0 0
    %1469 = vmatprep.subr.bf16.mxu0 0
    %1470 = vmatpush1.bf16.msra.mxu0 0
    %1471 = vmatprep.subr.bf16.mxu0 0
    %1472 = vmatpush1.bf16.msra.mxu0 0
    %1473 = vmatprep.subr.bf16.mxu0 0
    %1474 = vmatpush1.bf16.msra.mxu0 %v1454
    %1475 = vmatprep.subr.bf16.mxu0 0
    %1476 = vmatpush2.bf16.msra.mxu0 0
    %1477 = vmatprep.subr.bf16.mxu0 0
    %1478 = vmatpush2.bf16.msra.mxu0 0
    %1479 = vmatprep.subr.bf16.mxu0 0
    %1480 = vmatpush2.bf16.msra.mxu0 0
    %1481 = vmatprep.subr.bf16.mxu0 0
    %1482 = vmatpush2.bf16.msra.mxu0 0
    %1483 = vmatprep.subr.bf16.mxu0 0
    %1484 = vmatpush2.bf16.msra.mxu0 0
    %1485 = vmatprep.subr.bf16.mxu0 0
    %1486 = vmatpush2.bf16.msra.mxu0 0
    %1487 = vmatprep.subr.bf16.mxu0 0
    %1488 = vmatpush2.bf16.msra.mxu0 0
    %1489 = vmatprep.subr.bf16.mxu0 0
    %1490 = vmatpush2.bf16.msra.mxu0 0
    %1491 = vmatprep.mubr.bf16.mxu0 0
    %1492 = vmatmul.mubr.bf16.gmra.mxu0 %v1457
    %v1493 = vpop.f32.mrf.mxu0
    %v1494 = vadd.f32 0.0, %v1493
    %v1495 = vpop.f32.mrf.mxu0
    %v1496 = vpop.f32.mrf.mxu0
    %v1497 = vadd.f32 0.0, %v1496
    %v1498 = vpop.f32.mrf.mxu0
    %1499 = vdwg.mxu0
    %1504 = vrot.lane.b32.xlu0 %v946, 8
    %v1505 = vpop.permute.xlu0 %1504
    %1506 = vrot.lane.b32.xlu0 %v949, 8
    %v1507 = vpop.permute.xlu0 %1506
    %1508 = vrot.lane.b32.xlu0 %v994, 8
    %v1509 = vpop.permute.xlu0 %1508
    %1510 = vrot.lane.b32.xlu0 %v997, 8
    %v1511 = vpop.permute.xlu0 %1510
    %1520 = vrot.lane.b32.xlu0 %v1197, 16
    %v1521 = vpop.permute.xlu0 %1520
    %1522 = vrot.lane.b32.xlu0 %v1200, 16
    %v1523 = vpop.permute.xlu0 %1522
    %1524 = vrot.lane.b32.xlu0 %v1244, 16
    %v1525 = vpop.permute.xlu0 %1524
    %1526 = vrot.lane.b32.xlu0 %v1247, 16
    %v1527 = vpop.permute.xlu0 %1526
    %1536 = vrot.lane.b32.xlu0 %v1447, 24
    %v1537 = vpop.permute.xlu0 %1536
    %1538 = vrot.lane.b32.xlu0 %v1450, 24
    %v1539 = vpop.permute.xlu0 %1538
    %1540 = vrot.lane.b32.xlu0 %v1494, 24
    %v1541 = vpop.permute.xlu0 %1540
    %1542 = vrot.lane.b32.xlu0 %v1497, 24
    %v1543 = vpop.permute.xlu0 %1542
    %v1548 = vsel %vm500, %v694, %v1505
    %v1549 = vsel %vm500, %v697, %v1507
    %v1550 = vsel %vm500, %v738, %v1509
    %v1551 = vsel %vm500, %v741, %v1511
    %v1552 = vsel %vm609, %v1548, %v1521
    %v1553 = vsel %vm609, %v1549, %v1523
    %v1554 = vsel %vm609, %v1550, %v1525
    %v1555 = vsel %vm609, %v1551, %v1527
    %vm1556 = vcmask 195584
    %v1557 = vsel %vm1556, %v1552, %v1537
    %v1558 = vsel %vm1556, %v1553, %v1539
    %v1559 = vsel %vm1556, %v1554, %v1541
    %v1560 = vsel %vm1556, %v1555, %v1543
    %v1561 = vpack.c.bf16 %v1558, %v1557
    %v1562 = vpack.c.bf16 %v1560, %v1559
    %v1563 = vlaneseq
    %v1564 = vshrl.u32 %v1563, 7
    %v1565 = vsub.s32 0, %v1564
    %v1566 = vrot.slane %v272, %v1565
    %v1571 = vunpack.c.l.b16 %v268
    %v1572 = vunpack.c.l.b16 %v269
    %v1573 = vunpack.c.l.b16 %v270
    %v1574 = vunpack.c.l.b16 %v271
    %v1575 = vpack.c.b16 %v1572, %v1571
    %v1576 = vpack.c.b16 %v1574, %v1573
    %v1580 = vsel %vm242, %v1561, 0
    %v1583 = vsel %vm242, %v1562, 0
    %1585 = vmatprep.subr.bf16.mxu0 0
    %1586 = vmatpush1.bf16.msra.mxu0 0
    %1587 = vmatprep.subr.bf16.mxu0 0
    %1588 = vmatpush1.bf16.msra.mxu0 0
    %1589 = vmatprep.subr.bf16.mxu0 0
    %1590 = vmatpush1.bf16.msra.mxu0 0
    %1591 = vmatprep.subr.bf16.mxu0 0
    %1592 = vmatpush1.bf16.msra.mxu0 0
    %1593 = vmatprep.subr.bf16.mxu0 0
    %1594 = vmatpush1.bf16.msra.mxu0 0
    %1595 = vmatprep.subr.bf16.mxu0 0
    %1596 = vmatpush1.bf16.msra.mxu0 0
    %1597 = vmatprep.subr.bf16.mxu0 0
    %1598 = vmatpush1.bf16.msra.mxu0 %v1576
    %1599 = vmatprep.subr.bf16.mxu0 0
    %1600 = vmatpush1.bf16.msra.mxu0 %v1575
    %1601 = vmatprep.subr.bf16.mxu0 0
    %1602 = vmatpush2.bf16.msra.mxu0 0
    %1603 = vmatprep.subr.bf16.mxu0 0
    %1604 = vmatpush2.bf16.msra.mxu0 0
    %1605 = vmatprep.subr.bf16.mxu0 0
    %1606 = vmatpush2.bf16.msra.mxu0 0
    %1607 = vmatprep.subr.bf16.mxu0 0
    %1608 = vmatpush2.bf16.msra.mxu0 0
    %1609 = vmatprep.subr.bf16.mxu0 0
    %1610 = vmatpush2.bf16.msra.mxu0 0
    %1611 = vmatprep.subr.bf16.mxu0 0
    %1612 = vmatpush2.bf16.msra.mxu0 0
    %1613 = vmatprep.subr.bf16.mxu0 0
    %1614 = vmatpush2.bf16.msra.mxu0 0
    %1615 = vmatprep.subr.bf16.mxu0 0
    %1616 = vmatpush2.bf16.msra.mxu0 0
    %1617 = vmatprep.mubr.bf16.mxu0 0
    %1618 = vmatmul.mubr.bf16.gmra.mxu0 %v1580
    %v1619 = vpop.f32.mrf.mxu0
    %v1620 = vadd.f32 %v1566, %v1619
    %v1621 = vpop.f32.mrf.mxu0
    %v1622 = vpop.f32.mrf.mxu0
    %v1623 = vadd.f32 %v1566, %v1622
    %v1624 = vpop.f32.mrf.mxu0
    %1625 = vmatprep.mubr.bf16.mxu0 0
    %1626 = vmatmul.mubr.bf16.gmra.mxu0 %v1583
    %v1627 = vpop.f32.mrf.mxu0
    %v1628 = vadd.f32 %v1566, %v1627
    %v1629 = vpop.f32.mrf.mxu0
    %v1630 = vpop.f32.mrf.mxu0
    %v1631 = vadd.f32 %v1566, %v1630
    %v1632 = vpop.f32.mrf.mxu0
    %1633 = vdwg.mxu0
    %v1634 = vadd.f32 %v249, %v1620
    %v1635 = vadd.f32 %v250, %v1623
    %v1636 = vadd.f32 %v251, %v1628
    %v1637 = vadd.f32 %v252, %v1631
    %v1638 = vsel %vm242, %v1634, 0.0
    %1639 = vadd.xlane.f32.xlu0 %v1638
    %v1640 = vpop.xlane.xlu0 %1639
    %v1641 = vsel %vm242, %v1635, 0.0
    %1642 = vadd.xlane.f32.xlu0 %v1641
    %v1643 = vpop.xlane.xlu0 %1642
    %v1644 = vsel %vm242, %v1636, 0.0
    %1645 = vadd.xlane.f32.xlu0 %v1644
    %v1646 = vpop.xlane.xlu0 %1645
    %v1647 = vsel %vm242, %v1637, 0.0
    %1648 = vadd.xlane.f32.xlu0 %v1647
    %v1649 = vpop.xlane.xlu0 %1648
    %v1650 = vrcp.pop 32.0
    %v1651 = vmul.f32 %v1640, %v1650
    %v1652 = vmul.f32 %v1643, %v1650
    %v1653 = vmul.f32 %v1646, %v1650
    %v1654 = vmul.f32 %v1649, %v1650
    %v1655 = vsub.f32 %v1634, %v1651
    %v1656 = vsub.f32 %v1635, %v1652
    %v1657 = vsub.f32 %v1636, %v1653
    %v1658 = vsub.f32 %v1637, %v1654
    %v1659 = vmul.f32 %v1655, %v1655
    %v1660 = vmul.f32 %v1656, %v1656
    %v1661 = vmul.f32 %v1657, %v1657
    %v1662 = vmul.f32 %v1658, %v1658
    %v1663 = vsel %vm242, %v1659, 0.0
    %1664 = vadd.xlane.f32.xlu0 %v1663
    %v1665 = vpop.xlane.xlu0 %1664
    %v1666 = vsel %vm242, %v1660, 0.0
    %1667 = vadd.xlane.f32.xlu0 %v1666
    %v1668 = vpop.xlane.xlu0 %1667
    %v1669 = vsel %vm242, %v1661, 0.0
    %1670 = vadd.xlane.f32.xlu0 %v1669
    %v1671 = vpop.xlane.xlu0 %1670
    %v1672 = vsel %vm242, %v1662, 0.0
    %1673 = vadd.xlane.f32.xlu0 %v1672
    %v1674 = vpop.xlane.xlu0 %1673
    %v1675 = vmul.f32 %v1665, %v1650
    %v1676 = vmul.f32 %v1668, %v1650
    %v1677 = vmul.f32 %v1671, %v1650
    %v1678 = vmul.f32 %v1674, %v1650
    %v1679 = vadd.f32 %v1675, 1e-05
    %v1680 = vadd.f32 %v1676, 1e-05
    %v1681 = vadd.f32 %v1677, 1e-05
    %v1682 = vadd.f32 %v1678, 1e-05
    %v1683 = vrsqrt.pop %v1679
    %v1684 = vrsqrt.pop %v1680
    %v1685 = vrsqrt.pop %v1681
    %v1686 = vrsqrt.pop %v1682
    %v1687 = vmul.f32 %v1655, %v1683
    %v1688 = vmul.f32 %v1656, %v1684
    %v1689 = vmul.f32 %v1657, %v1685
    %v1690 = vmul.f32 %v1658, %v1686
    %v1691 = vlaneseq
    %v1692 = vshrl.u32 %v1691, 7
    %v1693 = vsub.s32 0, %v1692
    %v1694 = vrot.slane %v273, %v1693
    %v1695 = vmul.f32 %v1687, %v1694
    %v1696 = vmul.f32 %v1688, %v1694
    %v1697 = vmul.f32 %v1689, %v1694
    %v1698 = vmul.f32 %v1690, %v1694
    %v1699 = vlaneseq
    %v1700 = vshrl.u32 %v1699, 7
    %v1701 = vsub.s32 0, %v1700
    %v1702 = vrot.slane %v274, %v1701
    %v1703 = vadd.f32 %v1695, %v1702
    %v1704 = vadd.f32 %v1696, %v1702
    %v1705 = vadd.f32 %v1697, %v1702
    %v1706 = vadd.f32 %v1698, %v1702
    %v1707 = vpack.c.bf16 %v1704, %v1703
    %v1708 = vpack.c.bf16 %v1706, %v1705
    %v1709 = vlaneseq
    %v1710 = vshrl.u32 %v1709, 7
    %v1711 = vsub.s32 0, %v1710
    %v1712 = vrot.slane %v281, %v1711
    %v1717 = vunpack.c.l.b16 %v277
    %v1718 = vunpack.c.l.b16 %v278
    %v1719 = vunpack.c.l.b16 %v279
    %v1720 = vunpack.c.l.b16 %v280
    %v1721 = vpack.c.b16 %v1718, %v1717
    %v1722 = vpack.c.b16 %v1720, %v1719
    %v1726 = vsel %vm242, %v1707, 0
    %v1729 = vsel %vm242, %v1708, 0
    %1731 = vmatprep.subr.bf16.mxu0 0
    %1732 = vmatpush1.bf16.msra.mxu0 0
    %1733 = vmatprep.subr.bf16.mxu0 0
    %1734 = vmatpush1.bf16.msra.mxu0 0
    %1735 = vmatprep.subr.bf16.mxu0 0
    %1736 = vmatpush1.bf16.msra.mxu0 0
    %1737 = vmatprep.subr.bf16.mxu0 0
    %1738 = vmatpush1.bf16.msra.mxu0 0
    %1739 = vmatprep.subr.bf16.mxu0 0
    %1740 = vmatpush1.bf16.msra.mxu0 0
    %1741 = vmatprep.subr.bf16.mxu0 0
    %1742 = vmatpush1.bf16.msra.mxu0 0
    %1743 = vmatprep.subr.bf16.mxu0 0
    %1744 = vmatpush1.bf16.msra.mxu0 %v1722
    %1745 = vmatprep.subr.bf16.mxu0 0
    %1746 = vmatpush1.bf16.msra.mxu0 %v1721
    %1747 = vmatprep.subr.bf16.mxu0 0
    %1748 = vmatpush2.bf16.msra.mxu0 0
    %1749 = vmatprep.subr.bf16.mxu0 0
    %1750 = vmatpush2.bf16.msra.mxu0 0
    %1751 = vmatprep.subr.bf16.mxu0 0
    %1752 = vmatpush2.bf16.msra.mxu0 0
    %1753 = vmatprep.subr.bf16.mxu0 0
    %1754 = vmatpush2.bf16.msra.mxu0 0
    %1755 = vmatprep.subr.bf16.mxu0 0
    %1756 = vmatpush2.bf16.msra.mxu0 0
    %1757 = vmatprep.subr.bf16.mxu0 0
    %1758 = vmatpush2.bf16.msra.mxu0 0
    %1759 = vmatprep.subr.bf16.mxu0 0
    %1760 = vmatpush2.bf16.msra.mxu0 0
    %1761 = vmatprep.subr.bf16.mxu0 0
    %1762 = vmatpush2.bf16.msra.mxu0 0
    %1763 = vmatprep.mubr.bf16.mxu0 0
    %1764 = vmatmul.mubr.bf16.gmra.mxu0 %v1726
    %v1765 = vpop.f32.mrf.mxu0
    %v1766 = vadd.f32 %v1712, %v1765
    %v1767 = vpop.f32.mrf.mxu0
    %v1768 = vpop.f32.mrf.mxu0
    %v1769 = vadd.f32 %v1712, %v1768
    %v1770 = vpop.f32.mrf.mxu0
    %1771 = vmatprep.mubr.bf16.mxu0 0
    %1772 = vmatmul.mubr.bf16.gmra.mxu0 %v1729
    %v1773 = vpop.f32.mrf.mxu0
    %v1774 = vadd.f32 %v1712, %v1773
    %v1775 = vpop.f32.mrf.mxu0
    %v1776 = vpop.f32.mrf.mxu0
    %v1777 = vadd.f32 %v1712, %v1776
    %v1778 = vpop.f32.mrf.mxu0
    %1779 = vdwg.mxu0
    %v1780 = vmax.f32 %v1766, 0.0
    %v1781 = vmax.f32 %v1769, 0.0
    %v1782 = vmax.f32 %v1774, 0.0
    %v1783 = vmax.f32 %v1777, 0.0
    %v1784 = vpack.c.bf16 %v1781, %v1780
    %v1785 = vpack.c.bf16 %v1783, %v1782
    %v1786 = vlaneseq
    %v1787 = vshrl.u32 %v1786, 7
    %v1788 = vsub.s32 0, %v1787
    %v1789 = vrot.slane %v290, %v1788
    %v1798 = vunpack.c.l.b16 %v282
    %v1799 = vunpack.c.l.b16 %v283
    %v1800 = vunpack.c.l.b16 %v284
    %v1801 = vunpack.c.l.b16 %v285
    %v1802 = vunpack.c.l.b16 %v286
    %v1803 = vunpack.c.l.b16 %v287
    %v1804 = vunpack.c.l.b16 %v288
    %v1805 = vunpack.c.l.b16 %v289
    %v1806 = vpack.c.b16 %v1799, %v1798
    %v1807 = vpack.c.b16 %v1801, %v1800
    %v1808 = vpack.c.b16 %v1803, %v1802
    %v1809 = vpack.c.b16 %v1805, %v1804
    %vm1814 = vcmask 523264
    %v1816 = vsel %vm1814, %v1784, 0
    %v1819 = vsel %vm1814, %v1785, 0
    %1821 = vmatprep.subr.bf16.mxu0 0
    %1822 = vmatpush1.bf16.msra.mxu0 0
    %1823 = vmatprep.subr.bf16.mxu0 0
    %1824 = vmatpush1.bf16.msra.mxu0 0
    %1825 = vmatprep.subr.bf16.mxu0 0
    %1826 = vmatpush1.bf16.msra.mxu0 0
    %1827 = vmatprep.subr.bf16.mxu0 0
    %1828 = vmatpush1.bf16.msra.mxu0 0
    %1829 = vmatprep.subr.bf16.mxu0 0
    %1830 = vmatpush1.bf16.msra.mxu0 %v1809
    %1831 = vmatprep.subr.bf16.mxu0 0
    %1832 = vmatpush1.bf16.msra.mxu0 %v1808
    %1833 = vmatprep.subr.bf16.mxu0 0
    %1834 = vmatpush1.bf16.msra.mxu0 %v1807
    %1835 = vmatprep.subr.bf16.mxu0 0
    %1836 = vmatpush1.bf16.msra.mxu0 %v1806
    %1837 = vmatprep.subr.bf16.mxu0 0
    %1838 = vmatpush2.bf16.msra.mxu0 0
    %1839 = vmatprep.subr.bf16.mxu0 0
    %1840 = vmatpush2.bf16.msra.mxu0 0
    %1841 = vmatprep.subr.bf16.mxu0 0
    %1842 = vmatpush2.bf16.msra.mxu0 0
    %1843 = vmatprep.subr.bf16.mxu0 0
    %1844 = vmatpush2.bf16.msra.mxu0 0
    %1845 = vmatprep.subr.bf16.mxu0 0
    %1846 = vmatpush2.bf16.msra.mxu0 0
    %1847 = vmatprep.subr.bf16.mxu0 0
    %1848 = vmatpush2.bf16.msra.mxu0 0
    %1849 = vmatprep.subr.bf16.mxu0 0
    %1850 = vmatpush2.bf16.msra.mxu0 0
    %1851 = vmatprep.subr.bf16.mxu0 0
    %1852 = vmatpush2.bf16.msra.mxu0 0
    %1853 = vmatprep.mubr.bf16.mxu0 0
    %1854 = vmatmul.mubr.bf16.gmra.mxu0 %v1816
    %v1855 = vpop.f32.mrf.mxu0
    %v1856 = vadd.f32 %v1789, %v1855
    %v1857 = vpop.f32.mrf.mxu0
    %v1858 = vpop.f32.mrf.mxu0
    %v1859 = vadd.f32 %v1789, %v1858
    %v1860 = vpop.f32.mrf.mxu0
    %1861 = vmatprep.mubr.bf16.mxu0 0
    %1862 = vmatmul.mubr.bf16.gmra.mxu0 %v1819
    %v1863 = vpop.f32.mrf.mxu0
    %v1864 = vadd.f32 %v1789, %v1863
    %v1865 = vpop.f32.mrf.mxu0
    %v1866 = vpop.f32.mrf.mxu0
    %v1867 = vadd.f32 %v1789, %v1866
    %v1868 = vpop.f32.mrf.mxu0
    %1869 = vdwg.mxu0
    %v1870 = vadd.f32 %v1703, %v1856
    %v1871 = vadd.f32 %v1704, %v1859
    %v1872 = vadd.f32 %v1705, %v1864
    %v1873 = vadd.f32 %v1706, %v1867
    %v1874 = vsel %vm242, %v1870, 0.0
    %1875 = vadd.xlane.f32.xlu0 %v1874
    %v1876 = vpop.xlane.xlu0 %1875
    %v1877 = vsel %vm242, %v1871, 0.0
    %1878 = vadd.xlane.f32.xlu0 %v1877
    %v1879 = vpop.xlane.xlu0 %1878
    %v1880 = vsel %vm242, %v1872, 0.0
    %1881 = vadd.xlane.f32.xlu0 %v1880
    %v1882 = vpop.xlane.xlu0 %1881
    %v1883 = vsel %vm242, %v1873, 0.0
    %1884 = vadd.xlane.f32.xlu0 %v1883
    %v1885 = vpop.xlane.xlu0 %1884
    %v1886 = vmul.f32 %v1876, %v1650
    %v1887 = vmul.f32 %v1879, %v1650
    %v1888 = vmul.f32 %v1882, %v1650
    %v1889 = vmul.f32 %v1885, %v1650
    %v1890 = vsub.f32 %v1870, %v1886
    %v1891 = vsub.f32 %v1871, %v1887
    %v1892 = vsub.f32 %v1872, %v1888
    %v1893 = vsub.f32 %v1873, %v1889
    %v1894 = vmul.f32 %v1890, %v1890
    %v1895 = vmul.f32 %v1891, %v1891
    %v1896 = vmul.f32 %v1892, %v1892
    %v1897 = vmul.f32 %v1893, %v1893
    %v1898 = vsel %vm242, %v1894, 0.0
    %1899 = vadd.xlane.f32.xlu0 %v1898
    %v1900 = vpop.xlane.xlu0 %1899
    %v1901 = vsel %vm242, %v1895, 0.0
    %1902 = vadd.xlane.f32.xlu0 %v1901
    %v1903 = vpop.xlane.xlu0 %1902
    %v1904 = vsel %vm242, %v1896, 0.0
    %1905 = vadd.xlane.f32.xlu0 %v1904
    %v1906 = vpop.xlane.xlu0 %1905
    %v1907 = vsel %vm242, %v1897, 0.0
    %1908 = vadd.xlane.f32.xlu0 %v1907
    %v1909 = vpop.xlane.xlu0 %1908
    %v1910 = vmul.f32 %v1900, %v1650
    %v1911 = vmul.f32 %v1903, %v1650
    %v1912 = vmul.f32 %v1906, %v1650
    %v1913 = vmul.f32 %v1909, %v1650
    %v1914 = vadd.f32 %v1910, 1e-05
    %v1915 = vadd.f32 %v1911, 1e-05
    %v1916 = vadd.f32 %v1912, 1e-05
    %v1917 = vadd.f32 %v1913, 1e-05
    %v1918 = vrsqrt.pop %v1914
    %v1919 = vrsqrt.pop %v1915
    %v1920 = vrsqrt.pop %v1916
    %v1921 = vrsqrt.pop %v1917
    %v1922 = vmul.f32 %v1890, %v1918
    %v1923 = vmul.f32 %v1891, %v1919
    %v1924 = vmul.f32 %v1892, %v1920
    %v1925 = vmul.f32 %v1893, %v1921
    %v1926 = vlaneseq
    %v1927 = vshrl.u32 %v1926, 7
    %v1928 = vsub.s32 0, %v1927
    %v1929 = vrot.slane %v275, %v1928
    %v1930 = vmul.f32 %v1922, %v1929
    %v1931 = vmul.f32 %v1923, %v1929
    %v1932 = vmul.f32 %v1924, %v1929
    %v1933 = vmul.f32 %v1925, %v1929
    %v1934 = vlaneseq
    %v1935 = vshrl.u32 %v1934, 7
    %v1936 = vsub.s32 0, %v1935
    %v1937 = vrot.slane %v276, %v1936
    %v1938 = vadd.f32 %v1930, %v1937
    %v1939 = vadd.f32 %v1931, %v1937
    %v1940 = vadd.f32 %v1932, %v1937
    %v1941 = vadd.f32 %v1933, %v1937
    %s1942 = scalar_lea.vmem %s4, 16
    %v1943 = vld [vmem:[%s1942] sm:$0xf]
    %v1944 = vld [vmem:[%s1942 + $0x4] sm:$0xf]
    %v1945 = vld [vmem:[%s1942 + $0x8] sm:$0xf]
    %v1946 = vld [vmem:[%s1942 + $0xc] sm:$0xf]
    %s1947 = scalar_lea.vmem %s6, 16
    %v1948 = vld [vmem:[%s1947] sm:$0xf]
    %v1949 = vld [vmem:[%s1947 + $0x4] sm:$0xf]
    %v1950 = vld [vmem:[%s1947 + $0x8] sm:$0xf]
    %v1951 = vld [vmem:[%s1947 + $0xc] sm:$0xf]
    %s1952 = scalar_lea.vmem %s8, 16
    %v1953 = vld [vmem:[%s1952] sm:$0xf]
    %v1954 = vld [vmem:[%s1952 + $0x4] sm:$0xf]
    %v1955 = vld [vmem:[%s1952 + $0x8] sm:$0xf]
    %v1956 = vld [vmem:[%s1952 + $0xc] sm:$0xf]
    %v1957 = vld [vmem:[#allocation8 + $0x1] sm:$0x1]
    %v1958 = vld [vmem:[#allocation9 + $0x1] sm:$0x1]
    %v1959 = vld [vmem:[#allocation11 + $0x1] sm:$0x1]
    %s1960 = scalar_lea.vmem [#allocation12], 16
    %v1961 = vld [vmem:[%s1960] sm:$0xf]
    %v1962 = vld [vmem:[%s1960 + $0x4] sm:$0xf]
    %v1963 = vld [vmem:[%s1960 + $0x8] sm:$0xf]
    %v1964 = vld [vmem:[%s1960 + $0xc] sm:$0xf]
    %v1965 = vld [vmem:[%s11 + $0x1] sm:$0x1]
    %v1966 = vld [vmem:[%s12 + $0x1] sm:$0x1]
    %v1967 = vld [vmem:[#allocation14 + $0x1] sm:$0x1]
    %v1968 = vld [vmem:[%s14 + $0x1] sm:$0x1]
    %v1969 = vld [vmem:[#allocation15 + $0x1] sm:$0x1]
    %s1970 = scalar_lea.vmem [#allocation17], 16
    %v1971 = vld [vmem:[%s1970] sm:$0xf]
    %v1972 = vld [vmem:[%s1970 + $0x4] sm:$0xf]
    %v1973 = vld [vmem:[%s1970 + $0x8] sm:$0xf]
    %v1974 = vld [vmem:[%s1970 + $0xc] sm:$0xf]
    %v1975 = vld [vmem:[#allocation18 + $0x1] sm:$0x1]
    %s1976 = scalar_lea.vmem %s18, 32
    %v1977 = vld [vmem:[%s1976] sm:$0xf]
    %v1978 = vld [vmem:[%s1976 + $0x4] sm:$0xf]
    %v1979 = vld [vmem:[%s1976 + $0x8] sm:$0xf]
    %v1980 = vld [vmem:[%s1976 + $0xc] sm:$0xf]
    %v1981 = vld [vmem:[%s1976 + $0x10] sm:$0xf]
    %v1982 = vld [vmem:[%s1976 + $0x14] sm:$0xf]
    %v1983 = vld [vmem:[%s1976 + $0x18] sm:$0xf]
    %v1984 = vld [vmem:[%s1976 + $0x1c] sm:$0xf]
    %v1985 = vld [vmem:[#allocation20 + $0x1] sm:$0x1]
    %v1986 = vpack.c.bf16 %v1939, %v1938
    %v1987 = vpack.c.bf16 %v1941, %v1940
    %v1988 = vlaneseq
    %v1989 = vshrl.u32 %v1988, 7
    %v1990 = vsub.s32 0, %v1989
    %v1991 = vrot.slane %v1957, %v1990
    %v1996 = vunpack.c.l.b16 %v1943
    %v1997 = vunpack.c.l.b16 %v1944
    %v1998 = vunpack.c.l.b16 %v1945
    %v1999 = vunpack.c.l.b16 %v1946
    %v2000 = vpack.c.b16 %v1997, %v1996
    %v2001 = vpack.c.b16 %v1999, %v1998
    %v2005 = vsel %vm242, %v1986, 0
    %v2008 = vsel %vm242, %v1987, 0
    %2010 = vmatprep.subr.bf16.mxu0 0
    %2011 = vmatpush1.bf16.msra.mxu0 0
    %2012 = vmatprep.subr.bf16.mxu0 0
    %2013 = vmatpush1.bf16.msra.mxu0 0
    %2014 = vmatprep.subr.bf16.mxu0 0
    %2015 = vmatpush1.bf16.msra.mxu0 0
    %2016 = vmatprep.subr.bf16.mxu0 0
    %2017 = vmatpush1.bf16.msra.mxu0 0
    %2018 = vmatprep.subr.bf16.mxu0 0
    %2019 = vmatpush1.bf16.msra.mxu0 0
    %2020 = vmatprep.subr.bf16.mxu0 0
    %2021 = vmatpush1.bf16.msra.mxu0 0
    %2022 = vmatprep.subr.bf16.mxu0 0
    %2023 = vmatpush1.bf16.msra.mxu0 %v2001
    %2024 = vmatprep.subr.bf16.mxu0 0
    %2025 = vmatpush1.bf16.msra.mxu0 %v2000
    %2026 = vmatprep.subr.bf16.mxu0 0
    %2027 = vmatpush2.bf16.msra.mxu0 0
    %2028 = vmatprep.subr.bf16.mxu0 0
    %2029 = vmatpush2.bf16.msra.mxu0 0
    %2030 = vmatprep.subr.bf16.mxu0 0
    %2031 = vmatpush2.bf16.msra.mxu0 0
    %2032 = vmatprep.subr.bf16.mxu0 0
    %2033 = vmatpush2.bf16.msra.mxu0 0
    %2034 = vmatprep.subr.bf16.mxu0 0
    %2035 = vmatpush2.bf16.msra.mxu0 0
    %2036 = vmatprep.subr.bf16.mxu0 0
    %2037 = vmatpush2.bf16.msra.mxu0 0
    %2038 = vmatprep.subr.bf16.mxu0 0
    %2039 = vmatpush2.bf16.msra.mxu0 0
    %2040 = vmatprep.subr.bf16.mxu0 0
    %2041 = vmatpush2.bf16.msra.mxu0 0
    %2042 = vmatprep.mubr.bf16.mxu0 0
    %2043 = vmatmul.mubr.bf16.gmra.mxu0 %v2005
    %v2044 = vpop.f32.mrf.mxu0
    %v2045 = vadd.f32 %v1991, %v2044
    %v2046 = vpop.f32.mrf.mxu0
    %v2047 = vpop.f32.mrf.mxu0
    %v2048 = vadd.f32 %v1991, %v2047
    %v2049 = vpop.f32.mrf.mxu0
    %2050 = vmatprep.mubr.bf16.mxu0 0
    %2051 = vmatmul.mubr.bf16.gmra.mxu0 %v2008
    %v2052 = vpop.f32.mrf.mxu0
    %v2053 = vadd.f32 %v1991, %v2052
    %v2054 = vpop.f32.mrf.mxu0
    %v2055 = vpop.f32.mrf.mxu0
    %v2056 = vadd.f32 %v1991, %v2055
    %v2057 = vpop.f32.mrf.mxu0
    %2058 = vdwg.mxu0
    %v2059 = vlaneseq
    %v2060 = vshrl.u32 %v2059, 7
    %v2061 = vsub.s32 0, %v2060
    %v2062 = vrot.slane %v1958, %v2061
    %v2067 = vunpack.c.l.b16 %v1948
    %v2068 = vunpack.c.l.b16 %v1949
    %v2069 = vunpack.c.l.b16 %v1950
    %v2070 = vunpack.c.l.b16 %v1951
    %v2071 = vpack.c.b16 %v2068, %v2067
    %v2072 = vpack.c.b16 %v2070, %v2069
    %2075 = vmatprep.subr.bf16.mxu0 0
    %2076 = vmatpush1.bf16.msra.mxu0 0
    %2077 = vmatprep.subr.bf16.mxu0 0
    %2078 = vmatpush1.bf16.msra.mxu0 0
    %2079 = vmatprep.subr.bf16.mxu0 0
    %2080 = vmatpush1.bf16.msra.mxu0 0
    %2081 = vmatprep.subr.bf16.mxu0 0
    %2082 = vmatpush1.bf16.msra.mxu0 0
    %2083 = vmatprep.subr.bf16.mxu0 0
    %2084 = vmatpush1.bf16.msra.mxu0 0
    %2085 = vmatprep.subr.bf16.mxu0 0
    %2086 = vmatpush1.bf16.msra.mxu0 0
    %2087 = vmatprep.subr.bf16.mxu0 0
    %2088 = vmatpush1.bf16.msra.mxu0 %v2072
    %2089 = vmatprep.subr.bf16.mxu0 0
    %2090 = vmatpush1.bf16.msra.mxu0 %v2071
    %2091 = vmatprep.subr.bf16.mxu0 0
    %2092 = vmatpush2.bf16.msra.mxu0 0
    %2093 = vmatprep.subr.bf16.mxu0 0
    %2094 = vmatpush2.bf16.msra.mxu0 0
    %2095 = vmatprep.subr.bf16.mxu0 0
    %2096 = vmatpush2.bf16.msra.mxu0 0
    %2097 = vmatprep.subr.bf16.mxu0 0
    %2098 = vmatpush2.bf16.msra.mxu0 0
    %2099 = vmatprep.subr.bf16.mxu0 0
    %2100 = vmatpush2.bf16.msra.mxu0 0
    %2101 = vmatprep.subr.bf16.mxu0 0
    %2102 = vmatpush2.bf16.msra.mxu0 0
    %2103 = vmatprep.subr.bf16.mxu0 0
    %2104 = vmatpush2.bf16.msra.mxu0 0
    %2105 = vmatprep.subr.bf16.mxu0 0
    %2106 = vmatpush2.bf16.msra.mxu0 0
    %2107 = vmatprep.mubr.bf16.mxu0 0
    %2108 = vmatmul.mubr.bf16.gmra.mxu0 %v2005
    %v2109 = vpop.f32.mrf.mxu0
    %v2110 = vadd.f32 %v2062, %v2109
    %v2111 = vpop.f32.mrf.mxu0
    %v2112 = vpop.f32.mrf.mxu0
    %v2113 = vadd.f32 %v2062, %v2112
    %v2114 = vpop.f32.mrf.mxu0
    %2115 = vmatprep.mubr.bf16.mxu0 0
    %2116 = vmatmul.mubr.bf16.gmra.mxu0 %v2008
    %v2117 = vpop.f32.mrf.mxu0
    %v2118 = vadd.f32 %v2062, %v2117
    %v2119 = vpop.f32.mrf.mxu0
    %v2120 = vpop.f32.mrf.mxu0
    %v2121 = vadd.f32 %v2062, %v2120
    %v2122 = vpop.f32.mrf.mxu0
    %2123 = vdwg.mxu0
    %v2124 = vlaneseq
    %v2125 = vshrl.u32 %v2124, 7
    %v2126 = vsub.s32 0, %v2125
    %v2127 = vrot.slane %v1959, %v2126
    %v2132 = vunpack.c.l.b16 %v1953
    %v2133 = vunpack.c.l.b16 %v1954
    %v2134 = vunpack.c.l.b16 %v1955
    %v2135 = vunpack.c.l.b16 %v1956
    %v2136 = vpack.c.b16 %v2133, %v2132
    %v2137 = vpack.c.b16 %v2135, %v2134
    %2140 = vmatprep.subr.bf16.mxu0 0
    %2141 = vmatpush1.bf16.msra.mxu0 0
    %2142 = vmatprep.subr.bf16.mxu0 0
    %2143 = vmatpush1.bf16.msra.mxu0 0
    %2144 = vmatprep.subr.bf16.mxu0 0
    %2145 = vmatpush1.bf16.msra.mxu0 0
    %2146 = vmatprep.subr.bf16.mxu0 0
    %2147 = vmatpush1.bf16.msra.mxu0 0
    %2148 = vmatprep.subr.bf16.mxu0 0
    %2149 = vmatpush1.bf16.msra.mxu0 0
    %2150 = vmatprep.subr.bf16.mxu0 0
    %2151 = vmatpush1.bf16.msra.mxu0 0
    %2152 = vmatprep.subr.bf16.mxu0 0
    %2153 = vmatpush1.bf16.msra.mxu0 %v2137
    %2154 = vmatprep.subr.bf16.mxu0 0
    %2155 = vmatpush1.bf16.msra.mxu0 %v2136
    %2156 = vmatprep.subr.bf16.mxu0 0
    %2157 = vmatpush2.bf16.msra.mxu0 0
    %2158 = vmatprep.subr.bf16.mxu0 0
    %2159 = vmatpush2.bf16.msra.mxu0 0
    %2160 = vmatprep.subr.bf16.mxu0 0
    %2161 = vmatpush2.bf16.msra.mxu0 0
    %2162 = vmatprep.subr.bf16.mxu0 0
    %2163 = vmatpush2.bf16.msra.mxu0 0
    %2164 = vmatprep.subr.bf16.mxu0 0
    %2165 = vmatpush2.bf16.msra.mxu0 0
    %2166 = vmatprep.subr.bf16.mxu0 0
    %2167 = vmatpush2.bf16.msra.mxu0 0
    %2168 = vmatprep.subr.bf16.mxu0 0
    %2169 = vmatpush2.bf16.msra.mxu0 0
    %2170 = vmatprep.subr.bf16.mxu0 0
    %2171 = vmatpush2.bf16.msra.mxu0 0
    %2172 = vmatprep.mubr.bf16.mxu0 0
    %2173 = vmatmul.mubr.bf16.gmra.mxu0 %v2005
    %v2174 = vpop.f32.mrf.mxu0
    %v2175 = vadd.f32 %v2127, %v2174
    %v2176 = vpop.f32.mrf.mxu0
    %v2177 = vpop.f32.mrf.mxu0
    %v2178 = vadd.f32 %v2127, %v2177
    %v2179 = vpop.f32.mrf.mxu0
    %2180 = vmatprep.mubr.bf16.mxu0 0
    %2181 = vmatmul.mubr.bf16.gmra.mxu0 %v2008
    %v2182 = vpop.f32.mrf.mxu0
    %v2183 = vadd.f32 %v2127, %v2182
    %v2184 = vpop.f32.mrf.mxu0
    %v2185 = vpop.f32.mrf.mxu0
    %v2186 = vadd.f32 %v2127, %v2185
    %v2187 = vpop.f32.mrf.mxu0
    %2188 = vdwg.mxu0
    %v2189 = vpack.c.bf16 %v2048, %v2045
    %v2190 = vpack.c.bf16 %v2056, %v2053
    %v2191 = vpack.c.bf16 %v2113, %v2110
    %v2192 = vpack.c.bf16 %v2121, %v2118
    %v2193 = vpack.c.bf16 %v2178, %v2175
    %v2194 = vpack.c.bf16 %v2186, %v2183
    %v2196 = vsel %vm500, %v2189, 0
    %v2199 = vsel %vm500, %v2191, 0
    %2201 = vmatprep.subr.bf16.mxu0 0
    %2202 = vmatpush1.bf16.xpose.msra.mxu0 0
    %2203 = vmatprep.subr.bf16.mxu0 0
    %2204 = vmatpush1.bf16.xpose.msra.mxu0 0
    %2205 = vmatprep.subr.bf16.mxu0 0
    %2206 = vmatpush1.bf16.xpose.msra.mxu0 0
    %2207 = vmatprep.subr.bf16.mxu0 0
    %2208 = vmatpush1.bf16.xpose.msra.mxu0 0
    %2209 = vmatprep.subr.bf16.mxu0 0
    %2210 = vmatpush1.bf16.xpose.msra.mxu0 0
    %2211 = vmatprep.subr.bf16.mxu0 0
    %2212 = vmatpush1.bf16.xpose.msra.mxu0 0
    %2213 = vmatprep.subr.bf16.mxu0 0
    %2214 = vmatpush1.bf16.xpose.msra.mxu0 0
    %2215 = vmatprep.subr.bf16.mxu0 0
    %2216 = vmatpush1.bf16.xpose.msra.mxu0 %v2199
    %2217 = vmatprep.subr.bf16.mxu0 0
    %2218 = vmatpush2.bf16.xpose.msra.mxu0 0
    %2219 = vmatprep.subr.bf16.mxu0 0
    %2220 = vmatpush2.bf16.xpose.msra.mxu0 0
    %2221 = vmatprep.subr.bf16.mxu0 0
    %2222 = vmatpush2.bf16.xpose.msra.mxu0 0
    %2223 = vmatprep.subr.bf16.mxu0 0
    %2224 = vmatpush2.bf16.xpose.msra.mxu0 0
    %2225 = vmatprep.subr.bf16.mxu0 0
    %2226 = vmatpush2.bf16.xpose.msra.mxu0 0
    %2227 = vmatprep.subr.bf16.mxu0 0
    %2228 = vmatpush2.bf16.xpose.msra.mxu0 0
    %2229 = vmatprep.subr.bf16.mxu0 0
    %2230 = vmatpush2.bf16.xpose.msra.mxu0 0
    %2231 = vmatprep.subr.bf16.mxu0 0
    %2232 = vmatpush2.bf16.xpose.msra.mxu0 0
    %2233 = vmatprep.mubr.bf16.mxu0 0
    %2234 = vmatmul.mubr.bf16.gmra.mxu0 %v2196
    %v2235 = vpop.f32.mrf.mxu0
    %v2236 = vadd.f32 0.0, %v2235
    %v2237 = vpop.f32.mrf.mxu0
    %v2238 = vpop.f32.mrf.mxu0
    %v2239 = vadd.f32 0.0, %v2238
    %v2240 = vpop.f32.mrf.mxu0
    %2241 = vdwg.mxu0
    %v2243 = vsel %vm500, %v2190, 0
    %v2246 = vsel %vm500, %v2192, 0
    %2248 = vmatprep.subr.bf16.mxu0 0
    %2249 = vmatpush1.bf16.xpose.msra.mxu0 0
    %2250 = vmatprep.subr.bf16.mxu0 0
    %2251 = vmatpush1.bf16.xpose.msra.mxu0 0
    %2252 = vmatprep.subr.bf16.mxu0 0
    %2253 = vmatpush1.bf16.xpose.msra.mxu0 0
    %2254 = vmatprep.subr.bf16.mxu0 0
    %2255 = vmatpush1.bf16.xpose.msra.mxu0 0
    %2256 = vmatprep.subr.bf16.mxu0 0
    %2257 = vmatpush1.bf16.xpose.msra.mxu0 0
    %2258 = vmatprep.subr.bf16.mxu0 0
    %2259 = vmatpush1.bf16.xpose.msra.mxu0 0
    %2260 = vmatprep.subr.bf16.mxu0 0
    %2261 = vmatpush1.bf16.xpose.msra.mxu0 0
    %2262 = vmatprep.subr.bf16.mxu0 0
    %2263 = vmatpush1.bf16.xpose.msra.mxu0 %v2246
    %2264 = vmatprep.subr.bf16.mxu0 0
    %2265 = vmatpush2.bf16.xpose.msra.mxu0 0
    %2266 = vmatprep.subr.bf16.mxu0 0
    %2267 = vmatpush2.bf16.xpose.msra.mxu0 0
    %2268 = vmatprep.subr.bf16.mxu0 0
    %2269 = vmatpush2.bf16.xpose.msra.mxu0 0
    %2270 = vmatprep.subr.bf16.mxu0 0
    %2271 = vmatpush2.bf16.xpose.msra.mxu0 0
    %2272 = vmatprep.subr.bf16.mxu0 0
    %2273 = vmatpush2.bf16.xpose.msra.mxu0 0
    %2274 = vmatprep.subr.bf16.mxu0 0
    %2275 = vmatpush2.bf16.xpose.msra.mxu0 0
    %2276 = vmatprep.subr.bf16.mxu0 0
    %2277 = vmatpush2.bf16.xpose.msra.mxu0 0
    %2278 = vmatprep.subr.bf16.mxu0 0
    %2279 = vmatpush2.bf16.xpose.msra.mxu0 0
    %2280 = vmatprep.mubr.bf16.mxu0 0
    %2281 = vmatmul.mubr.bf16.gmra.mxu0 %v2243
    %v2282 = vpop.f32.mrf.mxu0
    %v2283 = vadd.f32 0.0, %v2282
    %v2284 = vpop.f32.mrf.mxu0
    %v2285 = vpop.f32.mrf.mxu0
    %v2286 = vadd.f32 0.0, %v2285
    %v2287 = vpop.f32.mrf.mxu0
    %2288 = vdwg.mxu0
    %v2289 = vmul.f32 %v2236, 0.35355338
    %v2290 = vmul.f32 %v2239, 0.35355338
    %v2291 = vmul.f32 %v2283, 0.35355338
    %v2292 = vmul.f32 %v2286, 0.35355338
    %v2293 = vadd.f32 %v2289, %v603
    %v2294 = vadd.f32 %v2290, %v603
    %v2295 = vadd.f32 %v2291, %v603
    %v2296 = vadd.f32 %v2292, %v603
    %v2297 = vsel %vm609, %v2293, -inf
    %2298 = vmax.xlane.f32.xlu0 %v2297
    %v2299 = vpop.xlane.xlu0 %2298
    %v2300 = vsel %vm609, %v2294, -inf
    %2301 = vmax.xlane.f32.xlu0 %v2300
    %v2302 = vpop.xlane.xlu0 %2301
    %v2303 = vsel %vm609, %v2295, -inf
    %2304 = vmax.xlane.f32.xlu0 %v2303
    %v2305 = vpop.xlane.xlu0 %2304
    %v2306 = vsel %vm609, %v2296, -inf
    %2307 = vmax.xlane.f32.xlu0 %v2306
    %v2308 = vpop.xlane.xlu0 %2307
    %v2309 = vsub.f32 %v2293, %v2299
    %v2310 = vsub.f32 %v2294, %v2302
    %v2311 = vsub.f32 %v2295, %v2305
    %v2312 = vsub.f32 %v2296, %v2308
    %v2313 = vmul.f32 %v2309, 1.442695
    %v2314 = vpow.pop %v2313
    %v2315 = vmul.f32 %v2310, 1.442695
    %v2316 = vpow.pop %v2315
    %v2317 = vmul.f32 %v2311, 1.442695
    %v2318 = vpow.pop %v2317
    %v2319 = vmul.f32 %v2312, 1.442695
    %v2320 = vpow.pop %v2319
    %v2321 = vsel %vm609, %v2314, 0.0
    %2322 = vadd.xlane.f32.xlu0 %v2321
    %v2323 = vpop.xlane.xlu0 %2322
    %v2324 = vsel %vm609, %v2316, 0.0
    %2325 = vadd.xlane.f32.xlu0 %v2324
    %v2326 = vpop.xlane.xlu0 %2325
    %v2327 = vsel %vm609, %v2318, 0.0
    %2328 = vadd.xlane.f32.xlu0 %v2327
    %v2329 = vpop.xlane.xlu0 %2328
    %v2330 = vsel %vm609, %v2320, 0.0
    %2331 = vadd.xlane.f32.xlu0 %v2330
    %v2332 = vpop.xlane.xlu0 %2331
    %v2333 = vrcp.pop %v2323
    %v2334 = vrcp.pop %v2326
    %v2335 = vrcp.pop %v2329
    %v2336 = vrcp.pop %v2332
    %v2337 = vmul.f32 %v2314, %v2333
    %v2338 = vmul.f32 %v2316, %v2334
    %v2339 = vmul.f32 %v2318, %v2335
    %v2340 = vmul.f32 %v2320, %v2336
    %v2341 = vpack.c.bf16 %v2338, %v2337
    %v2342 = vpack.c.bf16 %v2340, %v2339
    %v2344 = vsel %vm609, %v2341, 0
    %2346 = vmatprep.subr.bf16.mxu0 0
    %2347 = vmatpush1.bf16.msra.mxu0 0
    %2348 = vmatprep.subr.bf16.mxu0 0
    %2349 = vmatpush1.bf16.msra.mxu0 0
    %2350 = vmatprep.subr.bf16.mxu0 0
    %2351 = vmatpush1.bf16.msra.mxu0 0
    %2352 = vmatprep.subr.bf16.mxu0 0
    %2353 = vmatpush1.bf16.msra.mxu0 0
    %2354 = vmatprep.subr.bf16.mxu0 0
    %2355 = vmatpush1.bf16.msra.mxu0 0
    %2356 = vmatprep.subr.bf16.mxu0 0
    %2357 = vmatpush1.bf16.msra.mxu0 0
    %2358 = vmatprep.subr.bf16.mxu0 0
    %2359 = vmatpush1.bf16.msra.mxu0 0
    %2360 = vmatprep.subr.bf16.mxu0 0
    %2361 = vmatpush1.bf16.msra.mxu0 %v2193
    %2362 = vmatprep.subr.bf16.mxu0 0
    %2363 = vmatpush2.bf16.msra.mxu0 0
    %2364 = vmatprep.subr.bf16.mxu0 0
    %2365 = vmatpush2.bf16.msra.mxu0 0
    %2366 = vmatprep.subr.bf16.mxu0 0
    %2367 = vmatpush2.bf16.msra.mxu0 0
    %2368 = vmatprep.subr.bf16.mxu0 0
    %2369 = vmatpush2.bf16.msra.mxu0 0
    %2370 = vmatprep.subr.bf16.mxu0 0
    %2371 = vmatpush2.bf16.msra.mxu0 0
    %2372 = vmatprep.subr.bf16.mxu0 0
    %2373 = vmatpush2.bf16.msra.mxu0 0
    %2374 = vmatprep.subr.bf16.mxu0 0
    %2375 = vmatpush2.bf16.msra.mxu0 0
    %2376 = vmatprep.subr.bf16.mxu0 0
    %2377 = vmatpush2.bf16.msra.mxu0 0
    %2378 = vmatprep.mubr.bf16.mxu0 0
    %2379 = vmatmul.mubr.bf16.gmra.mxu0 %v2344
    %v2380 = vpop.f32.mrf.mxu0
    %v2381 = vadd.f32 0.0, %v2380
    %v2382 = vpop.f32.mrf.mxu0
    %v2383 = vpop.f32.mrf.mxu0
    %v2384 = vadd.f32 0.0, %v2383
    %v2385 = vpop.f32.mrf.mxu0
    %2386 = vdwg.mxu0
    %v2388 = vsel %vm609, %v2342, 0
    %2390 = vmatprep.subr.bf16.mxu0 0
    %2391 = vmatpush1.bf16.msra.mxu0 0
    %2392 = vmatprep.subr.bf16.mxu0 0
    %2393 = vmatpush1.bf16.msra.mxu0 0
    %2394 = vmatprep.subr.bf16.mxu0 0
    %2395 = vmatpush1.bf16.msra.mxu0 0
    %2396 = vmatprep.subr.bf16.mxu0 0
    %2397 = vmatpush1.bf16.msra.mxu0 0
    %2398 = vmatprep.subr.bf16.mxu0 0
    %2399 = vmatpush1.bf16.msra.mxu0 0
    %2400 = vmatprep.subr.bf16.mxu0 0
    %2401 = vmatpush1.bf16.msra.mxu0 0
    %2402 = vmatprep.subr.bf16.mxu0 0
    %2403 = vmatpush1.bf16.msra.mxu0 0
    %2404 = vmatprep.subr.bf16.mxu0 0
    %2405 = vmatpush1.bf16.msra.mxu0 %v2194
    %2406 = vmatprep.subr.bf16.mxu0 0
    %2407 = vmatpush2.bf16.msra.mxu0 0
    %2408 = vmatprep.subr.bf16.mxu0 0
    %2409 = vmatpush2.bf16.msra.mxu0 0
    %2410 = vmatprep.subr.bf16.mxu0 0
    %2411 = vmatpush2.bf16.msra.mxu0 0
    %2412 = vmatprep.subr.bf16.mxu0 0
    %2413 = vmatpush2.bf16.msra.mxu0 0
    %2414 = vmatprep.subr.bf16.mxu0 0
    %2415 = vmatpush2.bf16.msra.mxu0 0
    %2416 = vmatprep.subr.bf16.mxu0 0
    %2417 = vmatpush2.bf16.msra.mxu0 0
    %2418 = vmatprep.subr.bf16.mxu0 0
    %2419 = vmatpush2.bf16.msra.mxu0 0
    %2420 = vmatprep.subr.bf16.mxu0 0
    %2421 = vmatpush2.bf16.msra.mxu0 0
    %2422 = vmatprep.mubr.bf16.mxu0 0
    %2423 = vmatmul.mubr.bf16.gmra.mxu0 %v2388
    %v2424 = vpop.f32.mrf.mxu0
    %v2425 = vadd.f32 0.0, %v2424
    %v2426 = vpop.f32.mrf.mxu0
    %v2427 = vpop.f32.mrf.mxu0
    %v2428 = vadd.f32 0.0, %v2427
    %v2429 = vpop.f32.mrf.mxu0
    %2430 = vdwg.mxu0
    %2432 = vrot.lane.b32.xlu0 %v2189, 120
    %v2433 = vpop.permute.xlu0 %2432
    %2435 = vrot.lane.b32.xlu0 %v2191, 120
    %v2436 = vpop.permute.xlu0 %2435
    %v2438 = vsel %vm500, %v2433, 0
    %v2441 = vsel %vm500, %v2436, 0
    %2443 = vmatprep.subr.bf16.mxu0 0
    %2444 = vmatpush1.bf16.xpose.msra.mxu0 0
    %2445 = vmatprep.subr.bf16.mxu0 0
    %2446 = vmatpush1.bf16.xpose.msra.mxu0 0
    %2447 = vmatprep.subr.bf16.mxu0 0
    %2448 = vmatpush1.bf16.xpose.msra.mxu0 0
    %2449 = vmatprep.subr.bf16.mxu0 0
    %2450 = vmatpush1.bf16.xpose.msra.mxu0 0
    %2451 = vmatprep.subr.bf16.mxu0 0
    %2452 = vmatpush1.bf16.xpose.msra.mxu0 0
    %2453 = vmatprep.subr.bf16.mxu0 0
    %2454 = vmatpush1.bf16.xpose.msra.mxu0 0
    %2455 = vmatprep.subr.bf16.mxu0 0
    %2456 = vmatpush1.bf16.xpose.msra.mxu0 0
    %2457 = vmatprep.subr.bf16.mxu0 0
    %2458 = vmatpush1.bf16.xpose.msra.mxu0 %v2441
    %2459 = vmatprep.subr.bf16.mxu0 0
    %2460 = vmatpush2.bf16.xpose.msra.mxu0 0
    %2461 = vmatprep.subr.bf16.mxu0 0
    %2462 = vmatpush2.bf16.xpose.msra.mxu0 0
    %2463 = vmatprep.subr.bf16.mxu0 0
    %2464 = vmatpush2.bf16.xpose.msra.mxu0 0
    %2465 = vmatprep.subr.bf16.mxu0 0
    %2466 = vmatpush2.bf16.xpose.msra.mxu0 0
    %2467 = vmatprep.subr.bf16.mxu0 0
    %2468 = vmatpush2.bf16.xpose.msra.mxu0 0
    %2469 = vmatprep.subr.bf16.mxu0 0
    %2470 = vmatpush2.bf16.xpose.msra.mxu0 0
    %2471 = vmatprep.subr.bf16.mxu0 0
    %2472 = vmatpush2.bf16.xpose.msra.mxu0 0
    %2473 = vmatprep.subr.bf16.mxu0 0
    %2474 = vmatpush2.bf16.xpose.msra.mxu0 0
    %2475 = vmatprep.mubr.bf16.mxu0 0
    %2476 = vmatmul.mubr.bf16.gmra.mxu0 %v2438
    %v2477 = vpop.f32.mrf.mxu0
    %v2478 = vadd.f32 0.0, %v2477
    %v2479 = vpop.f32.mrf.mxu0
    %v2480 = vpop.f32.mrf.mxu0
    %v2481 = vadd.f32 0.0, %v2480
    %v2482 = vpop.f32.mrf.mxu0
    %2483 = vdwg.mxu0
    %2485 = vrot.lane.b32.xlu0 %v2190, 120
    %v2486 = vpop.permute.xlu0 %2485
    %2488 = vrot.lane.b32.xlu0 %v2192, 120
    %v2489 = vpop.permute.xlu0 %2488
    %v2491 = vsel %vm500, %v2486, 0
    %v2494 = vsel %vm500, %v2489, 0
    %2496 = vmatprep.subr.bf16.mxu0 0
    %2497 = vmatpush1.bf16.xpose.msra.mxu0 0
    %2498 = vmatprep.subr.bf16.mxu0 0
    %2499 = vmatpush1.bf16.xpose.msra.mxu0 0
    %2500 = vmatprep.subr.bf16.mxu0 0
    %2501 = vmatpush1.bf16.xpose.msra.mxu0 0
    %2502 = vmatprep.subr.bf16.mxu0 0
    %2503 = vmatpush1.bf16.xpose.msra.mxu0 0
    %2504 = vmatprep.subr.bf16.mxu0 0
    %2505 = vmatpush1.bf16.xpose.msra.mxu0 0
    %2506 = vmatprep.subr.bf16.mxu0 0
    %2507 = vmatpush1.bf16.xpose.msra.mxu0 0
    %2508 = vmatprep.subr.bf16.mxu0 0
    %2509 = vmatpush1.bf16.xpose.msra.mxu0 0
    %2510 = vmatprep.subr.bf16.mxu0 0
    %2511 = vmatpush1.bf16.xpose.msra.mxu0 %v2494
    %2512 = vmatprep.subr.bf16.mxu0 0
    %2513 = vmatpush2.bf16.xpose.msra.mxu0 0
    %2514 = vmatprep.subr.bf16.mxu0 0
    %2515 = vmatpush2.bf16.xpose.msra.mxu0 0
    %2516 = vmatprep.subr.bf16.mxu0 0
    %2517 = vmatpush2.bf16.xpose.msra.mxu0 0
    %2518 = vmatprep.subr.bf16.mxu0 0
    %2519 = vmatpush2.bf16.xpose.msra.mxu0 0
    %2520 = vmatprep.subr.bf16.mxu0 0
    %2521 = vmatpush2.bf16.xpose.msra.mxu0 0
    %2522 = vmatprep.subr.bf16.mxu0 0
    %2523 = vmatpush2.bf16.xpose.msra.mxu0 0
    %2524 = vmatprep.subr.bf16.mxu0 0
    %2525 = vmatpush2.bf16.xpose.msra.mxu0 0
    %2526 = vmatprep.subr.bf16.mxu0 0
    %2527 = vmatpush2.bf16.xpose.msra.mxu0 0
    %2528 = vmatprep.mubr.bf16.mxu0 0
    %2529 = vmatmul.mubr.bf16.gmra.mxu0 %v2491
    %v2530 = vpop.f32.mrf.mxu0
    %v2531 = vadd.f32 0.0, %v2530
    %v2532 = vpop.f32.mrf.mxu0
    %v2533 = vpop.f32.mrf.mxu0
    %v2534 = vadd.f32 0.0, %v2533
    %v2535 = vpop.f32.mrf.mxu0
    %2536 = vdwg.mxu0
    %v2537 = vmul.f32 %v2478, 0.35355338
    %v2538 = vmul.f32 %v2481, 0.35355338
    %v2539 = vmul.f32 %v2531, 0.35355338
    %v2540 = vmul.f32 %v2534, 0.35355338
    %v2541 = vadd.f32 %v2537, %v603
    %v2542 = vadd.f32 %v2538, %v603
    %v2543 = vadd.f32 %v2539, %v603
    %v2544 = vadd.f32 %v2540, %v603
    %v2545 = vsel %vm609, %v2541, -inf
    %2546 = vmax.xlane.f32.xlu0 %v2545
    %v2547 = vpop.xlane.xlu0 %2546
    %v2548 = vsel %vm609, %v2542, -inf
    %2549 = vmax.xlane.f32.xlu0 %v2548
    %v2550 = vpop.xlane.xlu0 %2549
    %v2551 = vsel %vm609, %v2543, -inf
    %2552 = vmax.xlane.f32.xlu0 %v2551
    %v2553 = vpop.xlane.xlu0 %2552
    %v2554 = vsel %vm609, %v2544, -inf
    %2555 = vmax.xlane.f32.xlu0 %v2554
    %v2556 = vpop.xlane.xlu0 %2555
    %v2557 = vsub.f32 %v2541, %v2547
    %v2558 = vsub.f32 %v2542, %v2550
    %v2559 = vsub.f32 %v2543, %v2553
    %v2560 = vsub.f32 %v2544, %v2556
    %v2561 = vmul.f32 %v2557, 1.442695
    %v2562 = vpow.pop %v2561
    %v2563 = vmul.f32 %v2558, 1.442695
    %v2564 = vpow.pop %v2563
    %v2565 = vmul.f32 %v2559, 1.442695
    %v2566 = vpow.pop %v2565
    %v2567 = vmul.f32 %v2560, 1.442695
    %v2568 = vpow.pop %v2567
    %v2569 = vsel %vm609, %v2562, 0.0
    %2570 = vadd.xlane.f32.xlu0 %v2569
    %v2571 = vpop.xlane.xlu0 %2570
    %v2572 = vsel %vm609, %v2564, 0.0
    %2573 = vadd.xlane.f32.xlu0 %v2572
    %v2574 = vpop.xlane.xlu0 %2573
    %v2575 = vsel %vm609, %v2566, 0.0
    %2576 = vadd.xlane.f32.xlu0 %v2575
    %v2577 = vpop.xlane.xlu0 %2576
    %v2578 = vsel %vm609, %v2568, 0.0
    %2579 = vadd.xlane.f32.xlu0 %v2578
    %v2580 = vpop.xlane.xlu0 %2579
    %v2581 = vrcp.pop %v2571
    %v2582 = vrcp.pop %v2574
    %v2583 = vrcp.pop %v2577
    %v2584 = vrcp.pop %v2580
    %v2585 = vmul.f32 %v2562, %v2581
    %v2586 = vmul.f32 %v2564, %v2582
    %v2587 = vmul.f32 %v2566, %v2583
    %v2588 = vmul.f32 %v2568, %v2584
    %v2589 = vpack.c.bf16 %v2586, %v2585
    %v2590 = vpack.c.bf16 %v2588, %v2587
    %2592 = vrot.lane.b32.xlu0 %v2193, 120
    %v2593 = vpop.permute.xlu0 %2592
    %v2596 = vsel %vm609, %v2589, 0
    %2598 = vmatprep.subr.bf16.mxu0 0
    %2599 = vmatpush1.bf16.msra.mxu0 0
    %2600 = vmatprep.subr.bf16.mxu0 0
    %2601 = vmatpush1.bf16.msra.mxu0 0
    %2602 = vmatprep.subr.bf16.mxu0 0
    %2603 = vmatpush1.bf16.msra.mxu0 0
    %2604 = vmatprep.subr.bf16.mxu0 0
    %2605 = vmatpush1.bf16.msra.mxu0 0
    %2606 = vmatprep.subr.bf16.mxu0 0
    %2607 = vmatpush1.bf16.msra.mxu0 0
    %2608 = vmatprep.subr.bf16.mxu0 0
    %2609 = vmatpush1.bf16.msra.mxu0 0
    %2610 = vmatprep.subr.bf16.mxu0 0
    %2611 = vmatpush1.bf16.msra.mxu0 0
    %2612 = vmatprep.subr.bf16.mxu0 0
    %2613 = vmatpush1.bf16.msra.mxu0 %v2593
    %2614 = vmatprep.subr.bf16.mxu0 0
    %2615 = vmatpush2.bf16.msra.mxu0 0
    %2616 = vmatprep.subr.bf16.mxu0 0
    %2617 = vmatpush2.bf16.msra.mxu0 0
    %2618 = vmatprep.subr.bf16.mxu0 0
    %2619 = vmatpush2.bf16.msra.mxu0 0
    %2620 = vmatprep.subr.bf16.mxu0 0
    %2621 = vmatpush2.bf16.msra.mxu0 0
    %2622 = vmatprep.subr.bf16.mxu0 0
    %2623 = vmatpush2.bf16.msra.mxu0 0
    %2624 = vmatprep.subr.bf16.mxu0 0
    %2625 = vmatpush2.bf16.msra.mxu0 0
    %2626 = vmatprep.subr.bf16.mxu0 0
    %2627 = vmatpush2.bf16.msra.mxu0 0
    %2628 = vmatprep.subr.bf16.mxu0 0
    %2629 = vmatpush2.bf16.msra.mxu0 0
    %2630 = vmatprep.mubr.bf16.mxu0 0
    %2631 = vmatmul.mubr.bf16.gmra.mxu0 %v2596
    %v2632 = vpop.f32.mrf.mxu0
    %v2633 = vadd.f32 0.0, %v2632
    %v2634 = vpop.f32.mrf.mxu0
    %v2635 = vpop.f32.mrf.mxu0
    %v2636 = vadd.f32 0.0, %v2635
    %v2637 = vpop.f32.mrf.mxu0
    %2638 = vdwg.mxu0
    %2640 = vrot.lane.b32.xlu0 %v2194, 120
    %v2641 = vpop.permute.xlu0 %2640
    %v2644 = vsel %vm609, %v2590, 0
    %2646 = vmatprep.subr.bf16.mxu0 0
    %2647 = vmatpush1.bf16.msra.mxu0 0
    %2648 = vmatprep.subr.bf16.mxu0 0
    %2649 = vmatpush1.bf16.msra.mxu0 0
    %2650 = vmatprep.subr.bf16.mxu0 0
    %2651 = vmatpush1.bf16.msra.mxu0 0
    %2652 = vmatprep.subr.bf16.mxu0 0
    %2653 = vmatpush1.bf16.msra.mxu0 0
    %2654 = vmatprep.subr.bf16.mxu0 0
    %2655 = vmatpush1.bf16.msra.mxu0 0
    %2656 = vmatprep.subr.bf16.mxu0 0
    %2657 = vmatpush1.bf16.msra.mxu0 0
    %2658 = vmatprep.subr.bf16.mxu0 0
    %2659 = vmatpush1.bf16.msra.mxu0 0
    %2660 = vmatprep.subr.bf16.mxu0 0
    %2661 = vmatpush1.bf16.msra.mxu0 %v2641
    %2662 = vmatprep.subr.bf16.mxu0 0
    %2663 = vmatpush2.bf16.msra.mxu0 0
    %2664 = vmatprep.subr.bf16.mxu0 0
    %2665 = vmatpush2.bf16.msra.mxu0 0
    %2666 = vmatprep.subr.bf16.mxu0 0
    %2667 = vmatpush2.bf16.msra.mxu0 0
    %2668 = vmatprep.subr.bf16.mxu0 0
    %2669 = vmatpush2.bf16.msra.mxu0 0
    %2670 = vmatprep.subr.bf16.mxu0 0
    %2671 = vmatpush2.bf16.msra.mxu0 0
    %2672 = vmatprep.subr.bf16.mxu0 0
    %2673 = vmatpush2.bf16.msra.mxu0 0
    %2674 = vmatprep.subr.bf16.mxu0 0
    %2675 = vmatpush2.bf16.msra.mxu0 0
    %2676 = vmatprep.subr.bf16.mxu0 0
    %2677 = vmatpush2.bf16.msra.mxu0 0
    %2678 = vmatprep.mubr.bf16.mxu0 0
    %2679 = vmatmul.mubr.bf16.gmra.mxu0 %v2644
    %v2680 = vpop.f32.mrf.mxu0
    %v2681 = vadd.f32 0.0, %v2680
    %v2682 = vpop.f32.mrf.mxu0
    %v2683 = vpop.f32.mrf.mxu0
    %v2684 = vadd.f32 0.0, %v2683
    %v2685 = vpop.f32.mrf.mxu0
    %2686 = vdwg.mxu0
    %2687 = vrot.lane.b32.xlu0 %v2189, 112
    %v2688 = vpop.permute.xlu0 %2687
    %2689 = vrot.lane.b32.xlu0 %v2191, 112
    %v2690 = vpop.permute.xlu0 %2689
    %v2692 = vsel %vm500, %v2688, 0
    %v2695 = vsel %vm500, %v2690, 0
    %2697 = vmatprep.subr.bf16.mxu0 0
    %2698 = vmatpush1.bf16.xpose.msra.mxu0 0
    %2699 = vmatprep.subr.bf16.mxu0 0
    %2700 = vmatpush1.bf16.xpose.msra.mxu0 0
    %2701 = vmatprep.subr.bf16.mxu0 0
    %2702 = vmatpush1.bf16.xpose.msra.mxu0 0
    %2703 = vmatprep.subr.bf16.mxu0 0
    %2704 = vmatpush1.bf16.xpose.msra.mxu0 0
    %2705 = vmatprep.subr.bf16.mxu0 0
    %2706 = vmatpush1.bf16.xpose.msra.mxu0 0
    %2707 = vmatprep.subr.bf16.mxu0 0
    %2708 = vmatpush1.bf16.xpose.msra.mxu0 0
    %2709 = vmatprep.subr.bf16.mxu0 0
    %2710 = vmatpush1.bf16.xpose.msra.mxu0 0
    %2711 = vmatprep.subr.bf16.mxu0 0
    %2712 = vmatpush1.bf16.xpose.msra.mxu0 %v2695
    %2713 = vmatprep.subr.bf16.mxu0 0
    %2714 = vmatpush2.bf16.xpose.msra.mxu0 0
    %2715 = vmatprep.subr.bf16.mxu0 0
    %2716 = vmatpush2.bf16.xpose.msra.mxu0 0
    %2717 = vmatprep.subr.bf16.mxu0 0
    %2718 = vmatpush2.bf16.xpose.msra.mxu0 0
    %2719 = vmatprep.subr.bf16.mxu0 0
    %2720 = vmatpush2.bf16.xpose.msra.mxu0 0
    %2721 = vmatprep.subr.bf16.mxu0 0
    %2722 = vmatpush2.bf16.xpose.msra.mxu0 0
    %2723 = vmatprep.subr.bf16.mxu0 0
    %2724 = vmatpush2.bf16.xpose.msra.mxu0 0
    %2725 = vmatprep.subr.bf16.mxu0 0
    %2726 = vmatpush2.bf16.xpose.msra.mxu0 0
    %2727 = vmatprep.subr.bf16.mxu0 0
    %2728 = vmatpush2.bf16.xpose.msra.mxu0 0
    %2729 = vmatprep.mubr.bf16.mxu0 0
    %2730 = vmatmul.mubr.bf16.gmra.mxu0 %v2692
    %v2731 = vpop.f32.mrf.mxu0
    %v2732 = vadd.f32 0.0, %v2731
    %v2733 = vpop.f32.mrf.mxu0
    %v2734 = vpop.f32.mrf.mxu0
    %v2735 = vadd.f32 0.0, %v2734
    %v2736 = vpop.f32.mrf.mxu0
    %2737 = vdwg.mxu0
    %2738 = vrot.lane.b32.xlu0 %v2190, 112
    %v2739 = vpop.permute.xlu0 %2738
    %2740 = vrot.lane.b32.xlu0 %v2192, 112
    %v2741 = vpop.permute.xlu0 %2740
    %v2743 = vsel %vm500, %v2739, 0
    %v2746 = vsel %vm500, %v2741, 0
    %2748 = vmatprep.subr.bf16.mxu0 0
    %2749 = vmatpush1.bf16.xpose.msra.mxu0 0
    %2750 = vmatprep.subr.bf16.mxu0 0
    %2751 = vmatpush1.bf16.xpose.msra.mxu0 0
    %2752 = vmatprep.subr.bf16.mxu0 0
    %2753 = vmatpush1.bf16.xpose.msra.mxu0 0
    %2754 = vmatprep.subr.bf16.mxu0 0
    %2755 = vmatpush1.bf16.xpose.msra.mxu0 0
    %2756 = vmatprep.subr.bf16.mxu0 0
    %2757 = vmatpush1.bf16.xpose.msra.mxu0 0
    %2758 = vmatprep.subr.bf16.mxu0 0
    %2759 = vmatpush1.bf16.xpose.msra.mxu0 0
    %2760 = vmatprep.subr.bf16.mxu0 0
    %2761 = vmatpush1.bf16.xpose.msra.mxu0 0
    %2762 = vmatprep.subr.bf16.mxu0 0
    %2763 = vmatpush1.bf16.xpose.msra.mxu0 %v2746
    %2764 = vmatprep.subr.bf16.mxu0 0
    %2765 = vmatpush2.bf16.xpose.msra.mxu0 0
    %2766 = vmatprep.subr.bf16.mxu0 0
    %2767 = vmatpush2.bf16.xpose.msra.mxu0 0
    %2768 = vmatprep.subr.bf16.mxu0 0
    %2769 = vmatpush2.bf16.xpose.msra.mxu0 0
    %2770 = vmatprep.subr.bf16.mxu0 0
    %2771 = vmatpush2.bf16.xpose.msra.mxu0 0
    %2772 = vmatprep.subr.bf16.mxu0 0
    %2773 = vmatpush2.bf16.xpose.msra.mxu0 0
    %2774 = vmatprep.subr.bf16.mxu0 0
    %2775 = vmatpush2.bf16.xpose.msra.mxu0 0
    %2776 = vmatprep.subr.bf16.mxu0 0
    %2777 = vmatpush2.bf16.xpose.msra.mxu0 0
    %2778 = vmatprep.subr.bf16.mxu0 0
    %2779 = vmatpush2.bf16.xpose.msra.mxu0 0
    %2780 = vmatprep.mubr.bf16.mxu0 0
    %2781 = vmatmul.mubr.bf16.gmra.mxu0 %v2743
    %v2782 = vpop.f32.mrf.mxu0
    %v2783 = vadd.f32 0.0, %v2782
    %v2784 = vpop.f32.mrf.mxu0
    %v2785 = vpop.f32.mrf.mxu0
    %v2786 = vadd.f32 0.0, %v2785
    %v2787 = vpop.f32.mrf.mxu0
    %2788 = vdwg.mxu0
    %v2789 = vmul.f32 %v2732, 0.35355338
    %v2790 = vmul.f32 %v2735, 0.35355338
    %v2791 = vmul.f32 %v2783, 0.35355338
    %v2792 = vmul.f32 %v2786, 0.35355338
    %v2793 = vadd.f32 %v2789, %v603
    %v2794 = vadd.f32 %v2790, %v603
    %v2795 = vadd.f32 %v2791, %v603
    %v2796 = vadd.f32 %v2792, %v603
    %v2797 = vsel %vm609, %v2793, -inf
    %2798 = vmax.xlane.f32.xlu0 %v2797
    %v2799 = vpop.xlane.xlu0 %2798
    %v2800 = vsel %vm609, %v2794, -inf
    %2801 = vmax.xlane.f32.xlu0 %v2800
    %v2802 = vpop.xlane.xlu0 %2801
    %v2803 = vsel %vm609, %v2795, -inf
    %2804 = vmax.xlane.f32.xlu0 %v2803
    %v2805 = vpop.xlane.xlu0 %2804
    %v2806 = vsel %vm609, %v2796, -inf
    %2807 = vmax.xlane.f32.xlu0 %v2806
    %v2808 = vpop.xlane.xlu0 %2807
    %v2809 = vsub.f32 %v2793, %v2799
    %v2810 = vsub.f32 %v2794, %v2802
    %v2811 = vsub.f32 %v2795, %v2805
    %v2812 = vsub.f32 %v2796, %v2808
    %v2813 = vmul.f32 %v2809, 1.442695
    %v2814 = vpow.pop %v2813
    %v2815 = vmul.f32 %v2810, 1.442695
    %v2816 = vpow.pop %v2815
    %v2817 = vmul.f32 %v2811, 1.442695
    %v2818 = vpow.pop %v2817
    %v2819 = vmul.f32 %v2812, 1.442695
    %v2820 = vpow.pop %v2819
    %v2821 = vsel %vm609, %v2814, 0.0
    %2822 = vadd.xlane.f32.xlu0 %v2821
    %v2823 = vpop.xlane.xlu0 %2822
    %v2824 = vsel %vm609, %v2816, 0.0
    %2825 = vadd.xlane.f32.xlu0 %v2824
    %v2826 = vpop.xlane.xlu0 %2825
    %v2827 = vsel %vm609, %v2818, 0.0
    %2828 = vadd.xlane.f32.xlu0 %v2827
    %v2829 = vpop.xlane.xlu0 %2828
    %v2830 = vsel %vm609, %v2820, 0.0
    %2831 = vadd.xlane.f32.xlu0 %v2830
    %v2832 = vpop.xlane.xlu0 %2831
    %v2833 = vrcp.pop %v2823
    %v2834 = vrcp.pop %v2826
    %v2835 = vrcp.pop %v2829
    %v2836 = vrcp.pop %v2832
    %v2837 = vmul.f32 %v2814, %v2833
    %v2838 = vmul.f32 %v2816, %v2834
    %v2839 = vmul.f32 %v2818, %v2835
    %v2840 = vmul.f32 %v2820, %v2836
    %v2841 = vpack.c.bf16 %v2838, %v2837
    %v2842 = vpack.c.bf16 %v2840, %v2839
    %2843 = vrot.lane.b32.xlu0 %v2193, 112
    %v2844 = vpop.permute.xlu0 %2843
    %v2847 = vsel %vm609, %v2841, 0
    %2849 = vmatprep.subr.bf16.mxu0 0
    %2850 = vmatpush1.bf16.msra.mxu0 0
    %2851 = vmatprep.subr.bf16.mxu0 0
    %2852 = vmatpush1.bf16.msra.mxu0 0
    %2853 = vmatprep.subr.bf16.mxu0 0
    %2854 = vmatpush1.bf16.msra.mxu0 0
    %2855 = vmatprep.subr.bf16.mxu0 0
    %2856 = vmatpush1.bf16.msra.mxu0 0
    %2857 = vmatprep.subr.bf16.mxu0 0
    %2858 = vmatpush1.bf16.msra.mxu0 0
    %2859 = vmatprep.subr.bf16.mxu0 0
    %2860 = vmatpush1.bf16.msra.mxu0 0
    %2861 = vmatprep.subr.bf16.mxu0 0
    %2862 = vmatpush1.bf16.msra.mxu0 0
    %2863 = vmatprep.subr.bf16.mxu0 0
    %2864 = vmatpush1.bf16.msra.mxu0 %v2844
    %2865 = vmatprep.subr.bf16.mxu0 0
    %2866 = vmatpush2.bf16.msra.mxu0 0
    %2867 = vmatprep.subr.bf16.mxu0 0
    %2868 = vmatpush2.bf16.msra.mxu0 0
    %2869 = vmatprep.subr.bf16.mxu0 0
    %2870 = vmatpush2.bf16.msra.mxu0 0
    %2871 = vmatprep.subr.bf16.mxu0 0
    %2872 = vmatpush2.bf16.msra.mxu0 0
    %2873 = vmatprep.subr.bf16.mxu0 0
    %2874 = vmatpush2.bf16.msra.mxu0 0
    %2875 = vmatprep.subr.bf16.mxu0 0
    %2876 = vmatpush2.bf16.msra.mxu0 0
    %2877 = vmatprep.subr.bf16.mxu0 0
    %2878 = vmatpush2.bf16.msra.mxu0 0
    %2879 = vmatprep.subr.bf16.mxu0 0
    %2880 = vmatpush2.bf16.msra.mxu0 0
    %2881 = vmatprep.mubr.bf16.mxu0 0
    %2882 = vmatmul.mubr.bf16.gmra.mxu0 %v2847
    %v2883 = vpop.f32.mrf.mxu0
    %v2884 = vadd.f32 0.0, %v2883
    %v2885 = vpop.f32.mrf.mxu0
    %v2886 = vpop.f32.mrf.mxu0
    %v2887 = vadd.f32 0.0, %v2886
    %v2888 = vpop.f32.mrf.mxu0
    %2889 = vdwg.mxu0
    %2890 = vrot.lane.b32.xlu0 %v2194, 112
    %v2891 = vpop.permute.xlu0 %2890
    %v2894 = vsel %vm609, %v2842, 0
    %2896 = vmatprep.subr.bf16.mxu0 0
    %2897 = vmatpush1.bf16.msra.mxu0 0
    %2898 = vmatprep.subr.bf16.mxu0 0
    %2899 = vmatpush1.bf16.msra.mxu0 0
    %2900 = vmatprep.subr.bf16.mxu0 0
    %2901 = vmatpush1.bf16.msra.mxu0 0
    %2902 = vmatprep.subr.bf16.mxu0 0
    %2903 = vmatpush1.bf16.msra.mxu0 0
    %2904 = vmatprep.subr.bf16.mxu0 0
    %2905 = vmatpush1.bf16.msra.mxu0 0
    %2906 = vmatprep.subr.bf16.mxu0 0
    %2907 = vmatpush1.bf16.msra.mxu0 0
    %2908 = vmatprep.subr.bf16.mxu0 0
    %2909 = vmatpush1.bf16.msra.mxu0 0
    %2910 = vmatprep.subr.bf16.mxu0 0
    %2911 = vmatpush1.bf16.msra.mxu0 %v2891
    %2912 = vmatprep.subr.bf16.mxu0 0
    %2913 = vmatpush2.bf16.msra.mxu0 0
    %2914 = vmatprep.subr.bf16.mxu0 0
    %2915 = vmatpush2.bf16.msra.mxu0 0
    %2916 = vmatprep.subr.bf16.mxu0 0
    %2917 = vmatpush2.bf16.msra.mxu0 0
    %2918 = vmatprep.subr.bf16.mxu0 0
    %2919 = vmatpush2.bf16.msra.mxu0 0
    %2920 = vmatprep.subr.bf16.mxu0 0
    %2921 = vmatpush2.bf16.msra.mxu0 0
    %2922 = vmatprep.subr.bf16.mxu0 0
    %2923 = vmatpush2.bf16.msra.mxu0 0
    %2924 = vmatprep.subr.bf16.mxu0 0
    %2925 = vmatpush2.bf16.msra.mxu0 0
    %2926 = vmatprep.subr.bf16.mxu0 0
    %2927 = vmatpush2.bf16.msra.mxu0 0
    %2928 = vmatprep.mubr.bf16.mxu0 0
    %2929 = vmatmul.mubr.bf16.gmra.mxu0 %v2894
    %v2930 = vpop.f32.mrf.mxu0
    %v2931 = vadd.f32 0.0, %v2930
    %v2932 = vpop.f32.mrf.mxu0
    %v2933 = vpop.f32.mrf.mxu0
    %v2934 = vadd.f32 0.0, %v2933
    %v2935 = vpop.f32.mrf.mxu0
    %2936 = vdwg.mxu0
    %2937 = vrot.lane.b32.xlu0 %v2189, 104
    %v2938 = vpop.permute.xlu0 %2937
    %2939 = vrot.lane.b32.xlu0 %v2191, 104
    %v2940 = vpop.permute.xlu0 %2939
    %v2942 = vsel %vm500, %v2938, 0
    %v2945 = vsel %vm500, %v2940, 0
    %2947 = vmatprep.subr.bf16.mxu0 0
    %2948 = vmatpush1.bf16.xpose.msra.mxu0 0
    %2949 = vmatprep.subr.bf16.mxu0 0
    %2950 = vmatpush1.bf16.xpose.msra.mxu0 0
    %2951 = vmatprep.subr.bf16.mxu0 0
    %2952 = vmatpush1.bf16.xpose.msra.mxu0 0
    %2953 = vmatprep.subr.bf16.mxu0 0
    %2954 = vmatpush1.bf16.xpose.msra.mxu0 0
    %2955 = vmatprep.subr.bf16.mxu0 0
    %2956 = vmatpush1.bf16.xpose.msra.mxu0 0
    %2957 = vmatprep.subr.bf16.mxu0 0
    %2958 = vmatpush1.bf16.xpose.msra.mxu0 0
    %2959 = vmatprep.subr.bf16.mxu0 0
    %2960 = vmatpush1.bf16.xpose.msra.mxu0 0
    %2961 = vmatprep.subr.bf16.mxu0 0
    %2962 = vmatpush1.bf16.xpose.msra.mxu0 %v2945
    %2963 = vmatprep.subr.bf16.mxu0 0
    %2964 = vmatpush2.bf16.xpose.msra.mxu0 0
    %2965 = vmatprep.subr.bf16.mxu0 0
    %2966 = vmatpush2.bf16.xpose.msra.mxu0 0
    %2967 = vmatprep.subr.bf16.mxu0 0
    %2968 = vmatpush2.bf16.xpose.msra.mxu0 0
    %2969 = vmatprep.subr.bf16.mxu0 0
    %2970 = vmatpush2.bf16.xpose.msra.mxu0 0
    %2971 = vmatprep.subr.bf16.mxu0 0
    %2972 = vmatpush2.bf16.xpose.msra.mxu0 0
    %2973 = vmatprep.subr.bf16.mxu0 0
    %2974 = vmatpush2.bf16.xpose.msra.mxu0 0
    %2975 = vmatprep.subr.bf16.mxu0 0
    %2976 = vmatpush2.bf16.xpose.msra.mxu0 0
    %2977 = vmatprep.subr.bf16.mxu0 0
    %2978 = vmatpush2.bf16.xpose.msra.mxu0 0
    %2979 = vmatprep.mubr.bf16.mxu0 0
    %2980 = vmatmul.mubr.bf16.gmra.mxu0 %v2942
    %v2981 = vpop.f32.mrf.mxu0
    %v2982 = vadd.f32 0.0, %v2981
    %v2983 = vpop.f32.mrf.mxu0
    %v2984 = vpop.f32.mrf.mxu0
    %v2985 = vadd.f32 0.0, %v2984
    %v2986 = vpop.f32.mrf.mxu0
    %2987 = vdwg.mxu0
    %2988 = vrot.lane.b32.xlu0 %v2190, 104
    %v2989 = vpop.permute.xlu0 %2988
    %2990 = vrot.lane.b32.xlu0 %v2192, 104
    %v2991 = vpop.permute.xlu0 %2990
    %v2993 = vsel %vm500, %v2989, 0
    %v2996 = vsel %vm500, %v2991, 0
    %2998 = vmatprep.subr.bf16.mxu0 0
    %2999 = vmatpush1.bf16.xpose.msra.mxu0 0
    %3000 = vmatprep.subr.bf16.mxu0 0
    %3001 = vmatpush1.bf16.xpose.msra.mxu0 0
    %3002 = vmatprep.subr.bf16.mxu0 0
    %3003 = vmatpush1.bf16.xpose.msra.mxu0 0
    %3004 = vmatprep.subr.bf16.mxu0 0
    %3005 = vmatpush1.bf16.xpose.msra.mxu0 0
    %3006 = vmatprep.subr.bf16.mxu0 0
    %3007 = vmatpush1.bf16.xpose.msra.mxu0 0
    %3008 = vmatprep.subr.bf16.mxu0 0
    %3009 = vmatpush1.bf16.xpose.msra.mxu0 0
    %3010 = vmatprep.subr.bf16.mxu0 0
    %3011 = vmatpush1.bf16.xpose.msra.mxu0 0
    %3012 = vmatprep.subr.bf16.mxu0 0
    %3013 = vmatpush1.bf16.xpose.msra.mxu0 %v2996
    %3014 = vmatprep.subr.bf16.mxu0 0
    %3015 = vmatpush2.bf16.xpose.msra.mxu0 0
    %3016 = vmatprep.subr.bf16.mxu0 0
    %3017 = vmatpush2.bf16.xpose.msra.mxu0 0
    %3018 = vmatprep.subr.bf16.mxu0 0
    %3019 = vmatpush2.bf16.xpose.msra.mxu0 0
    %3020 = vmatprep.subr.bf16.mxu0 0
    %3021 = vmatpush2.bf16.xpose.msra.mxu0 0
    %3022 = vmatprep.subr.bf16.mxu0 0
    %3023 = vmatpush2.bf16.xpose.msra.mxu0 0
    %3024 = vmatprep.subr.bf16.mxu0 0
    %3025 = vmatpush2.bf16.xpose.msra.mxu0 0
    %3026 = vmatprep.subr.bf16.mxu0 0
    %3027 = vmatpush2.bf16.xpose.msra.mxu0 0
    %3028 = vmatprep.subr.bf16.mxu0 0
    %3029 = vmatpush2.bf16.xpose.msra.mxu0 0
    %3030 = vmatprep.mubr.bf16.mxu0 0
    %3031 = vmatmul.mubr.bf16.gmra.mxu0 %v2993
    %v3032 = vpop.f32.mrf.mxu0
    %v3033 = vadd.f32 0.0, %v3032
    %v3034 = vpop.f32.mrf.mxu0
    %v3035 = vpop.f32.mrf.mxu0
    %v3036 = vadd.f32 0.0, %v3035
    %v3037 = vpop.f32.mrf.mxu0
    %3038 = vdwg.mxu0
    %v3039 = vmul.f32 %v2982, 0.35355338
    %v3040 = vmul.f32 %v2985, 0.35355338
    %v3041 = vmul.f32 %v3033, 0.35355338
    %v3042 = vmul.f32 %v3036, 0.35355338
    %v3043 = vadd.f32 %v3039, %v603
    %v3044 = vadd.f32 %v3040, %v603
    %v3045 = vadd.f32 %v3041, %v603
    %v3046 = vadd.f32 %v3042, %v603
    %v3047 = vsel %vm609, %v3043, -inf
    %3048 = vmax.xlane.f32.xlu0 %v3047
    %v3049 = vpop.xlane.xlu0 %3048
    %v3050 = vsel %vm609, %v3044, -inf
    %3051 = vmax.xlane.f32.xlu0 %v3050
    %v3052 = vpop.xlane.xlu0 %3051
    %v3053 = vsel %vm609, %v3045, -inf
    %3054 = vmax.xlane.f32.xlu0 %v3053
    %v3055 = vpop.xlane.xlu0 %3054
    %v3056 = vsel %vm609, %v3046, -inf
    %3057 = vmax.xlane.f32.xlu0 %v3056
    %v3058 = vpop.xlane.xlu0 %3057
    %v3059 = vsub.f32 %v3043, %v3049
    %v3060 = vsub.f32 %v3044, %v3052
    %v3061 = vsub.f32 %v3045, %v3055
    %v3062 = vsub.f32 %v3046, %v3058
    %v3063 = vmul.f32 %v3059, 1.442695
    %v3064 = vpow.pop %v3063
    %v3065 = vmul.f32 %v3060, 1.442695
    %v3066 = vpow.pop %v3065
    %v3067 = vmul.f32 %v3061, 1.442695
    %v3068 = vpow.pop %v3067
    %v3069 = vmul.f32 %v3062, 1.442695
    %v3070 = vpow.pop %v3069
    %v3071 = vsel %vm609, %v3064, 0.0
    %3072 = vadd.xlane.f32.xlu0 %v3071
    %v3073 = vpop.xlane.xlu0 %3072
    %v3074 = vsel %vm609, %v3066, 0.0
    %3075 = vadd.xlane.f32.xlu0 %v3074
    %v3076 = vpop.xlane.xlu0 %3075
    %v3077 = vsel %vm609, %v3068, 0.0
    %3078 = vadd.xlane.f32.xlu0 %v3077
    %v3079 = vpop.xlane.xlu0 %3078
    %v3080 = vsel %vm609, %v3070, 0.0
    %3081 = vadd.xlane.f32.xlu0 %v3080
    %v3082 = vpop.xlane.xlu0 %3081
    %v3083 = vrcp.pop %v3073
    %v3084 = vrcp.pop %v3076
    %v3085 = vrcp.pop %v3079
    %v3086 = vrcp.pop %v3082
    %v3087 = vmul.f32 %v3064, %v3083
    %v3088 = vmul.f32 %v3066, %v3084
    %v3089 = vmul.f32 %v3068, %v3085
    %v3090 = vmul.f32 %v3070, %v3086
    %v3091 = vpack.c.bf16 %v3088, %v3087
    %v3092 = vpack.c.bf16 %v3090, %v3089
    %3093 = vrot.lane.b32.xlu0 %v2193, 104
    %v3094 = vpop.permute.xlu0 %3093
    %v3097 = vsel %vm609, %v3091, 0
    %3099 = vmatprep.subr.bf16.mxu0 0
    %3100 = vmatpush1.bf16.msra.mxu0 0
    %3101 = vmatprep.subr.bf16.mxu0 0
    %3102 = vmatpush1.bf16.msra.mxu0 0
    %3103 = vmatprep.subr.bf16.mxu0 0
    %3104 = vmatpush1.bf16.msra.mxu0 0
    %3105 = vmatprep.subr.bf16.mxu0 0
    %3106 = vmatpush1.bf16.msra.mxu0 0
    %3107 = vmatprep.subr.bf16.mxu0 0
    %3108 = vmatpush1.bf16.msra.mxu0 0
    %3109 = vmatprep.subr.bf16.mxu0 0
    %3110 = vmatpush1.bf16.msra.mxu0 0
    %3111 = vmatprep.subr.bf16.mxu0 0
    %3112 = vmatpush1.bf16.msra.mxu0 0
    %3113 = vmatprep.subr.bf16.mxu0 0
    %3114 = vmatpush1.bf16.msra.mxu0 %v3094
    %3115 = vmatprep.subr.bf16.mxu0 0
    %3116 = vmatpush2.bf16.msra.mxu0 0
    %3117 = vmatprep.subr.bf16.mxu0 0
    %3118 = vmatpush2.bf16.msra.mxu0 0
    %3119 = vmatprep.subr.bf16.mxu0 0
    %3120 = vmatpush2.bf16.msra.mxu0 0
    %3121 = vmatprep.subr.bf16.mxu0 0
    %3122 = vmatpush2.bf16.msra.mxu0 0
    %3123 = vmatprep.subr.bf16.mxu0 0
    %3124 = vmatpush2.bf16.msra.mxu0 0
    %3125 = vmatprep.subr.bf16.mxu0 0
    %3126 = vmatpush2.bf16.msra.mxu0 0
    %3127 = vmatprep.subr.bf16.mxu0 0
    %3128 = vmatpush2.bf16.msra.mxu0 0
    %3129 = vmatprep.subr.bf16.mxu0 0
    %3130 = vmatpush2.bf16.msra.mxu0 0
    %3131 = vmatprep.mubr.bf16.mxu0 0
    %3132 = vmatmul.mubr.bf16.gmra.mxu0 %v3097
    %v3133 = vpop.f32.mrf.mxu0
    %v3134 = vadd.f32 0.0, %v3133
    %v3135 = vpop.f32.mrf.mxu0
    %v3136 = vpop.f32.mrf.mxu0
    %v3137 = vadd.f32 0.0, %v3136
    %v3138 = vpop.f32.mrf.mxu0
    %3139 = vdwg.mxu0
    %3140 = vrot.lane.b32.xlu0 %v2194, 104
    %v3141 = vpop.permute.xlu0 %3140
    %v3144 = vsel %vm609, %v3092, 0
    %3146 = vmatprep.subr.bf16.mxu0 0
    %3147 = vmatpush1.bf16.msra.mxu0 0
    %3148 = vmatprep.subr.bf16.mxu0 0
    %3149 = vmatpush1.bf16.msra.mxu0 0
    %3150 = vmatprep.subr.bf16.mxu0 0
    %3151 = vmatpush1.bf16.msra.mxu0 0
    %3152 = vmatprep.subr.bf16.mxu0 0
    %3153 = vmatpush1.bf16.msra.mxu0 0
    %3154 = vmatprep.subr.bf16.mxu0 0
    %3155 = vmatpush1.bf16.msra.mxu0 0
    %3156 = vmatprep.subr.bf16.mxu0 0
    %3157 = vmatpush1.bf16.msra.mxu0 0
    %3158 = vmatprep.subr.bf16.mxu0 0
    %3159 = vmatpush1.bf16.msra.mxu0 0
    %3160 = vmatprep.subr.bf16.mxu0 0
    %3161 = vmatpush1.bf16.msra.mxu0 %v3141
    %3162 = vmatprep.subr.bf16.mxu0 0
    %3163 = vmatpush2.bf16.msra.mxu0 0
    %3164 = vmatprep.subr.bf16.mxu0 0
    %3165 = vmatpush2.bf16.msra.mxu0 0
    %3166 = vmatprep.subr.bf16.mxu0 0
    %3167 = vmatpush2.bf16.msra.mxu0 0
    %3168 = vmatprep.subr.bf16.mxu0 0
    %3169 = vmatpush2.bf16.msra.mxu0 0
    %3170 = vmatprep.subr.bf16.mxu0 0
    %3171 = vmatpush2.bf16.msra.mxu0 0
    %3172 = vmatprep.subr.bf16.mxu0 0
    %3173 = vmatpush2.bf16.msra.mxu0 0
    %3174 = vmatprep.subr.bf16.mxu0 0
    %3175 = vmatpush2.bf16.msra.mxu0 0
    %3176 = vmatprep.subr.bf16.mxu0 0
    %3177 = vmatpush2.bf16.msra.mxu0 0
    %3178 = vmatprep.mubr.bf16.mxu0 0
    %3179 = vmatmul.mubr.bf16.gmra.mxu0 %v3144
    %v3180 = vpop.f32.mrf.mxu0
    %v3181 = vadd.f32 0.0, %v3180
    %v3182 = vpop.f32.mrf.mxu0
    %v3183 = vpop.f32.mrf.mxu0
    %v3184 = vadd.f32 0.0, %v3183
    %v3185 = vpop.f32.mrf.mxu0
    %3186 = vdwg.mxu0
    %3191 = vrot.lane.b32.xlu0 %v2633, 8
    %v3192 = vpop.permute.xlu0 %3191
    %3193 = vrot.lane.b32.xlu0 %v2636, 8
    %v3194 = vpop.permute.xlu0 %3193
    %3195 = vrot.lane.b32.xlu0 %v2681, 8
    %v3196 = vpop.permute.xlu0 %3195
    %3197 = vrot.lane.b32.xlu0 %v2684, 8
    %v3198 = vpop.permute.xlu0 %3197
    %3207 = vrot.lane.b32.xlu0 %v2884, 16
    %v3208 = vpop.permute.xlu0 %3207
    %3209 = vrot.lane.b32.xlu0 %v2887, 16
    %v3210 = vpop.permute.xlu0 %3209
    %3211 = vrot.lane.b32.xlu0 %v2931, 16
    %v3212 = vpop.permute.xlu0 %3211
    %3213 = vrot.lane.b32.xlu0 %v2934, 16
    %v3214 = vpop.permute.xlu0 %3213
    %3223 = vrot.lane.b32.xlu0 %v3134, 24
    %v3224 = vpop.permute.xlu0 %3223
    %3225 = vrot.lane.b32.xlu0 %v3137, 24
    %v3226 = vpop.permute.xlu0 %3225
    %3227 = vrot.lane.b32.xlu0 %v3181, 24
    %v3228 = vpop.permute.xlu0 %3227
    %3229 = vrot.lane.b32.xlu0 %v3184, 24
    %v3230 = vpop.permute.xlu0 %3229
    %v3235 = vsel %vm500, %v2381, %v3192
    %v3236 = vsel %vm500, %v2384, %v3194
    %v3237 = vsel %vm500, %v2425, %v3196
    %v3238 = vsel %vm500, %v2428, %v3198
    %v3239 = vsel %vm609, %v3235, %v3208
    %v3240 = vsel %vm609, %v3236, %v3210
    %v3241 = vsel %vm609, %v3237, %v3212
    %v3242 = vsel %vm609, %v3238, %v3214
    %v3243 = vsel %vm1556, %v3239, %v3224
    %v3244 = vsel %vm1556, %v3240, %v3226
    %v3245 = vsel %vm1556, %v3241, %v3228
    %v3246 = vsel %vm1556, %v3242, %v3230
    %v3247 = vpack.c.bf16 %v3244, %v3243
    %v3248 = vpack.c.bf16 %v3246, %v3245
    %v3249 = vlaneseq
    %v3250 = vshrl.u32 %v3249, 7
    %v3251 = vsub.s32 0, %v3250
    %v3252 = vrot.slane %v1965, %v3251
    %v3257 = vunpack.c.l.b16 %v1961
    %v3258 = vunpack.c.l.b16 %v1962
    %v3259 = vunpack.c.l.b16 %v1963
    %v3260 = vunpack.c.l.b16 %v1964
    %v3261 = vpack.c.b16 %v3258, %v3257
    %v3262 = vpack.c.b16 %v3260, %v3259
    %v3266 = vsel %vm242, %v3247, 0
    %v3269 = vsel %vm242, %v3248, 0
    %3271 = vmatprep.subr.bf16.mxu0 0
    %3272 = vmatpush1.bf16.msra.mxu0 0
    %3273 = vmatprep.subr.bf16.mxu0 0
    %3274 = vmatpush1.bf16.msra.mxu0 0
    %3275 = vmatprep.subr.bf16.mxu0 0
    %3276 = vmatpush1.bf16.msra.mxu0 0
    %3277 = vmatprep.subr.bf16.mxu0 0
    %3278 = vmatpush1.bf16.msra.mxu0 0
    %3279 = vmatprep.subr.bf16.mxu0 0
    %3280 = vmatpush1.bf16.msra.mxu0 0
    %3281 = vmatprep.subr.bf16.mxu0 0
    %3282 = vmatpush1.bf16.msra.mxu0 0
    %3283 = vmatprep.subr.bf16.mxu0 0
    %3284 = vmatpush1.bf16.msra.mxu0 %v3262
    %3285 = vmatprep.subr.bf16.mxu0 0
    %3286 = vmatpush1.bf16.msra.mxu0 %v3261
    %3287 = vmatprep.subr.bf16.mxu0 0
    %3288 = vmatpush2.bf16.msra.mxu0 0
    %3289 = vmatprep.subr.bf16.mxu0 0
    %3290 = vmatpush2.bf16.msra.mxu0 0
    %3291 = vmatprep.subr.bf16.mxu0 0
    %3292 = vmatpush2.bf16.msra.mxu0 0
    %3293 = vmatprep.subr.bf16.mxu0 0
    %3294 = vmatpush2.bf16.msra.mxu0 0
    %3295 = vmatprep.subr.bf16.mxu0 0
    %3296 = vmatpush2.bf16.msra.mxu0 0
    %3297 = vmatprep.subr.bf16.mxu0 0
    %3298 = vmatpush2.bf16.msra.mxu0 0
    %3299 = vmatprep.subr.bf16.mxu0 0
    %3300 = vmatpush2.bf16.msra.mxu0 0
    %3301 = vmatprep.subr.bf16.mxu0 0
    %3302 = vmatpush2.bf16.msra.mxu0 0
    %3303 = vmatprep.mubr.bf16.mxu0 0
    %3304 = vmatmul.mubr.bf16.gmra.mxu0 %v3266
    %v3305 = vpop.f32.mrf.mxu0
    %v3306 = vadd.f32 %v3252, %v3305
    %v3307 = vpop.f32.mrf.mxu0
    %v3308 = vpop.f32.mrf.mxu0
    %v3309 = vadd.f32 %v3252, %v3308
    %v3310 = vpop.f32.mrf.mxu0
    %3311 = vmatprep.mubr.bf16.mxu0 0
    %3312 = vmatmul.mubr.bf16.gmra.mxu0 %v3269
    %v3313 = vpop.f32.mrf.mxu0
    %v3314 = vadd.f32 %v3252, %v3313
    %v3315 = vpop.f32.mrf.mxu0
    %v3316 = vpop.f32.mrf.mxu0
    %v3317 = vadd.f32 %v3252, %v3316
    %v3318 = vpop.f32.mrf.mxu0
    %3319 = vdwg.mxu0
    %v3320 = vadd.f32 %v1938, %v3306
    %v3321 = vadd.f32 %v1939, %v3309
    %v3322 = vadd.f32 %v1940, %v3314
    %v3323 = vadd.f32 %v1941, %v3317
    %v3324 = vsel %vm242, %v3320, 0.0
    %3325 = vadd.xlane.f32.xlu0 %v3324
    %v3326 = vpop.xlane.xlu0 %3325
    %v3327 = vsel %vm242, %v3321, 0.0
    %3328 = vadd.xlane.f32.xlu0 %v3327
    %v3329 = vpop.xlane.xlu0 %3328
    %v3330 = vsel %vm242, %v3322, 0.0
    %3331 = vadd.xlane.f32.xlu0 %v3330
    %v3332 = vpop.xlane.xlu0 %3331
    %v3333 = vsel %vm242, %v3323, 0.0
    %3334 = vadd.xlane.f32.xlu0 %v3333
    %v3335 = vpop.xlane.xlu0 %3334
    %v3336 = vmul.f32 %v3326, %v1650
    %v3337 = vmul.f32 %v3329, %v1650
    %v3338 = vmul.f32 %v3332, %v1650
    %v3339 = vmul.f32 %v3335, %v1650
    %v3340 = vsub.f32 %v3320, %v3336
    %v3341 = vsub.f32 %v3321, %v3337
    %v3342 = vsub.f32 %v3322, %v3338
    %v3343 = vsub.f32 %v3323, %v3339
    %v3344 = vmul.f32 %v3340, %v3340
    %v3345 = vmul.f32 %v3341, %v3341
    %v3346 = vmul.f32 %v3342, %v3342
    %v3347 = vmul.f32 %v3343, %v3343
    %v3348 = vsel %vm242, %v3344, 0.0
    %3349 = vadd.xlane.f32.xlu0 %v3348
    %v3350 = vpop.xlane.xlu0 %3349
    %v3351 = vsel %vm242, %v3345, 0.0
    %3352 = vadd.xlane.f32.xlu0 %v3351
    %v3353 = vpop.xlane.xlu0 %3352
    %v3354 = vsel %vm242, %v3346, 0.0
    %3355 = vadd.xlane.f32.xlu0 %v3354
    %v3356 = vpop.xlane.xlu0 %3355
    %v3357 = vsel %vm242, %v3347, 0.0
    %3358 = vadd.xlane.f32.xlu0 %v3357
    %v3359 = vpop.xlane.xlu0 %3358
    %v3360 = vmul.f32 %v3350, %v1650
    %v3361 = vmul.f32 %v3353, %v1650
    %v3362 = vmul.f32 %v3356, %v1650
    %v3363 = vmul.f32 %v3359, %v1650
    %v3364 = vadd.f32 %v3360, 1e-05
    %v3365 = vadd.f32 %v3361, 1e-05
    %v3366 = vadd.f32 %v3362, 1e-05
    %v3367 = vadd.f32 %v3363, 1e-05
    %v3368 = vrsqrt.pop %v3364
    %v3369 = vrsqrt.pop %v3365
    %v3370 = vrsqrt.pop %v3366
    %v3371 = vrsqrt.pop %v3367
    %v3372 = vmul.f32 %v3340, %v3368
    %v3373 = vmul.f32 %v3341, %v3369
    %v3374 = vmul.f32 %v3342, %v3370
    %v3375 = vmul.f32 %v3343, %v3371
    %v3376 = vlaneseq
    %v3377 = vshrl.u32 %v3376, 7
    %v3378 = vsub.s32 0, %v3377
    %v3379 = vrot.slane %v1966, %v3378
    %v3380 = vmul.f32 %v3372, %v3379
    %v3381 = vmul.f32 %v3373, %v3379
    %v3382 = vmul.f32 %v3374, %v3379
    %v3383 = vmul.f32 %v3375, %v3379
    %v3384 = vlaneseq
    %v3385 = vshrl.u32 %v3384, 7
    %v3386 = vsub.s32 0, %v3385
    %v3387 = vrot.slane %v1967, %v3386
    %v3388 = vadd.f32 %v3380, %v3387
    %v3389 = vadd.f32 %v3381, %v3387
    %v3390 = vadd.f32 %v3382, %v3387
    %v3391 = vadd.f32 %v3383, %v3387
    %v3392 = vpack.c.bf16 %v3389, %v3388
    %v3393 = vpack.c.bf16 %v3391, %v3390
    %v3394 = vlaneseq
    %v3395 = vshrl.u32 %v3394, 7
    %v3396 = vsub.s32 0, %v3395
    %v3397 = vrot.slane %v1975, %v3396
    %v3402 = vunpack.c.l.b16 %v1971
    %v3403 = vunpack.c.l.b16 %v1972
    %v3404 = vunpack.c.l.b16 %v1973
    %v3405 = vunpack.c.l.b16 %v1974
    %v3406 = vpack.c.b16 %v3403, %v3402
    %v3407 = vpack.c.b16 %v3405, %v3404
    %v3411 = vsel %vm242, %v3392, 0
    %v3414 = vsel %vm242, %v3393, 0
    %3416 = vmatprep.subr.bf16.mxu0 0
    %3417 = vmatpush1.bf16.msra.mxu0 0
    %3418 = vmatprep.subr.bf16.mxu0 0
    %3419 = vmatpush1.bf16.msra.mxu0 0
    %3420 = vmatprep.subr.bf16.mxu0 0
    %3421 = vmatpush1.bf16.msra.mxu0 0
    %3422 = vmatprep.subr.bf16.mxu0 0
    %3423 = vmatpush1.bf16.msra.mxu0 0
    %3424 = vmatprep.subr.bf16.mxu0 0
    %3425 = vmatpush1.bf16.msra.mxu0 0
    %3426 = vmatprep.subr.bf16.mxu0 0
    %3427 = vmatpush1.bf16.msra.mxu0 0
    %3428 = vmatprep.subr.bf16.mxu0 0
    %3429 = vmatpush1.bf16.msra.mxu0 %v3407
    %3430 = vmatprep.subr.bf16.mxu0 0
    %3431 = vmatpush1.bf16.msra.mxu0 %v3406
    %3432 = vmatprep.subr.bf16.mxu0 0
    %3433 = vmatpush2.bf16.msra.mxu0 0
    %3434 = vmatprep.subr.bf16.mxu0 0
    %3435 = vmatpush2.bf16.msra.mxu0 0
    %3436 = vmatprep.subr.bf16.mxu0 0
    %3437 = vmatpush2.bf16.msra.mxu0 0
    %3438 = vmatprep.subr.bf16.mxu0 0
    %3439 = vmatpush2.bf16.msra.mxu0 0
    %3440 = vmatprep.subr.bf16.mxu0 0
    %3441 = vmatpush2.bf16.msra.mxu0 0
    %3442 = vmatprep.subr.bf16.mxu0 0
    %3443 = vmatpush2.bf16.msra.mxu0 0
    %3444 = vmatprep.subr.bf16.mxu0 0
    %3445 = vmatpush2.bf16.msra.mxu0 0
    %3446 = vmatprep.subr.bf16.mxu0 0
    %3447 = vmatpush2.bf16.msra.mxu0 0
    %3448 = vmatprep.mubr.bf16.mxu0 0
    %3449 = vmatmul.mubr.bf16.gmra.mxu0 %v3411
    %v3450 = vpop.f32.mrf.mxu0
    %v3451 = vadd.f32 %v3397, %v3450
    %v3452 = vpop.f32.mrf.mxu0
    %v3453 = vpop.f32.mrf.mxu0
    %v3454 = vadd.f32 %v3397, %v3453
    %v3455 = vpop.f32.mrf.mxu0
    %3456 = vmatprep.mubr.bf16.mxu0 0
    %3457 = vmatmul.mubr.bf16.gmra.mxu0 %v3414
    %v3458 = vpop.f32.mrf.mxu0
    %v3459 = vadd.f32 %v3397, %v3458
    %v3460 = vpop.f32.mrf.mxu0
    %v3461 = vpop.f32.mrf.mxu0
    %v3462 = vadd.f32 %v3397, %v3461
    %v3463 = vpop.f32.mrf.mxu0
    %3464 = vdwg.mxu0
    %v3465 = vmax.f32 %v3451, 0.0
    %v3466 = vmax.f32 %v3454, 0.0
    %v3467 = vmax.f32 %v3459, 0.0
    %v3468 = vmax.f32 %v3462, 0.0
    %v3469 = vpack.c.bf16 %v3466, %v3465
    %v3470 = vpack.c.bf16 %v3468, %v3467
    %v3471 = vlaneseq
    %v3472 = vshrl.u32 %v3471, 7
    %v3473 = vsub.s32 0, %v3472
    %v3474 = vrot.slane %v1985, %v3473
    %v3483 = vunpack.c.l.b16 %v1977
    %v3484 = vunpack.c.l.b16 %v1978
    %v3485 = vunpack.c.l.b16 %v1979
    %v3486 = vunpack.c.l.b16 %v1980
    %v3487 = vunpack.c.l.b16 %v1981
    %v3488 = vunpack.c.l.b16 %v1982
    %v3489 = vunpack.c.l.b16 %v1983
    %v3490 = vunpack.c.l.b16 %v1984
    %v3491 = vpack.c.b16 %v3484, %v3483
    %v3492 = vpack.c.b16 %v3486, %v3485
    %v3493 = vpack.c.b16 %v3488, %v3487
    %v3494 = vpack.c.b16 %v3490, %v3489
    %v3500 = vsel %vm1814, %v3469, 0
    %v3503 = vsel %vm1814, %v3470, 0
    %3505 = vmatprep.subr.bf16.mxu0 0
    %3506 = vmatpush1.bf16.msra.mxu0 0
    %3507 = vmatprep.subr.bf16.mxu0 0
    %3508 = vmatpush1.bf16.msra.mxu0 0
    %3509 = vmatprep.subr.bf16.mxu0 0
    %3510 = vmatpush1.bf16.msra.mxu0 0
    %3511 = vmatprep.subr.bf16.mxu0 0
    %3512 = vmatpush1.bf16.msra.mxu0 0
    %3513 = vmatprep.subr.bf16.mxu0 0
    %3514 = vmatpush1.bf16.msra.mxu0 %v3494
    %3515 = vmatprep.subr.bf16.mxu0 0
    %3516 = vmatpush1.bf16.msra.mxu0 %v3493
    %3517 = vmatprep.subr.bf16.mxu0 0
    %3518 = vmatpush1.bf16.msra.mxu0 %v3492
    %3519 = vmatprep.subr.bf16.mxu0 0
    %3520 = vmatpush1.bf16.msra.mxu0 %v3491
    %3521 = vmatprep.subr.bf16.mxu0 0
    %3522 = vmatpush2.bf16.msra.mxu0 0
    %3523 = vmatprep.subr.bf16.mxu0 0
    %3524 = vmatpush2.bf16.msra.mxu0 0
    %3525 = vmatprep.subr.bf16.mxu0 0
    %3526 = vmatpush2.bf16.msra.mxu0 0
    %3527 = vmatprep.subr.bf16.mxu0 0
    %3528 = vmatpush2.bf16.msra.mxu0 0
    %3529 = vmatprep.subr.bf16.mxu0 0
    %3530 = vmatpush2.bf16.msra.mxu0 0
    %3531 = vmatprep.subr.bf16.mxu0 0
    %3532 = vmatpush2.bf16.msra.mxu0 0
    %3533 = vmatprep.subr.bf16.mxu0 0
    %3534 = vmatpush2.bf16.msra.mxu0 0
    %3535 = vmatprep.subr.bf16.mxu0 0
    %3536 = vmatpush2.bf16.msra.mxu0 0
    %3537 = vmatprep.mubr.bf16.mxu0 0
    %3538 = vmatmul.mubr.bf16.gmra.mxu0 %v3500
    %v3539 = vpop.f32.mrf.mxu0
    %v3540 = vadd.f32 %v3474, %v3539
    %v3541 = vpop.f32.mrf.mxu0
    %v3542 = vpop.f32.mrf.mxu0
    %v3543 = vpop.f32.mrf.mxu0
    %3544 = vmatprep.mubr.bf16.mxu0 0
    %3545 = vmatmul.mubr.bf16.gmra.mxu0 %v3503
    %v3546 = vpop.f32.mrf.mxu0
    %v3547 = vadd.f32 %v3474, %v3546
    %v3548 = vpop.f32.mrf.mxu0
    %v3549 = vpop.f32.mrf.mxu0
    %v3550 = vpop.f32.mrf.mxu0
    %3551 = vdwg.mxu0
    %v3552 = vadd.f32 %v3388, %v3540
    %v3553 = vadd.f32 %v3390, %v3547
    %v3554 = vsel %vm242, %v3552, 0.0
    %3555 = vadd.xlane.f32.xlu0 %v3554
    %v3556 = vpop.xlane.xlu0 %3555
    %v3557 = vsel %vm242, %v3553, 0.0
    %3558 = vadd.xlane.f32.xlu0 %v3557
    %v3559 = vpop.xlane.xlu0 %3558
    %v3560 = vmul.f32 %v3556, %v1650
    %v3561 = vmul.f32 %v3559, %v1650
    %v3562 = vsub.f32 %v3552, %v3560
    %v3563 = vsub.f32 %v3553, %v3561
    %v3564 = vmul.f32 %v3562, %v3562
    %v3565 = vmul.f32 %v3563, %v3563
    %v3566 = vsel %vm242, %v3564, 0.0
    %3567 = vadd.xlane.f32.xlu0 %v3566
    %v3568 = vpop.xlane.xlu0 %3567
    %v3569 = vsel %vm242, %v3565, 0.0
    %3570 = vadd.xlane.f32.xlu0 %v3569
    %v3571 = vpop.xlane.xlu0 %3570
    %v3572 = vmul.f32 %v3568, %v1650
    %v3573 = vmul.f32 %v3571, %v1650
    %v3574 = vadd.f32 %v3572, 1e-05
    %v3575 = vadd.f32 %v3573, 1e-05
    %v3576 = vrsqrt.pop %v3574
    %v3577 = vrsqrt.pop %v3575
    %v3578 = vmul.f32 %v3562, %v3576
    %v3579 = vmul.f32 %v3563, %v3577
    %v3580 = vlaneseq
    %v3581 = vshrl.u32 %v3580, 7
    %v3582 = vsub.s32 0, %v3581
    %v3583 = vrot.slane %v1968, %v3582
    %v3584 = vmul.f32 %v3578, %v3583
    %v3585 = vmul.f32 %v3579, %v3583
    %v3586 = vlaneseq
    %v3587 = vshrl.u32 %v3586, 7
    %v3588 = vsub.s32 0, %v3587
    %v3589 = vrot.slane %v1969, %v3588
    %v3590 = vadd.f32 %v3584, %v3589
    %v3591 = vadd.f32 %v3585, %v3589
    %v3592 = vpack.c.bf16 %v3590, %v3590
    %v3593 = vpack.c.bf16 %v3591, %v3591
    %v3594 = vld [vmem:[#allocation21] sm:$0xf]
    %v3595 = vld [vmem:[#allocation21 + $0x4] sm:$0xf]
    %v3596 = vld [vmem:[#allocation21 + $0x8] sm:$0xf]
    %v3597 = vld [vmem:[#allocation21 + $0xc] sm:$0xf]
    %v3598 = vld [vmem:[#allocation23] sm:$0x1]
    %v3600 = vlaneseq
    %v3601 = vshrl.u32 %v3600, 7
    %v3602 = vsub.s32 0, %v3601
    %v3603 = vrot.slane %v3598, %v3602
    %v3607 = vunpack.c.l.b16 %v3592
    %v3608 = vunpack.c.l.b16 %v3593
    %v3609 = vrot.slane %v3608, 7
    %vm3610 = vcmask 1041409
    %v3611 = vsel %vm3610, %v3609, %v3607
    %v3612 = vpack.c.b16 %v3611, %v3611
    %v3617 = vunpack.c.l.b16 %v3594
    %v3618 = vunpack.c.l.b16 %v3595
    %v3619 = vunpack.c.l.b16 %v3596
    %v3620 = vunpack.c.l.b16 %v3597
    %v3621 = vpack.c.b16 %v3618, %v3617
    %v3622 = vpack.c.b16 %v3620, %v3619
    %v3626 = vsel %vm242, %v3612, 0
    %3628 = vmatprep.subr.bf16.mxu0 0
    %3629 = vmatpush1.bf16.msra.mxu0 0
    %3630 = vmatprep.subr.bf16.mxu0 0
    %3631 = vmatpush1.bf16.msra.mxu0 0
    %3632 = vmatprep.subr.bf16.mxu0 0
    %3633 = vmatpush1.bf16.msra.mxu0 0
    %3634 = vmatprep.subr.bf16.mxu0 0
    %3635 = vmatpush1.bf16.msra.mxu0 0
    %3636 = vmatprep.subr.bf16.mxu0 0
    %3637 = vmatpush1.bf16.msra.mxu0 0
    %3638 = vmatprep.subr.bf16.mxu0 0
    %3639 = vmatpush1.bf16.msra.mxu0 0
    %3640 = vmatprep.subr.bf16.mxu0 0
    %3641 = vmatpush1.bf16.msra.mxu0 %v3622
    %3642 = vmatprep.subr.bf16.mxu0 0
    %3643 = vmatpush1.bf16.msra.mxu0 %v3621
    %3644 = vmatprep.subr.bf16.mxu0 0
    %3645 = vmatpush2.bf16.msra.mxu0 0
    %3646 = vmatprep.subr.bf16.mxu0 0
    %3647 = vmatpush2.bf16.msra.mxu0 0
    %3648 = vmatprep.subr.bf16.mxu0 0
    %3649 = vmatpush2.bf16.msra.mxu0 0
    %3650 = vmatprep.subr.bf16.mxu0 0
    %3651 = vmatpush2.bf16.msra.mxu0 0
    %3652 = vmatprep.subr.bf16.mxu0 0
    %3653 = vmatpush2.bf16.msra.mxu0 0
    %3654 = vmatprep.subr.bf16.mxu0 0
    %3655 = vmatpush2.bf16.msra.mxu0 0
    %3656 = vmatprep.subr.bf16.mxu0 0
    %3657 = vmatpush2.bf16.msra.mxu0 0
    %3658 = vmatprep.subr.bf16.mxu0 0
    %3659 = vmatpush2.bf16.msra.mxu0 0
    %3660 = vmatprep.mubr.bf16.mxu0 0
    %3661 = vmatmul.mubr.bf16.gmra.mxu0 %v3626
    %v3662 = vpop.f32.mrf.mxu0
    %v3663 = vadd.f32 %v3603, %v3662
    %v3664 = vpop.f32.mrf.mxu0
    %v3665 = vpop.f32.mrf.mxu0
    %v3666 = vpop.f32.mrf.mxu0
    %3667 = vdwg.mxu0
    %3668 = vst [vmem:[#allocation24] sm:$0x3] %v3663
    // Predicated region
    $region142: #{eeg_transformer_classifier.1} parent=1 // pred_check
      _
    $region143: #{eeg_transformer_classifier.1} parent=1 // pred_check_branch
      %3670 = sbr.rel (0) target = $region145
    $region144: #{eeg_transformer_classifier.1} parent=1 // pred_region
      %s3672 = ssub.s32 32, 32
      %3673 = vsyncadd [#allocation5], %s3672
      %s3675 = sshll.u32 [#allocation24], 4
      %s3676 = int_to_ptr.vmem [resolvable:$true] %s3675
      %3678 = dma.vmem_to_hbm [thread:$0]  %s3676, 32, %s22, [#allocation5]
    $region145: #{eeg_transformer_classifier.1} parent=1 // pred_fallthru
      _
    // Predicated region
    $region146: #{eeg_transformer_classifier.1} parent=1 // pred_check
      _
    $region147: #{eeg_transformer_classifier.1} parent=1 // pred_check_branch
      %3680 = sbr.rel (0) target = $region149
    $region148: #{eeg_transformer_classifier.1} parent=1 // pred_region
      %3681 = dma.done [#allocation5], 32
    $region149: #{eeg_transformer_classifier.1} parent=1 // pred_fallthru
      _
    %3682 = vsyncpa [#allocation4], 1
    %3683 = vsyncpa [#allocation7], 1
    %3684 = vsyncpa [#allocation10], 1
    %3685 = vsyncpa [#allocation13], 1
    %3686 = vsyncpa [#allocation16], 1
    %3687 = vsyncpa [#allocation19], 1
    %3688 = vsyncpa [#allocation22], 1
    %3689 = vsyncpa [#allocation5], 1

</llo_original>
